<compile_context>
chip_gen: v7x
topology: tpu7x:2x2x1
jax: 0.10.0
libtpu: 0.0.40
codegen_flags: <defaults>
</compile_context>

<pallas_src>
import math
from functools import partial

import jax
import jax.numpy as jnp
from jax import lax
from jax.experimental import pallas as pl
from jax.experimental.pallas import tpu as pltpu


# ----------------------------------------------------------------------------
# In-kernel helpers
# ----------------------------------------------------------------------------
def _topk_select(xl, xc, k_num):
    """Cosine similarity of each neighbour vs. the centre + iterative top-k.

    xl: (rows, L, C) f32 gathered neighbourhood, xc: (rows, C) f32 centres.
    Dot-then-rsqrt formulation (rsqrt runs on the EUP slot); the F.normalize
    eps=1e-12 clamp is folded into the rsqrt argument (eps**2 on the squared norm).
    Returns ([k one-hot (rows, L) f32 masks], top_idx (rows, k) int32).
    """
    eps2 = 1e-24  # (F.normalize eps = 1e-12) ** 2
    rows, L, _ = xl.shape
    dots = jnp.sum(xl * xc[:, None, :], axis=-1)                               # (rows, L)
    inv_l = lax.rsqrt(jnp.maximum(jnp.sum(xl * xl, axis=-1), eps2))            # (rows, L)
    inv_c = lax.rsqrt(jnp.maximum(jnp.sum(xc * xc, axis=-1, keepdims=True), eps2))
    sim = dots * inv_l * inv_c                                                 # (rows, L)

    lane = lax.broadcasted_iota(jnp.int32, (rows, L), 1)
    kcol = lax.broadcasted_iota(jnp.int32, (rows, k_num), 1)
    top_idx = jnp.zeros((rows, k_num), jnp.int32)
    onehots = []
    cur = sim
    for j in range(k_num):  # k_num is tiny and static (e.g. 4)
        mx = jnp.max(cur, axis=-1, keepdims=True)
        sel = jnp.min(jnp.where(cur >= mx, lane, L), axis=-1, keepdims=True)   # lowest max idx
        oh = lane == sel
        onehots.append(oh.astype(jnp.float32))
        top_idx = jnp.where(kcol == j, sel, top_idx)
        cur = jnp.where(oh, jnp.float32(-1e30), cur)
    return onehots, top_idx


# ----------------------------------------------------------------------------
# Fused kernels
# ----------------------------------------------------------------------------
def _make_mlp2_fused_kernel(TM, k_num, O):
    """h == patch_size path: sim -> topk -> select -> Linear/ReLU/Linear -> l2norm."""

    def kernel(xl_ref, xc_ref, w1_ref, b1_ref, w2_ref, b2_ref, o_ref, idx_ref):
        xl = xl_ref[...].astype(jnp.float32)          # (TM, L, C)
        xc = xc_ref[...].astype(jnp.float32)          # (TM, C)
        onehots, top_idx = _topk_select(xl, xc, k_num)
        idx_ref[...] = top_idx

        w1 = w1_ref[...]                              # bf16 (C, nc)
        w2 = w2_ref[...]                              # bf16 (nc, nc)
        b1 = b1_ref[...]
        b2 = b2_ref[...]

        # row-type 0 = centre, row-type r>0 = r-th most similar neighbour
        rows = [xc] + [jnp.sum(oh[:, :, None] * xl, axis=1) for oh in onehots]
        for r, x_r in enumerate(rows):
            # Linear + ReLU + Linear: bf16 MXU inputs, f32 accumulation, f32 epilogue.
            h = jnp.dot(x_r.astype(jnp.bfloat16), w1,
                        preferred_element_type=jnp.float32) + b1
            h = jnp.maximum(h, 0.0)
            y = jnp.dot(h.astype(jnp.bfloat16), w2,
                        preferred_element_type=jnp.float32) + b2
            # Normalize(power=2): y / (||y|| + 1e-7)  ->  reciprocal multiply.
            inv = pl.reciprocal(jnp.sqrt(jnp.sum(y * y, axis=1, keepdims=True)) + 1e-7,
                                approx=False)
            # 128-aligned, lane-dense store slot for this row type.
            o_ref[:, r * O:(r + 1) * O] = y * inv

    return kernel


def _make_mlp1_fused_kernel(k_num):
    """h == patch_size//16 path: sim -> topk -> pooled mean -> Linear/BN/ReLU/Linear."""
    inv_cnt = 1.0 / float(1 + k_num)

    def kernel(xl_ref, xc_ref, w1_ref, b1_ref, g_ref, be_ref, w2_ref, b2_ref,
               o_ref, idx_ref):
        xl = xl_ref[...].astype(jnp.float32)          # (M, L, C)
        xc = xc_ref[...].astype(jnp.float32)          # (M, C)
        onehots, top_idx = _topk_select(xl, xc, k_num)
        idx_ref[...] = top_idx

        # adaptive_avg_pool2d over (centre, top-k neighbours) == masked mean over L.
        mask = onehots[0]
        for oh in onehots[1:]:
            mask = mask + oh
        pooled = (xc + jnp.sum(mask[:, :, None] * xl, axis=1)) * inv_cnt       # (M, C)

        h = jnp.dot(pooled.astype(jnp.bfloat16), w1_ref[...],
                    preferred_element_type=jnp.float32) + b1_ref[...]
        # BatchNorm1d (training mode): batch statistics, biased variance, eps=1e-5.
        mu = jnp.mean(h, axis=0, keepdims=True)
        var = jnp.mean((h - mu) * (h - mu), axis=0, keepdims=True)
        h = (h - mu) * lax.rsqrt(var + 1e-5) * g_ref[...] + be_ref[...]
        h = jnp.maximum(h, 0.0)
        o_ref[...] = jnp.dot(h.astype(jnp.bfloat16), w2_ref[...],
                             preferred_element_type=jnp.float32) + b2_ref[...]

    return kernel


# ----------------------------------------------------------------------------
# pallas_call wrappers
# ----------------------------------------------------------------------------
def _m_tile(M, cap=128):
    """Largest multiple-of-8 tile <= cap that divides M (fall back to one tile)."""
    if M <= cap:
        return M
    for t in range(cap, 0, -8):
        if t % 8 == 0 and M % t == 0:
            return t
    return M


def _bytes(*arrs):
    return sum(int(a.size) * a.dtype.itemsize for a in arrs)


def mlp2_fused_pallas(x_loc, x_cen, p, k_num):
    M, L, C = x_loc.shape
    H = p["w1"].shape[1]
    O = p["w2"].shape[1]
    TM = _m_tile(M)
    n_rows = (1 + k_num) * M
    flops = 2 * n_rows * (C * H + H * O) + 4 * M * L * C
    bytes_accessed = _bytes(x_loc, x_cen, p["w1"], p["b1"], p["w2"], p["b2"]) \
        + M * (1 + k_num) * O * 4 + M * k_num * 4

    out, top_idx = pl.pallas_call(
        _make_mlp2_fused_kernel(TM, k_num, O),
        grid=(M // TM,),
        in_specs=[
            pl.BlockSpec((TM, L, C), lambda i: (i, 0, 0)),
            pl.BlockSpec((TM, C), lambda i: (i, 0)),
            # weights / biases: constant index_map -> stay VMEM-resident across tiles
            pl.BlockSpec(p["w1"].shape, lambda i: (0, 0)),
            pl.BlockSpec(p["b1"].shape, lambda i: (0, 0)),
            pl.BlockSpec(p["w2"].shape, lambda i: (0, 0)),
            pl.BlockSpec(p["b2"].shape, lambda i: (0, 0)),
        ],
        out_specs=(
            pl.BlockSpec((TM, (1 + k_num) * O), lambda i: (i, 0)),
            pl.BlockSpec((TM, k_num), lambda i: (i, 0)),
        ),
        out_shape=(
            jax.ShapeDtypeStruct((M, (1 + k_num) * O), jnp.float32),
            jax.ShapeDtypeStruct((M, k_num), jnp.int32),
        ),
        compiler_params=pltpu.CompilerParams(
            dimension_semantics=("parallel",),          # rows independent -> both TCs on v7x
            vmem_limit_bytes=32 * 1024 * 1024,
        ),
        cost_estimate=pl.CostEstimate(
            flops=int(flops),
            transcendentals=int(M * (L + 1) + n_rows),
            bytes_accessed=int(bytes_accessed),
        ),
    )(x_loc, x_cen, p["w1"], p["b1"], p["w2"], p["b2"])
    # free row-major reshape: columns [r*O:(r+1)*O] are row-type r
    return out.reshape(M, 1 + k_num, O), top_idx


def mlp1_fused_pallas(x_loc, x_cen, p, k_num):
    M, L, C = x_loc.shape
    H = p["w1"].shape[1]
    O = p["w2"].shape[1]
    flops = 2 * M * (C * H + H * O) + 4 * M * L * C
    bytes_accessed = _bytes(x_loc, x_cen, p["w1"], p["b1"], p["gamma"], p["beta"],
                            p["w2"], p["b2"]) + M * O * 4 + M * k_num * 4

    out, top_idx = pl.pallas_call(
        _make_mlp1_fused_kernel(k_num),
        grid=(1,),
        in_specs=[
            pl.BlockSpec((M, L, C), lambda i: (0, 0, 0)),
            pl.BlockSpec((M, C), lambda i: (0, 0)),
            pl.BlockSpec(p["w1"].shape, lambda i: (0, 0)),
            pl.BlockSpec(p["b1"].shape, lambda i: (0, 0)),
            pl.BlockSpec(p["gamma"].shape, lambda i: (0, 0)),
            pl.BlockSpec(p["beta"].shape, lambda i: (0, 0)),
            pl.BlockSpec(p["w2"].shape, lambda i: (0, 0)),
            pl.BlockSpec(p["b2"].shape, lambda i: (0, 0)),
        ],
        out_specs=(
            pl.BlockSpec((M, O), lambda i: (0, 0)),
            pl.BlockSpec((M, k_num), lambda i: (0, 0)),
        ),
        out_shape=(
            jax.ShapeDtypeStruct((M, O), jnp.float32),
            jax.ShapeDtypeStruct((M, k_num), jnp.int32),
        ),
        compiler_params=pltpu.CompilerParams(
            # BatchNorm batch statistics couple all M rows -> single tile.
            dimension_semantics=("arbitrary",),
            vmem_limit_bytes=32 * 1024 * 1024,
        ),
        cost_estimate=pl.CostEstimate(
            flops=int(flops),
            transcendentals=int(M * (L + 1) + H),
            bytes_accessed=int(bytes_accessed),
        ),
    )(x_loc, x_cen, p["w1"], p["b1"], p["gamma"], p["beta"], p["w2"], p["b2"])
    return out, top_idx


# ----------------------------------------------------------------------------
# Device-side index bookkeeping (get_local_index, k_size < 13 branch)
# ----------------------------------------------------------------------------
def _get_local_index(n_pos, patch_id, k_size):
    """k x k wrap-around window around each centre, centre removed, ascending order."""
    # TODO(synk): k_size > 13 ring-window branch of get_local_index not needed here.
    g = int(round(math.sqrt(n_pos)))
    r = int(k_size // 2)
    offs = [(dx, dy) for dx in range(-r, r + 1) for dy in range(-r, r + 1)
            if not (dx == 0 and dy == 0)]
    dx = jnp.asarray([o[0] for o in offs], dtype=jnp.int32)
    dy = jnp.asarray([o[1] for o in offs], dtype=jnp.int32)
    ix = (patch_id // g).astype(jnp.int32)
    iy = (patch_id % g).astype(jnp.int32)
    nx = jnp.mod(ix[:, None] + dx[None, :], g)
    ny = jnp.mod(iy[:, None] + dy[None, :], g)
    # nonzero() in the reference returns ascending flattened indices -> sort.
    return jnp.sort(nx * g + ny, axis=-1).astype(jnp.int32)


# ----------------------------------------------------------------------------
# PatchSampleF.forward
# ----------------------------------------------------------------------------
@partial(jax.jit, static_argnames=("patch_size", "n_patches", "k_size"))
def _sample_one_level(feat, params, key, *, patch_size, n_patches, k_size):
    b, c, h, w = feat.shape
    dim = c
    k_num = (k_size * k_size - 1) // 2
    # feat.permute(0, 2, 3, 1).flatten(1, 2)
    feat_reshape = jnp.transpose(feat, (0, 2, 3, 1)).reshape(b, h * w, c)

    # random patch selection + local neighbourhood, all on device (no host sync)
    patch_id = jax.random.permutation(key, h * w)[:n_patches].astype(jnp.int32)
    local_id = _get_local_index(h * w, patch_id, k_size)                 # (N, L)
    L = local_id.shape[1]

    # neighbourhood / centre row gather (XLA gather; rows then stream through Pallas)
    x_loc = jnp.take(feat_reshape, local_id.reshape(-1), axis=1).reshape(b, n_patches, L, dim)
    x_cen = jnp.take(feat_reshape, patch_id, axis=1)                     # (b, N, dim)
    M = b * n_patches
    x_loc = x_loc.reshape(M, L, dim)
    x_cen = x_cen.reshape(M, dim)

    if h == patch_size // 16:
        x_sample, top_idx = mlp1_fused_pallas(x_loc, x_cen, params["mlp1"], k_num)
    elif h == patch_size:
        x_sample, top_idx = mlp2_fused_pallas(x_loc, x_cen, params["mlp2"], k_num)
    else:
        # TODO(synk): reference code leaves x_sample undefined for other resolutions;
        # fall back to the raw (centre, top-k neighbours) stack computed in plain JAX.
        xn_l = x_loc * lax.rsqrt(jnp.maximum(jnp.sum(x_loc * x_loc, -1, keepdims=True), 1e-24))
        xn_c = x_cen * lax.rsqrt(jnp.maximum(jnp.sum(x_cen * x_cen, -1, keepdims=True), 1e-24))
        sim = jnp.einsum("mlc,mc->ml", xn_l, xn_c)
        _, top_idx = lax.top_k(sim, k_num)
        sel = jnp.take_along_axis(x_loc, top_idx[..., None], axis=1)
        x_sample = jnp.concatenate([x_cen[:, None, :], sel], axis=1).reshape(-1, dim)

    return x_sample, patch_id, local_id, top_idx.reshape(M, k_num, 1)


def patch_sample_forward(patch_size, feats, num_patches, params, k_sizes, rng):
    return_feats, return_ids, return_local_ids, return_top_idxs = [], [], [], []
    for feat_id, feat in enumerate(feats):
        b, c, h, w = feat.shape
        n_patches = int(min(num_patches[feat_id], h * w))
        rng, sub = jax.random.split(rng)
        x_sample, patch_id, local_id, top_idx = _sample_one_level(
            feat, params, sub,
            patch_size=int(patch_size), n_patches=n_patches, k_size=int(k_sizes[feat_id]))
        return_feats.append(x_sample)
        return_ids.append(patch_id)
        return_local_ids.append(local_id)
        return_top_idxs.append(top_idx)
    return return_feats, return_ids, return_local_ids, return_top_idxs


# ----------------------------------------------------------------------------
# Deterministic parameter init (shapes from PatchSampleF.__init__, nc=256)
# Matmul weights stored bf16 (MXU inputs, halved DMA); biases / BN params stay f32.
# ----------------------------------------------------------------------------
def init_params(key):
    ks = jax.random.split(key, 4)
    s = 0.02

    def w(k, shape):
        return (jax.random.normal(k, shape, jnp.float32) * s).astype(jnp.bfloat16)

    return {
        # mlp1: Linear(512,1024), BatchNorm1d(1024), ReLU, Linear(1024,256)
        "mlp1": {
            "w1": w(ks[0], (512, 1024)),
            "b1": jnp.zeros((1, 1024), jnp.float32),
            "gamma": jnp.ones((1, 1024), jnp.float32),
            "beta": jnp.zeros((1, 1024), jnp.float32),
            "w2": w(ks[1], (1024, 256)),
            "b2": jnp.zeros((1, 256), jnp.float32),
        },
        # mlp2: Linear(64, nc=256), ReLU, Linear(256, 256)
        "mlp2": {
            "w1": w(ks[2], (64, 256)),
            "b1": jnp.zeros((1, 256), jnp.float32),
            "w2": w(ks[3], (256, 256)),
            "b2": jnp.zeros((1, 256), jnp.float32),
        },
    }


if __name__ == "__main__":
    key = jax.random.PRNGKey(0)
    k_f1, k_f2, k_p, k_ids = jax.random.split(key, 4)

    patch_size = 64
    # NCHW inputs, as in PyTorch
    feat1 = jax.random.normal(k_f1, (2, 64, 64, 64), dtype=jnp.float32)   # h == patch_size       -> mlp2 path
    feat2 = jax.random.normal(k_f2, (2, 512, 4, 4), dtype=jnp.float32)    # h == patch_size // 16 -> mlp1 path
    params = init_params(k_p)

    feats_out, ids, local_ids, top_idxs = patch_sample_forward(
        patch_size,
        [feat1, feat2],
        num_patches=[8, 8],
        params=params,
        k_sizes=[3, 3],        # opt.k_size = "3,3"
        rng=k_ids,
    )

    for t in feats_out + ids + local_ids + top_idxs:
        jax.block_until_ready(t)

    assert feats_out[0].shape == (2 * 8, 5, 256)    # (b*N, 1+k_num, nc) mlp2 + l2norm path
    assert feats_out[1].shape == (2 * 8, 256)       # mlp1 projection path
    assert top_idxs[0].shape == (2 * 8, 4, 1)
    assert top_idxs[1].shape == (2 * 8, 4, 1)
    print("KERNEL_OK")
</pallas_src>

<mosaic_0001>
module attributes {stable_mosaic.version = 11 : i64} {
  func.func @kernel(%arg0: i32, %arg1: memref<16x8x64xf32, #tpu.memory_space<vmem>>, %arg2: memref<16x64xf32, #tpu.memory_space<vmem>>, %arg3: memref<64x256xbf16, #tpu.memory_space<vmem>>, %arg4: memref<1x256xf32, #tpu.memory_space<vmem>>, %arg5: memref<256x256xbf16, #tpu.memory_space<vmem>>, %arg6: memref<1x256xf32, #tpu.memory_space<vmem>>, %arg7: memref<16x1280xf32, #tpu.memory_space<vmem>>, %arg8: memref<16x4xi32, #tpu.memory_space<vmem>>) attributes {dimension_semantics = [#tpu.dimension_semantics<parallel>], iteration_bounds = array<i64: 1>, scalar_prefetch = 0 : i64, scratch_operands = 0 : i64, tpu.core_type = #tpu.core_type<tc>, window_params = [{transform_indices = @transform_0, window_bounds = array<i64: 16, 8, 64>}, {transform_indices = @transform_1, window_bounds = array<i64: 16, 64>}, {pipeline_mode = #tpu.pipeline_mode<synchronous>, transform_indices = @transform_2, window_bounds = array<i64: 64, 256>}, {pipeline_mode = #tpu.pipeline_mode<synchronous>, transform_indices = @transform_3, window_bounds = array<i64: 1, 256>}, {pipeline_mode = #tpu.pipeline_mode<synchronous>, transform_indices = @transform_4, window_bounds = array<i64: 256, 256>}, {pipeline_mode = #tpu.pipeline_mode<synchronous>, transform_indices = @transform_5, window_bounds = array<i64: 1, 256>}, {transform_indices = @transform_6, window_bounds = array<i64: 16, 1280>}, {transform_indices = @transform_7, window_bounds = array<i64: 16, 4>}]} {
    %c0 = arith.constant 0 : index
    %c0_0 = arith.constant 0 : index
    %c0_1 = arith.constant 0 : index
    %0 = vector.load %arg1[%c0, %c0_0, %c0_1] : memref<16x8x64xf32, #tpu.memory_space<vmem>>, vector<16x8x64xf32>
    %c0_2 = arith.constant 0 : index
    %c0_3 = arith.constant 0 : index
    %1 = vector.load %arg2[%c0_2, %c0_3] : memref<16x64xf32, #tpu.memory_space<vmem>>, vector<16x64xf32>
    %2 = vector.shape_cast %1 : vector<16x64xf32> to vector<16x1x64xf32>
    %3 = vector.broadcast %2 : vector<16x1x64xf32> to vector<16x8x64xf32>
    %4 = arith.mulf %0, %3 : vector<16x8x64xf32>
    %cst = arith.constant dense<0.000000e+00> : vector<16x8xf32>
    %5 = vector.multi_reduction <add>, %4, %cst [2] : vector<16x8x64xf32> to vector<16x8xf32>
    %6 = arith.mulf %0, %0 : vector<16x8x64xf32>
    %cst_4 = arith.constant dense<0.000000e+00> : vector<16x8xf32>
    %7 = vector.multi_reduction <add>, %6, %cst_4 [2] : vector<16x8x64xf32> to vector<16x8xf32>
    %cst_5 = arith.constant 1.000000e-24 : f32
    %8 = vector.broadcast %cst_5 : f32 to vector<16x8xf32>
    %9 = arith.maximumf %7, %8 : vector<16x8xf32>
    %10 = math.rsqrt %9 : vector<16x8xf32>
    %11 = arith.mulf %1, %1 : vector<16x64xf32>
    %cst_6 = arith.constant dense<0.000000e+00> : vector<16xf32>
    %12 = vector.multi_reduction <add>, %11, %cst_6 [1] : vector<16x64xf32> to vector<16xf32>
    %13 = vector.shape_cast %12 : vector<16xf32> to vector<16x1xf32>
    %cst_7 = arith.constant 1.000000e-24 : f32
    %14 = vector.broadcast %cst_7 : f32 to vector<16x1xf32>
    %15 = arith.maximumf %13, %14 : vector<16x1xf32>
    %16 = math.rsqrt %15 : vector<16x1xf32>
    %17 = arith.mulf %5, %10 : vector<16x8xf32>
    %18 = vector.broadcast %16 : vector<16x1xf32> to vector<16x8xf32>
    %19 = arith.mulf %17, %18 : vector<16x8xf32>
    %20 = tpu.iota {dimensions = array<i32: 1>} : vector<16x8xi32>
    %21 = tpu.iota {dimensions = array<i32: 1>} : vector<16x4xi32>
    %c0_i32 = arith.constant 0 : i32
    %22 = vector.broadcast %c0_i32 : i32 to vector<16x4xi32>
    %cst_8 = arith.constant dense<0xFF800000> : vector<16xf32>
    %23 = vector.multi_reduction <maximumf>, %19, %cst_8 [1] : vector<16x8xf32> to vector<16xf32>
    %24 = vector.shape_cast %23 : vector<16xf32> to vector<16x1xf32>
    %25 = vector.broadcast %24 : vector<16x1xf32> to vector<16x8xf32>
    %26 = arith.cmpf oge, %19, %25 : vector<16x8xf32>
    %c8_i32 = arith.constant 8 : i32
    %27 = vector.broadcast %c8_i32 : i32 to vector<16x8xi32>
    %28 = arith.select %26, %20, %27 : vector<16x8xi1>, vector<16x8xi32>
    %cst_9 = arith.constant dense<2147483647> : vector<16xi32>
    %29 = vector.multi_reduction <minsi>, %28, %cst_9 [1] : vector<16x8xi32> to vector<16xi32>
    %30 = vector.shape_cast %29 : vector<16xi32> to vector<16x1xi32>
    %31 = vector.broadcast %30 : vector<16x1xi32> to vector<16x8xi32>
    %32 = arith.cmpi eq, %20, %31 : vector<16x8xi32>
    %33 = arith.extui %32 : vector<16x8xi1> to vector<16x8xi32>
    %34 = arith.sitofp %33 : vector<16x8xi32> to vector<16x8xf32>
    %c0_i32_10 = arith.constant 0 : i32
    %35 = vector.broadcast %c0_i32_10 : i32 to vector<16x4xi32>
    %36 = arith.cmpi eq, %21, %35 : vector<16x4xi32>
    %37 = vector.shape_cast %30 : vector<16x1xi32> to vector<16x1xi32>
    %38 = vector.broadcast %37 : vector<16x1xi32> to vector<16x4xi32>
    %39 = arith.select %36, %38, %22 : vector<16x4xi1>, vector<16x4xi32>
    %cst_11 = arith.constant -1.000000e+30 : f32
    %40 = vector.broadcast %cst_11 : f32 to vector<16x8xf32>
    %41 = arith.select %32, %40, %19 : vector<16x8xi1>, vector<16x8xf32>
    %cst_12 = arith.constant dense<0xFF800000> : vector<16xf32>
    %42 = vector.multi_reduction <maximumf>, %41, %cst_12 [1] : vector<16x8xf32> to vector<16xf32>
    %43 = vector.shape_cast %42 : vector<16xf32> to vector<16x1xf32>
    %44 = vector.broadcast %43 : vector<16x1xf32> to vector<16x8xf32>
    %45 = arith.cmpf oge, %41, %44 : vector<16x8xf32>
    %c8_i32_13 = arith.constant 8 : i32
    %46 = vector.broadcast %c8_i32_13 : i32 to vector<16x8xi32>
    %47 = arith.select %45, %20, %46 : vector<16x8xi1>, vector<16x8xi32>
    %cst_14 = arith.constant dense<2147483647> : vector<16xi32>
    %48 = vector.multi_reduction <minsi>, %47, %cst_14 [1] : vector<16x8xi32> to vector<16xi32>
    %49 = vector.shape_cast %48 : vector<16xi32> to vector<16x1xi32>
    %50 = vector.broadcast %49 : vector<16x1xi32> to vector<16x8xi32>
    %51 = arith.cmpi eq, %20, %50 : vector<16x8xi32>
    %52 = arith.extui %51 : vector<16x8xi1> to vector<16x8xi32>
    %53 = arith.sitofp %52 : vector<16x8xi32> to vector<16x8xf32>
    %c1_i32 = arith.constant 1 : i32
    %54 = vector.broadcast %c1_i32 : i32 to vector<16x4xi32>
    %55 = arith.cmpi eq, %21, %54 : vector<16x4xi32>
    %56 = vector.shape_cast %49 : vector<16x1xi32> to vector<16x1xi32>
    %57 = vector.broadcast %56 : vector<16x1xi32> to vector<16x4xi32>
    %58 = arith.select %55, %57, %39 : vector<16x4xi1>, vector<16x4xi32>
    %cst_15 = arith.constant -1.000000e+30 : f32
    %59 = vector.broadcast %cst_15 : f32 to vector<16x8xf32>
    %60 = arith.select %51, %59, %41 : vector<16x8xi1>, vector<16x8xf32>
    %cst_16 = arith.constant dense<0xFF800000> : vector<16xf32>
    %61 = vector.multi_reduction <maximumf>, %60, %cst_16 [1] : vector<16x8xf32> to vector<16xf32>
    %62 = vector.shape_cast %61 : vector<16xf32> to vector<16x1xf32>
    %63 = vector.broadcast %62 : vector<16x1xf32> to vector<16x8xf32>
    %64 = arith.cmpf oge, %60, %63 : vector<16x8xf32>
    %c8_i32_17 = arith.constant 8 : i32
    %65 = vector.broadcast %c8_i32_17 : i32 to vector<16x8xi32>
    %66 = arith.select %64, %20, %65 : vector<16x8xi1>, vector<16x8xi32>
    %cst_18 = arith.constant dense<2147483647> : vector<16xi32>
    %67 = vector.multi_reduction <minsi>, %66, %cst_18 [1] : vector<16x8xi32> to vector<16xi32>
    %68 = vector.shape_cast %67 : vector<16xi32> to vector<16x1xi32>
    %69 = vector.broadcast %68 : vector<16x1xi32> to vector<16x8xi32>
    %70 = arith.cmpi eq, %20, %69 : vector<16x8xi32>
    %71 = arith.extui %70 : vector<16x8xi1> to vector<16x8xi32>
    %72 = arith.sitofp %71 : vector<16x8xi32> to vector<16x8xf32>
    %c2_i32 = arith.constant 2 : i32
    %73 = vector.broadcast %c2_i32 : i32 to vector<16x4xi32>
    %74 = arith.cmpi eq, %21, %73 : vector<16x4xi32>
    %75 = vector.shape_cast %68 : vector<16x1xi32> to vector<16x1xi32>
    %76 = vector.broadcast %75 : vector<16x1xi32> to vector<16x4xi32>
    %77 = arith.select %74, %76, %58 : vector<16x4xi1>, vector<16x4xi32>
    %cst_19 = arith.constant -1.000000e+30 : f32
    %78 = vector.broadcast %cst_19 : f32 to vector<16x8xf32>
    %79 = arith.select %70, %78, %60 : vector<16x8xi1>, vector<16x8xf32>
    %cst_20 = arith.constant dense<0xFF800000> : vector<16xf32>
    %80 = vector.multi_reduction <maximumf>, %79, %cst_20 [1] : vector<16x8xf32> to vector<16xf32>
    %81 = vector.shape_cast %80 : vector<16xf32> to vector<16x1xf32>
    %82 = vector.broadcast %81 : vector<16x1xf32> to vector<16x8xf32>
    %83 = arith.cmpf oge, %79, %82 : vector<16x8xf32>
    %c8_i32_21 = arith.constant 8 : i32
    %84 = vector.broadcast %c8_i32_21 : i32 to vector<16x8xi32>
    %85 = arith.select %83, %20, %84 : vector<16x8xi1>, vector<16x8xi32>
    %cst_22 = arith.constant dense<2147483647> : vector<16xi32>
    %86 = vector.multi_reduction <minsi>, %85, %cst_22 [1] : vector<16x8xi32> to vector<16xi32>
    %87 = vector.shape_cast %86 : vector<16xi32> to vector<16x1xi32>
    %88 = vector.broadcast %87 : vector<16x1xi32> to vector<16x8xi32>
    %89 = arith.cmpi eq, %20, %88 : vector<16x8xi32>
    %90 = arith.extui %89 : vector<16x8xi1> to vector<16x8xi32>
    %91 = arith.sitofp %90 : vector<16x8xi32> to vector<16x8xf32>
    %c3_i32 = arith.constant 3 : i32
    %92 = vector.broadcast %c3_i32 : i32 to vector<16x4xi32>
    %93 = arith.cmpi eq, %21, %92 : vector<16x4xi32>
    %94 = vector.shape_cast %87 : vector<16x1xi32> to vector<16x1xi32>
    %95 = vector.broadcast %94 : vector<16x1xi32> to vector<16x4xi32>
    %96 = arith.select %93, %95, %77 : vector<16x4xi1>, vector<16x4xi32>
    %c0_23 = arith.constant 0 : index
    %c0_24 = arith.constant 0 : index
    %97 = vector.load %arg8[%c0_23, %c0_24] : memref<16x4xi32, #tpu.memory_space<vmem>>, vector<16x4xi32>
    tpu.vector_store %arg8[%c0_23, %c0_24], %96 {strides = array<i32>} : memref<16x4xi32, #tpu.memory_space<vmem>>, vector<16x4xi32>,
    %c0_25 = arith.constant 0 : index
    %c0_26 = arith.constant 0 : index
    %98 = vector.load %arg3[%c0_25, %c0_26] : memref<64x256xbf16, #tpu.memory_space<vmem>>, vector<64x256xbf16>
    %c0_27 = arith.constant 0 : index
    %c0_28 = arith.constant 0 : index
    %99 = vector.load %arg5[%c0_27, %c0_28] : memref<256x256xbf16, #tpu.memory_space<vmem>>, vector<256x256xbf16>
    %c0_29 = arith.constant 0 : index
    %c0_30 = arith.constant 0 : index
    %100 = vector.load %arg4[%c0_29, %c0_30] : memref<1x256xf32, #tpu.memory_space<vmem>>, vector<1x256xf32>
    %c0_31 = arith.constant 0 : index
    %c0_32 = arith.constant 0 : index
    %101 = vector.load %arg6[%c0_31, %c0_32] : memref<1x256xf32, #tpu.memory_space<vmem>>, vector<1x256xf32>
    %102 = vector.shape_cast %34 : vector<16x8xf32> to vector<16x8x1xf32>
    %103 = vector.broadcast %102 : vector<16x8x1xf32> to vector<16x8x64xf32>
    %104 = arith.mulf %103, %0 : vector<16x8x64xf32>
    %cst_33 = arith.constant dense<0.000000e+00> : vector<16x64xf32>
    %105 = vector.multi_reduction <add>, %104, %cst_33 [1] : vector<16x8x64xf32> to vector<16x64xf32>
    %106 = vector.shape_cast %53 : vector<16x8xf32> to vector<16x8x1xf32>
    %107 = vector.broadcast %106 : vector<16x8x1xf32> to vector<16x8x64xf32>
    %108 = arith.mulf %107, %0 : vector<16x8x64xf32>
    %cst_34 = arith.constant dense<0.000000e+00> : vector<16x64xf32>
    %109 = vector.multi_reduction <add>, %108, %cst_34 [1] : vector<16x8x64xf32> to vector<16x64xf32>
    %110 = vector.shape_cast %72 : vector<16x8xf32> to vector<16x8x1xf32>
    %111 = vector.broadcast %110 : vector<16x8x1xf32> to vector<16x8x64xf32>
    %112 = arith.mulf %111, %0 : vector<16x8x64xf32>
    %cst_35 = arith.constant dense<0.000000e+00> : vector<16x64xf32>
    %113 = vector.multi_reduction <add>, %112, %cst_35 [1] : vector<16x8x64xf32> to vector<16x64xf32>
    %114 = vector.shape_cast %91 : vector<16x8xf32> to vector<16x8x1xf32>
    %115 = vector.broadcast %114 : vector<16x8x1xf32> to vector<16x8x64xf32>
    %116 = arith.mulf %115, %0 : vector<16x8x64xf32>
    %cst_36 = arith.constant dense<0.000000e+00> : vector<16x64xf32>
    %117 = vector.multi_reduction <add>, %116, %cst_36 [1] : vector<16x8x64xf32> to vector<16x64xf32>
    %118 = arith.truncf %1 : vector<16x64xf32> to vector<16x64xbf16>
    %cst_37 = arith.constant dense<0.000000e+00> : vector<16x256xf32>
    %119 = tpu.matmul %118, %98, %cst_37 {dimension_numbers = #tpu.dot_dimension_numbers<[1], [0], [0], [1], [0, 0, 1, 1], [], []>} : vector<16x64xbf16>, vector<64x256xbf16>, vector<16x256xf32> -> vector<16x256xf32>
    %120 = vector.broadcast %100 : vector<1x256xf32> to vector<16x256xf32>
    %121 = arith.addf %119, %120 : vector<16x256xf32>
    %cst_38 = arith.constant 0.000000e+00 : f32
    %122 = vector.broadcast %cst_38 : f32 to vector<16x256xf32>
    %123 = arith.maximumf %121, %122 : vector<16x256xf32>
    %124 = arith.truncf %123 : vector<16x256xf32> to vector<16x256xbf16>
    %cst_39 = arith.constant dense<0.000000e+00> : vector<16x256xf32>
    %125 = tpu.matmul %124, %99, %cst_39 {dimension_numbers = #tpu.dot_dimension_numbers<[1], [0], [0], [1], [0, 0, 1, 1], [], []>} : vector<16x256xbf16>, vector<256x256xbf16>, vector<16x256xf32> -> vector<16x256xf32>
    %126 = vector.broadcast %101 : vector<1x256xf32> to vector<16x256xf32>
    %127 = arith.addf %125, %126 : vector<16x256xf32>
    %128 = arith.mulf %127, %127 : vector<16x256xf32>
    %cst_40 = arith.constant dense<0.000000e+00> : vector<16xf32>
    %129 = vector.multi_reduction <add>, %128, %cst_40 [1] : vector<16x256xf32> to vector<16xf32>
    %130 = vector.shape_cast %129 : vector<16xf32> to vector<16x1xf32>
    %131 = math.sqrt %130 : vector<16x1xf32>
    %cst_41 = arith.constant 1.000000e-07 : f32
    %132 = vector.broadcast %cst_41 : f32 to vector<16x1xf32>
    %133 = arith.addf %131, %132 : vector<16x1xf32>
    %134 = tpu.reciprocal %133 : vector<16x1xf32> -> vector<16x1xf32>
    %135 = vector.broadcast %134 : vector<16x1xf32> to vector<16x256xf32>
    %136 = arith.mulf %127, %135 : vector<16x256xf32>
    %c0_42 = arith.constant 0 : index
    %c0_43 = arith.constant 0 : index
    %137 = vector.load %arg7[%c0_42, %c0_43] : memref<16x1280xf32, #tpu.memory_space<vmem>>, vector<16x256xf32>
    tpu.vector_store %arg7[%c0_42, %c0_43], %136 {strides = array<i32>} : memref<16x1280xf32, #tpu.memory_space<vmem>>, vector<16x256xf32>,
    %138 = arith.truncf %105 : vector<16x64xf32> to vector<16x64xbf16>
    %cst_44 = arith.constant dense<0.000000e+00> : vector<16x256xf32>
    %139 = tpu.matmul %138, %98, %cst_44 {dimension_numbers = #tpu.dot_dimension_numbers<[1], [0], [0], [1], [0, 0, 1, 1], [], []>} : vector<16x64xbf16>, vector<64x256xbf16>, vector<16x256xf32> -> vector<16x256xf32>
    %140 = vector.broadcast %100 : vector<1x256xf32> to vector<16x256xf32>
    %141 = arith.addf %139, %140 : vector<16x256xf32>
    %cst_45 = arith.constant 0.000000e+00 : f32
    %142 = vector.broadcast %cst_45 : f32 to vector<16x256xf32>
    %143 = arith.maximumf %141, %142 : vector<16x256xf32>
    %144 = arith.truncf %143 : vector<16x256xf32> to vector<16x256xbf16>
    %cst_46 = arith.constant dense<0.000000e+00> : vector<16x256xf32>
    %145 = tpu.matmul %144, %99, %cst_46 {dimension_numbers = #tpu.dot_dimension_numbers<[1], [0], [0], [1], [0, 0, 1, 1], [], []>} : vector<16x256xbf16>, vector<256x256xbf16>, vector<16x256xf32> -> vector<16x256xf32>
    %146 = vector.broadcast %101 : vector<1x256xf32> to vector<16x256xf32>
    %147 = arith.addf %145, %146 : vector<16x256xf32>
    %148 = arith.mulf %147, %147 : vector<16x256xf32>
    %cst_47 = arith.constant dense<0.000000e+00> : vector<16xf32>
    %149 = vector.multi_reduction <add>, %148, %cst_47 [1] : vector<16x256xf32> to vector<16xf32>
    %150 = vector.shape_cast %149 : vector<16xf32> to vector<16x1xf32>
    %151 = math.sqrt %150 : vector<16x1xf32>
    %cst_48 = arith.constant 1.000000e-07 : f32
    %152 = vector.broadcast %cst_48 : f32 to vector<16x1xf32>
    %153 = arith.addf %151, %152 : vector<16x1xf32>
    %154 = tpu.reciprocal %153 : vector<16x1xf32> -> vector<16x1xf32>
    %155 = vector.broadcast %154 : vector<16x1xf32> to vector<16x256xf32>
    %156 = arith.mulf %147, %155 : vector<16x256xf32>
    %c0_49 = arith.constant 0 : index
    %c256 = arith.constant 256 : index
    %157 = vector.load %arg7[%c0_49, %c256] : memref<16x1280xf32, #tpu.memory_space<vmem>>, vector<16x256xf32>
    tpu.vector_store %arg7[%c0_49, %c256], %156 {strides = array<i32>} : memref<16x1280xf32, #tpu.memory_space<vmem>>, vector<16x256xf32>,
    %158 = arith.truncf %109 : vector<16x64xf32> to vector<16x64xbf16>
    %cst_50 = arith.constant dense<0.000000e+00> : vector<16x256xf32>
    %159 = tpu.matmul %158, %98, %cst_50 {dimension_numbers = #tpu.dot_dimension_numbers<[1], [0], [0], [1], [0, 0, 1, 1], [], []>} : vector<16x64xbf16>, vector<64x256xbf16>, vector<16x256xf32> -> vector<16x256xf32>
    %160 = vector.broadcast %100 : vector<1x256xf32> to vector<16x256xf32>
    %161 = arith.addf %159, %160 : vector<16x256xf32>
    %cst_51 = arith.constant 0.000000e+00 : f32
    %162 = vector.broadcast %cst_51 : f32 to vector<16x256xf32>
    %163 = arith.maximumf %161, %162 : vector<16x256xf32>
    %164 = arith.truncf %163 : vector<16x256xf32> to vector<16x256xbf16>
    %cst_52 = arith.constant dense<0.000000e+00> : vector<16x256xf32>
    %165 = tpu.matmul %164, %99, %cst_52 {dimension_numbers = #tpu.dot_dimension_numbers<[1], [0], [0], [1], [0, 0, 1, 1], [], []>} : vector<16x256xbf16>, vector<256x256xbf16>, vector<16x256xf32> -> vector<16x256xf32>
    %166 = vector.broadcast %101 : vector<1x256xf32> to vector<16x256xf32>
    %167 = arith.addf %165, %166 : vector<16x256xf32>
    %168 = arith.mulf %167, %167 : vector<16x256xf32>
    %cst_53 = arith.constant dense<0.000000e+00> : vector<16xf32>
    %169 = vector.multi_reduction <add>, %168, %cst_53 [1] : vector<16x256xf32> to vector<16xf32>
    %170 = vector.shape_cast %169 : vector<16xf32> to vector<16x1xf32>
    %171 = math.sqrt %170 : vector<16x1xf32>
    %cst_54 = arith.constant 1.000000e-07 : f32
    %172 = vector.broadcast %cst_54 : f32 to vector<16x1xf32>
    %173 = arith.addf %171, %172 : vector<16x1xf32>
    %174 = tpu.reciprocal %173 : vector<16x1xf32> -> vector<16x1xf32>
    %175 = vector.broadcast %174 : vector<16x1xf32> to vector<16x256xf32>
    %176 = arith.mulf %167, %175 : vector<16x256xf32>
    %c0_55 = arith.constant 0 : index
    %c512 = arith.constant 512 : index
    %177 = vector.load %arg7[%c0_55, %c512] : memref<16x1280xf32, #tpu.memory_space<vmem>>, vector<16x256xf32>
    tpu.vector_store %arg7[%c0_55, %c512], %176 {strides = array<i32>} : memref<16x1280xf32, #tpu.memory_space<vmem>>, vector<16x256xf32>,
    %178 = arith.truncf %113 : vector<16x64xf32> to vector<16x64xbf16>
    %cst_56 = arith.constant dense<0.000000e+00> : vector<16x256xf32>
    %179 = tpu.matmul %178, %98, %cst_56 {dimension_numbers = #tpu.dot_dimension_numbers<[1], [0], [0], [1], [0, 0, 1, 1], [], []>} : vector<16x64xbf16>, vector<64x256xbf16>, vector<16x256xf32> -> vector<16x256xf32>
    %180 = vector.broadcast %100 : vector<1x256xf32> to vector<16x256xf32>
    %181 = arith.addf %179, %180 : vector<16x256xf32>
    %cst_57 = arith.constant 0.000000e+00 : f32
    %182 = vector.broadcast %cst_57 : f32 to vector<16x256xf32>
    %183 = arith.maximumf %181, %182 : vector<16x256xf32>
    %184 = arith.truncf %183 : vector<16x256xf32> to vector<16x256xbf16>
    %cst_58 = arith.constant dense<0.000000e+00> : vector<16x256xf32>
    %185 = tpu.matmul %184, %99, %cst_58 {dimension_numbers = #tpu.dot_dimension_numbers<[1], [0], [0], [1], [0, 0, 1, 1], [], []>} : vector<16x256xbf16>, vector<256x256xbf16>, vector<16x256xf32> -> vector<16x256xf32>
    %186 = vector.broadcast %101 : vector<1x256xf32> to vector<16x256xf32>
    %187 = arith.addf %185, %186 : vector<16x256xf32>
    %188 = arith.mulf %187, %187 : vector<16x256xf32>
    %cst_59 = arith.constant dense<0.000000e+00> : vector<16xf32>
    %189 = vector.multi_reduction <add>, %188, %cst_59 [1] : vector<16x256xf32> to vector<16xf32>
    %190 = vector.shape_cast %189 : vector<16xf32> to vector<16x1xf32>
    %191 = math.sqrt %190 : vector<16x1xf32>
    %cst_60 = arith.constant 1.000000e-07 : f32
    %192 = vector.broadcast %cst_60 : f32 to vector<16x1xf32>
    %193 = arith.addf %191, %192 : vector<16x1xf32>
    %194 = tpu.reciprocal %193 : vector<16x1xf32> -> vector<16x1xf32>
    %195 = vector.broadcast %194 : vector<16x1xf32> to vector<16x256xf32>
    %196 = arith.mulf %187, %195 : vector<16x256xf32>
    %c0_61 = arith.constant 0 : index
    %c768 = arith.constant 768 : index
    %197 = vector.load %arg7[%c0_61, %c768] : memref<16x1280xf32, #tpu.memory_space<vmem>>, vector<16x256xf32>
    tpu.vector_store %arg7[%c0_61, %c768], %196 {strides = array<i32>} : memref<16x1280xf32, #tpu.memory_space<vmem>>, vector<16x256xf32>,
    %198 = arith.truncf %117 : vector<16x64xf32> to vector<16x64xbf16>
    %cst_62 = arith.constant dense<0.000000e+00> : vector<16x256xf32>
    %199 = tpu.matmul %198, %98, %cst_62 {dimension_numbers = #tpu.dot_dimension_numbers<[1], [0], [0], [1], [0, 0, 1, 1], [], []>} : vector<16x64xbf16>, vector<64x256xbf16>, vector<16x256xf32> -> vector<16x256xf32>
    %200 = vector.broadcast %100 : vector<1x256xf32> to vector<16x256xf32>
    %201 = arith.addf %199, %200 : vector<16x256xf32>
    %cst_63 = arith.constant 0.000000e+00 : f32
    %202 = vector.broadcast %cst_63 : f32 to vector<16x256xf32>
    %203 = arith.maximumf %201, %202 : vector<16x256xf32>
    %204 = arith.truncf %203 : vector<16x256xf32> to vector<16x256xbf16>
    %cst_64 = arith.constant dense<0.000000e+00> : vector<16x256xf32>
    %205 = tpu.matmul %204, %99, %cst_64 {dimension_numbers = #tpu.dot_dimension_numbers<[1], [0], [0], [1], [0, 0, 1, 1], [], []>} : vector<16x256xbf16>, vector<256x256xbf16>, vector<16x256xf32> -> vector<16x256xf32>
    %206 = vector.broadcast %101 : vector<1x256xf32> to vector<16x256xf32>
    %207 = arith.addf %205, %206 : vector<16x256xf32>
    %208 = arith.mulf %207, %207 : vector<16x256xf32>
    %cst_65 = arith.constant dense<0.000000e+00> : vector<16xf32>
    %209 = vector.multi_reduction <add>, %208, %cst_65 [1] : vector<16x256xf32> to vector<16xf32>
    %210 = vector.shape_cast %209 : vector<16xf32> to vector<16x1xf32>
    %211 = math.sqrt %210 : vector<16x1xf32>
    %cst_66 = arith.constant 1.000000e-07 : f32
    %212 = vector.broadcast %cst_66 : f32 to vector<16x1xf32>
    %213 = arith.addf %211, %212 : vector<16x1xf32>
    %214 = tpu.reciprocal %213 : vector<16x1xf32> -> vector<16x1xf32>
    %215 = vector.broadcast %214 : vector<16x1xf32> to vector<16x256xf32>
    %216 = arith.mulf %207, %215 : vector<16x256xf32>
    %c0_67 = arith.constant 0 : index
    %c1024 = arith.constant 1024 : index
    %217 = vector.load %arg7[%c0_67, %c1024] : memref<16x1280xf32, #tpu.memory_space<vmem>>, vector<16x256xf32>
    tpu.vector_store %arg7[%c0_67, %c1024], %216 {strides = array<i32>} : memref<16x1280xf32, #tpu.memory_space<vmem>>, vector<16x256xf32>,
    return
  }
  func.func @transform_0(%arg0: i32) -> (i32, i32, i32) {
    %c0_i32 = arith.constant 0 : i32
    %c0_i32_0 = arith.constant 0 : i32
    %c0_i32_1 = arith.constant 0 : i32
    return %arg0, %c0_i32, %c0_i32_0 : i32, i32, i32
  }
  func.func @transform_1(%arg0: i32) -> (i32, i32) {
    %c0_i32 = arith.constant 0 : i32
    %c0_i32_0 = arith.constant 0 : i32
    return %arg0, %c0_i32 : i32, i32
  }
  func.func @transform_2(%arg0: i32) -> (i32, i32) {
    %c0_i32 = arith.constant 0 : i32
    %c0_i32_0 = arith.constant 0 : i32
    %c0_i32_1 = arith.constant 0 : i32
    return %c0_i32, %c0_i32_0 : i32, i32
  }
  func.func @transform_3(%arg0: i32) -> (i32, i32) {
    %c0_i32 = arith.constant 0 : i32
    %c0_i32_0 = arith.constant 0 : i32
    %c0_i32_1 = arith.constant 0 : i32
    return %c0_i32, %c0_i32_0 : i32, i32
  }
  func.func @transform_4(%arg0: i32) -> (i32, i32) {
    %c0_i32 = arith.constant 0 : i32
    %c0_i32_0 = arith.constant 0 : i32
    %c0_i32_1 = arith.constant 0 : i32
    return %c0_i32, %c0_i32_0 : i32, i32
  }
  func.func @transform_5(%arg0: i32) -> (i32, i32) {
    %c0_i32 = arith.constant 0 : i32
    %c0_i32_0 = arith.constant 0 : i32
    %c0_i32_1 = arith.constant 0 : i32
    return %c0_i32, %c0_i32_0 : i32, i32
  }
  func.func @transform_6(%arg0: i32) -> (i32, i32) {
    %c0_i32 = arith.constant 0 : i32
    %c0_i32_0 = arith.constant 0 : i32
    return %arg0, %c0_i32 : i32, i32
  }
  func.func @transform_7(%arg0: i32) -> (i32, i32) {
    %c0_i32 = arith.constant 0 : i32
    %c0_i32_0 = arith.constant 0 : i32
    return %arg0, %c0_i32 : i32, i32
  }
}

</mosaic_0001>

<llo_original>
// kernel: _sample_one_level.1
$region0: #{_sample_one_level.1}
  #allocation0 [shape = 'u32[]', space=smem, size = 0x4, offset = 0x4, fixed_abs, tag = 'smem constant byte address 0x4 - core index']
  #allocation1 [shape = 'u32[144,128]{1,0:T(1,128)}', space=vmem, size = 0x12000, scoped, tag = 'internal scratch']
  %s0 = inlined_call_operand.vmem [shape: f32[16,8,64], index: 0, kind: input, shape index: {}]
  %s1 = inlined_call_operand.vmem [shape: f32[16,64], index: 1, kind: input, shape index: {}]
  %s2 = inlined_call_operand.vmem [shape: bf16[64,256], index: 2, kind: input, shape index: {}]
  %s3 = inlined_call_operand.vmem [shape: f32[1,256], index: 3, kind: input, shape index: {}]
  %s4 = inlined_call_operand.vmem [shape: bf16[256,256], index: 4, kind: input, shape index: {}]
  %s5 = inlined_call_operand.vmem [shape: f32[1,256], index: 5, kind: input, shape index: {}]
  %s6 = inlined_call_operand.vmem [shape: f32[16,1280], index: 6, kind: output, shape index: {0}]
  %s7 = inlined_call_operand.vmem [shape: s32[16,4], index: 7, kind: output, shape index: {1}]
  %8 = xla_tuple %s6, %s7
  %s9 = sld [smem:[#allocation0]]
  $region42: #{_sample_one_level.1} parent=0
    _
  %s11 = ssub.s32 1, %s9
  %s12 = scalar_select 0, %s11, %s9
  // Predicated region
  $region2: #{_sample_one_level.1} parent=0 // pred_check
    _
  $region3: #{_sample_one_level.1} parent=0 // pred_check_branch
    %14 = sbr.rel (0) target = $region5
  $region4: #{_sample_one_level.1} parent=0 // pred_region
    _
  $region5: #{_sample_one_level.1} parent=0 // pred_fallthru
    _
  // Predicated region
  $region6: #{_sample_one_level.1} parent=0 // pred_check
    _
  $region7: #{_sample_one_level.1} parent=0 // pred_check_branch
    %16 = sbr.rel (0) target = $region9
  $region8: #{_sample_one_level.1} parent=0 // pred_region
    _
  $region9: #{_sample_one_level.1} parent=0 // pred_fallthru
    _
  // Predicated region
  $region10: #{_sample_one_level.1} parent=0 // pred_check
    _
  $region11: #{_sample_one_level.1} parent=0 // pred_check_branch
    %18 = sbr.rel (0) target = $region13
  $region12: #{_sample_one_level.1} parent=0 // pred_region
    _
  $region13: #{_sample_one_level.1} parent=0 // pred_fallthru
    _
  // Predicated region
  $region14: #{_sample_one_level.1} parent=0 // pred_check
    _
  $region15: #{_sample_one_level.1} parent=0 // pred_check_branch
    %20 = sbr.rel (0) target = $region17
  $region16: #{_sample_one_level.1} parent=0 // pred_region
    _
  $region17: #{_sample_one_level.1} parent=0 // pred_fallthru
    _
  // Predicated region
  $region18: #{_sample_one_level.1} parent=0 // pred_check
    _
  $region19: #{_sample_one_level.1} parent=0 // pred_check_branch
    %22 = sbr.rel (0) target = $region21
  $region20: #{_sample_one_level.1} parent=0 // pred_region
    _
  $region21: #{_sample_one_level.1} parent=0 // pred_fallthru
    _
  // Predicated region
  $region22: #{_sample_one_level.1} parent=0 // pred_check
    _
  $region23: #{_sample_one_level.1} parent=0 // pred_check_branch
    %24 = sbr.rel (0) target = $region25
  $region24: #{_sample_one_level.1} parent=0 // pred_region
    _
  $region25: #{_sample_one_level.1} parent=0 // pred_fallthru
    _
  %v26 = vld [vmem:[%s0] sm:$0xff]
  %v27 = vld [vmem:[%s0 + $0x8] sm:$0xff]
  %v28 = vld [vmem:[%s0 + $0x10] sm:$0xff]
  %v29 = vld [vmem:[%s0 + $0x18] sm:$0xff]
  %v30 = vld [vmem:[%s0 + $0x20] sm:$0xff]
  %v31 = vld [vmem:[%s0 + $0x28] sm:$0xff]
  %v32 = vld [vmem:[%s0 + $0x30] sm:$0xff]
  %v33 = vld [vmem:[%s0 + $0x38] sm:$0xff]
  %v34 = vld [vmem:[%s0 + $0x40] sm:$0xff]
  %v35 = vld [vmem:[%s0 + $0x48] sm:$0xff]
  %v36 = vld [vmem:[%s0 + $0x50] sm:$0xff]
  %v37 = vld [vmem:[%s0 + $0x58] sm:$0xff]
  %v38 = vld [vmem:[%s0 + $0x60] sm:$0xff]
  %v39 = vld [vmem:[%s0 + $0x68] sm:$0xff]
  %v40 = vld [vmem:[%s0 + $0x70] sm:$0xff]
  %v41 = vld [vmem:[%s0 + $0x78] sm:$0xff]
  %v42 = vld [vmem:[%s1] sm:$0xff]
  %v43 = vld [vmem:[%s1 + $0x8] sm:$0xff]
  %v46 = vcombine.high %v42, %v42
  %v48 = vunpack.c.l.s4 1966171168
  %v49 = vunpack.c.0.s8 %v48
  %v50 = vlaneseq
  %v51 = vshrl.u32 %v50, 7
  %v52 = vsub.s32 %v49, %v51
  %v53 = vrot.slane %v42, %v52
  %v55 = vunpack.c.l.s4 1966171168
  %v56 = vunpack.c.0.s8 %v55
  %v57 = vlaneseq
  %v58 = vshrl.u32 %v57, 7
  %v59 = vsub.s32 %v56, %v58
  %v60 = vrot.slane %v46, %v59
  %v61 = vcombine.high %v53, %v53
  %v62 = vcombine.high %v60, %v60
  %v64 = vunpack.c.l.s4 1966171168
  %v65 = vunpack.c.0.s8 %v64
  %v66 = vlaneseq
  %v67 = vshrl.u32 %v66, 7
  %v68 = vsub.s32 %v65, %v67
  %v69 = vrot.slane %v53, %v68
  %v71 = vunpack.c.l.s4 1966171168
  %v72 = vunpack.c.0.s8 %v71
  %v73 = vlaneseq
  %v74 = vshrl.u32 %v73, 7
  %v75 = vsub.s32 %v72, %v74
  %v76 = vrot.slane %v60, %v75
  %v78 = vunpack.c.l.s4 1966171168
  %v79 = vunpack.c.0.s8 %v78
  %v80 = vlaneseq
  %v81 = vshrl.u32 %v80, 7
  %v82 = vsub.s32 %v79, %v81
  %v83 = vrot.slane %v61, %v82
  %v85 = vunpack.c.l.s4 1966171168
  %v86 = vunpack.c.0.s8 %v85
  %v87 = vlaneseq
  %v88 = vshrl.u32 %v87, 7
  %v89 = vsub.s32 %v86, %v88
  %v90 = vrot.slane %v62, %v89
  %v91 = vcombine.high %v69, %v69
  %v92 = vcombine.high %v76, %v76
  %v93 = vcombine.high %v83, %v83
  %v94 = vcombine.high %v90, %v90
  %v95 = vcombine.high %v43, %v43
  %v97 = vunpack.c.l.s4 1966171168
  %v98 = vunpack.c.0.s8 %v97
  %v99 = vlaneseq
  %v100 = vshrl.u32 %v99, 7
  %v101 = vsub.s32 %v98, %v100
  %v102 = vrot.slane %v43, %v101
  %v104 = vunpack.c.l.s4 1966171168
  %v105 = vunpack.c.0.s8 %v104
  %v106 = vlaneseq
  %v107 = vshrl.u32 %v106, 7
  %v108 = vsub.s32 %v105, %v107
  %v109 = vrot.slane %v95, %v108
  %v110 = vcombine.high %v102, %v102
  %v111 = vcombine.high %v109, %v109
  %v113 = vunpack.c.l.s4 1966171168
  %v114 = vunpack.c.0.s8 %v113
  %v115 = vlaneseq
  %v116 = vshrl.u32 %v115, 7
  %v117 = vsub.s32 %v114, %v116
  %v118 = vrot.slane %v102, %v117
  %v120 = vunpack.c.l.s4 1966171168
  %v121 = vunpack.c.0.s8 %v120
  %v122 = vlaneseq
  %v123 = vshrl.u32 %v122, 7
  %v124 = vsub.s32 %v121, %v123
  %v125 = vrot.slane %v109, %v124
  %v127 = vunpack.c.l.s4 1966171168
  %v128 = vunpack.c.0.s8 %v127
  %v129 = vlaneseq
  %v130 = vshrl.u32 %v129, 7
  %v131 = vsub.s32 %v128, %v130
  %v132 = vrot.slane %v110, %v131
  %v134 = vunpack.c.l.s4 1966171168
  %v135 = vunpack.c.0.s8 %v134
  %v136 = vlaneseq
  %v137 = vshrl.u32 %v136, 7
  %v138 = vsub.s32 %v135, %v137
  %v139 = vrot.slane %v111, %v138
  %v140 = vcombine.high %v118, %v118
  %v141 = vcombine.high %v125, %v125
  %v142 = vcombine.high %v132, %v132
  %v143 = vcombine.high %v139, %v139
  %v144 = vlaneseq
  %v145 = vshrl.u32 %v144, 7
  %v146 = vsub.s32 0, %v145
  %v147 = vrot.slane %v69, %v146
  %v148 = vlaneseq
  %v149 = vshrl.u32 %v148, 7
  %v150 = vsub.s32 0, %v149
  %v151 = vrot.slane %v83, %v150
  %v152 = vlaneseq
  %v153 = vshrl.u32 %v152, 7
  %v154 = vsub.s32 0, %v153
  %v155 = vrot.slane %v91, %v154
  %v156 = vlaneseq
  %v157 = vshrl.u32 %v156, 7
  %v158 = vsub.s32 0, %v157
  %v159 = vrot.slane %v93, %v158
  %v160 = vlaneseq
  %v161 = vshrl.u32 %v160, 7
  %v162 = vsub.s32 0, %v161
  %v163 = vrot.slane %v76, %v162
  %v164 = vlaneseq
  %v165 = vshrl.u32 %v164, 7
  %v166 = vsub.s32 0, %v165
  %v167 = vrot.slane %v90, %v166
  %v168 = vlaneseq
  %v169 = vshrl.u32 %v168, 7
  %v170 = vsub.s32 0, %v169
  %v171 = vrot.slane %v92, %v170
  %v172 = vlaneseq
  %v173 = vshrl.u32 %v172, 7
  %v174 = vsub.s32 0, %v173
  %v175 = vrot.slane %v94, %v174
  %v176 = vlaneseq
  %v177 = vshrl.u32 %v176, 7
  %v178 = vsub.s32 0, %v177
  %v179 = vrot.slane %v118, %v178
  %v180 = vlaneseq
  %v181 = vshrl.u32 %v180, 7
  %v182 = vsub.s32 0, %v181
  %v183 = vrot.slane %v132, %v182
  %v184 = vlaneseq
  %v185 = vshrl.u32 %v184, 7
  %v186 = vsub.s32 0, %v185
  %v187 = vrot.slane %v140, %v186
  %v188 = vlaneseq
  %v189 = vshrl.u32 %v188, 7
  %v190 = vsub.s32 0, %v189
  %v191 = vrot.slane %v142, %v190
  %v192 = vlaneseq
  %v193 = vshrl.u32 %v192, 7
  %v194 = vsub.s32 0, %v193
  %v195 = vrot.slane %v125, %v194
  %v196 = vlaneseq
  %v197 = vshrl.u32 %v196, 7
  %v198 = vsub.s32 0, %v197
  %v199 = vrot.slane %v139, %v198
  %v200 = vlaneseq
  %v201 = vshrl.u32 %v200, 7
  %v202 = vsub.s32 0, %v201
  %v203 = vrot.slane %v141, %v202
  %v204 = vlaneseq
  %v205 = vshrl.u32 %v204, 7
  %v206 = vsub.s32 0, %v205
  %v207 = vrot.slane %v143, %v206
  %v224 = vmul.f32 %v26, %v147
  %v225 = vmul.f32 %v27, %v151
  %v226 = vmul.f32 %v28, %v155
  %v227 = vmul.f32 %v29, %v159
  %v228 = vmul.f32 %v30, %v163
  %v229 = vmul.f32 %v31, %v167
  %v230 = vmul.f32 %v32, %v171
  %v231 = vmul.f32 %v33, %v175
  %v232 = vmul.f32 %v34, %v179
  %v233 = vmul.f32 %v35, %v183
  %v234 = vmul.f32 %v36, %v187
  %v235 = vmul.f32 %v37, %v191
  %v236 = vmul.f32 %v38, %v195
  %v237 = vmul.f32 %v39, %v199
  %v238 = vmul.f32 %v40, %v203
  %v239 = vmul.f32 %v41, %v207
  %vm240 = vcmask 523264
  %v241 = vsel %vm240, %v224, 0.0
  %242 = vadd.xlane.f32.xlu0 %v241
  %v243 = vpop.xlane.xlu0 %242
  %v244 = vsel %vm240, %v225, 0.0
  %245 = vadd.xlane.f32.xlu0 %v244
  %v246 = vpop.xlane.xlu0 %245
  %v247 = vsel %vm240, %v226, 0.0
  %248 = vadd.xlane.f32.xlu0 %v247
  %v249 = vpop.xlane.xlu0 %248
  %v250 = vsel %vm240, %v227, 0.0
  %251 = vadd.xlane.f32.xlu0 %v250
  %v252 = vpop.xlane.xlu0 %251
  %v253 = vsel %vm240, %v228, 0.0
  %254 = vadd.xlane.f32.xlu0 %v253
  %v255 = vpop.xlane.xlu0 %254
  %v256 = vsel %vm240, %v229, 0.0
  %257 = vadd.xlane.f32.xlu0 %v256
  %v258 = vpop.xlane.xlu0 %257
  %v259 = vsel %vm240, %v230, 0.0
  %260 = vadd.xlane.f32.xlu0 %v259
  %v261 = vpop.xlane.xlu0 %260
  %v262 = vsel %vm240, %v231, 0.0
  %263 = vadd.xlane.f32.xlu0 %v262
  %v264 = vpop.xlane.xlu0 %263
  %v265 = vsel %vm240, %v232, 0.0
  %266 = vadd.xlane.f32.xlu0 %v265
  %v267 = vpop.xlane.xlu0 %266
  %v268 = vsel %vm240, %v233, 0.0
  %269 = vadd.xlane.f32.xlu0 %v268
  %v270 = vpop.xlane.xlu0 %269
  %v271 = vsel %vm240, %v234, 0.0
  %272 = vadd.xlane.f32.xlu0 %v271
  %v273 = vpop.xlane.xlu0 %272
  %v274 = vsel %vm240, %v235, 0.0
  %275 = vadd.xlane.f32.xlu0 %v274
  %v276 = vpop.xlane.xlu0 %275
  %v277 = vsel %vm240, %v236, 0.0
  %278 = vadd.xlane.f32.xlu0 %v277
  %v279 = vpop.xlane.xlu0 %278
  %v280 = vsel %vm240, %v237, 0.0
  %281 = vadd.xlane.f32.xlu0 %v280
  %v282 = vpop.xlane.xlu0 %281
  %v283 = vsel %vm240, %v238, 0.0
  %284 = vadd.xlane.f32.xlu0 %v283
  %v285 = vpop.xlane.xlu0 %284
  %v286 = vsel %vm240, %v239, 0.0
  %287 = vadd.xlane.f32.xlu0 %v286
  %v288 = vpop.xlane.xlu0 %287
  %v289 = vmul.f32 %v26, %v26
  %v290 = vmul.f32 %v27, %v27
  %v291 = vmul.f32 %v28, %v28
  %v292 = vmul.f32 %v29, %v29
  %v293 = vmul.f32 %v30, %v30
  %v294 = vmul.f32 %v31, %v31
  %v295 = vmul.f32 %v32, %v32
  %v296 = vmul.f32 %v33, %v33
  %v297 = vmul.f32 %v34, %v34
  %v298 = vmul.f32 %v35, %v35
  %v299 = vmul.f32 %v36, %v36
  %v300 = vmul.f32 %v37, %v37
  %v301 = vmul.f32 %v38, %v38
  %v302 = vmul.f32 %v39, %v39
  %v303 = vmul.f32 %v40, %v40
  %v304 = vmul.f32 %v41, %v41
  %v305 = vsel %vm240, %v289, 0.0
  %306 = vadd.xlane.f32.xlu0 %v305
  %v307 = vpop.xlane.xlu0 %306
  %v308 = vsel %vm240, %v290, 0.0
  %309 = vadd.xlane.f32.xlu0 %v308
  %v310 = vpop.xlane.xlu0 %309
  %v311 = vsel %vm240, %v291, 0.0
  %312 = vadd.xlane.f32.xlu0 %v311
  %v313 = vpop.xlane.xlu0 %312
  %v314 = vsel %vm240, %v292, 0.0
  %315 = vadd.xlane.f32.xlu0 %v314
  %v316 = vpop.xlane.xlu0 %315
  %v317 = vsel %vm240, %v293, 0.0
  %318 = vadd.xlane.f32.xlu0 %v317
  %v319 = vpop.xlane.xlu0 %318
  %v320 = vsel %vm240, %v294, 0.0
  %321 = vadd.xlane.f32.xlu0 %v320
  %v322 = vpop.xlane.xlu0 %321
  %v323 = vsel %vm240, %v295, 0.0
  %324 = vadd.xlane.f32.xlu0 %v323
  %v325 = vpop.xlane.xlu0 %324
  %v326 = vsel %vm240, %v296, 0.0
  %327 = vadd.xlane.f32.xlu0 %v326
  %v328 = vpop.xlane.xlu0 %327
  %v329 = vsel %vm240, %v297, 0.0
  %330 = vadd.xlane.f32.xlu0 %v329
  %v331 = vpop.xlane.xlu0 %330
  %v332 = vsel %vm240, %v298, 0.0
  %333 = vadd.xlane.f32.xlu0 %v332
  %v334 = vpop.xlane.xlu0 %333
  %v335 = vsel %vm240, %v299, 0.0
  %336 = vadd.xlane.f32.xlu0 %v335
  %v337 = vpop.xlane.xlu0 %336
  %v338 = vsel %vm240, %v300, 0.0
  %339 = vadd.xlane.f32.xlu0 %v338
  %v340 = vpop.xlane.xlu0 %339
  %v341 = vsel %vm240, %v301, 0.0
  %342 = vadd.xlane.f32.xlu0 %v341
  %v343 = vpop.xlane.xlu0 %342
  %v344 = vsel %vm240, %v302, 0.0
  %345 = vadd.xlane.f32.xlu0 %v344
  %v346 = vpop.xlane.xlu0 %345
  %v347 = vsel %vm240, %v303, 0.0
  %348 = vadd.xlane.f32.xlu0 %v347
  %v349 = vpop.xlane.xlu0 %348
  %v350 = vsel %vm240, %v304, 0.0
  %351 = vadd.xlane.f32.xlu0 %v350
  %v352 = vpop.xlane.xlu0 %351
  %v353 = vmax.f32 %v307, 1e-24
  %v354 = vmax.f32 %v310, 1e-24
  %v355 = vmax.f32 %v313, 1e-24
  %v356 = vmax.f32 %v316, 1e-24
  %v357 = vmax.f32 %v319, 1e-24
  %v358 = vmax.f32 %v322, 1e-24
  %v359 = vmax.f32 %v325, 1e-24
  %v360 = vmax.f32 %v328, 1e-24
  %v361 = vmax.f32 %v331, 1e-24
  %v362 = vmax.f32 %v334, 1e-24
  %v363 = vmax.f32 %v337, 1e-24
  %v364 = vmax.f32 %v340, 1e-24
  %v365 = vmax.f32 %v343, 1e-24
  %v366 = vmax.f32 %v346, 1e-24
  %v367 = vmax.f32 %v349, 1e-24
  %v368 = vmax.f32 %v352, 1e-24
  %v369 = vrsqrt.pop %v353
  %v370 = vrsqrt.pop %v354
  %v371 = vrsqrt.pop %v355
  %v372 = vrsqrt.pop %v356
  %v373 = vrsqrt.pop %v357
  %v374 = vrsqrt.pop %v358
  %v375 = vrsqrt.pop %v359
  %v376 = vrsqrt.pop %v360
  %v377 = vrsqrt.pop %v361
  %v378 = vrsqrt.pop %v362
  %v379 = vrsqrt.pop %v363
  %v380 = vrsqrt.pop %v364
  %v381 = vrsqrt.pop %v365
  %v382 = vrsqrt.pop %v366
  %v383 = vrsqrt.pop %v367
  %v384 = vrsqrt.pop %v368
  %v385 = vmul.f32 %v42, %v42
  %v386 = vmul.f32 %v43, %v43
  %v387 = vsel %vm240, %v385, 0.0
  %388 = vadd.xlane.f32.xlu0 %v387
  %v389 = vpop.xlane.xlu0 %388
  %v390 = vsel %vm240, %v386, 0.0
  %391 = vadd.xlane.f32.xlu0 %v390
  %v392 = vpop.xlane.xlu0 %391
  %v393 = vmax.f32 %v389, 1e-24
  %v394 = vmax.f32 %v392, 1e-24
  %v395 = vrsqrt.pop %v393
  %v396 = vrsqrt.pop %v394
  %v397 = vmul.f32 %v243, %v369
  %v398 = vmul.f32 %v246, %v370
  %v399 = vmul.f32 %v249, %v371
  %v400 = vmul.f32 %v252, %v372
  %v401 = vmul.f32 %v255, %v373
  %v402 = vmul.f32 %v258, %v374
  %v403 = vmul.f32 %v261, %v375
  %v404 = vmul.f32 %v264, %v376
  %v405 = vmul.f32 %v267, %v377
  %v406 = vmul.f32 %v270, %v378
  %v407 = vmul.f32 %v273, %v379
  %v408 = vmul.f32 %v276, %v380
  %v409 = vmul.f32 %v279, %v381
  %v410 = vmul.f32 %v282, %v382
  %v411 = vmul.f32 %v285, %v383
  %v412 = vmul.f32 %v288, %v384
  %v415 = vlaneseq
  %v416 = vshrl.u32 %v415, 7
  %v417 = vsub.s32 0, %v416
  %v418 = vrot.slane %v395, %v417
  %v419 = vlaneseq
  %v420 = vshrl.u32 %v419, 7
  %v421 = vsub.s32 1, %v420
  %v422 = vrot.slane %v395, %v421
  %v423 = vlaneseq
  %v424 = vshrl.u32 %v423, 7
  %v425 = vsub.s32 2, %v424
  %v426 = vrot.slane %v395, %v425
  %v427 = vlaneseq
  %v428 = vshrl.u32 %v427, 7
  %v429 = vsub.s32 3, %v428
  %v430 = vrot.slane %v395, %v429
  %v431 = vlaneseq
  %v432 = vshrl.u32 %v431, 7
  %v433 = vsub.s32 4, %v432
  %v434 = vrot.slane %v395, %v433
  %v435 = vlaneseq
  %v436 = vshrl.u32 %v435, 7
  %v437 = vsub.s32 5, %v436
  %v438 = vrot.slane %v395, %v437
  %v439 = vlaneseq
  %v440 = vshrl.u32 %v439, 7
  %v441 = vsub.s32 6, %v440
  %v442 = vrot.slane %v395, %v441
  %v443 = vlaneseq
  %v444 = vshrl.u32 %v443, 7
  %v445 = vsub.s32 7, %v444
  %v446 = vrot.slane %v395, %v445
  %v447 = vlaneseq
  %v448 = vshrl.u32 %v447, 7
  %v449 = vsub.s32 0, %v448
  %v450 = vrot.slane %v396, %v449
  %v451 = vlaneseq
  %v452 = vshrl.u32 %v451, 7
  %v453 = vsub.s32 1, %v452
  %v454 = vrot.slane %v396, %v453
  %v455 = vlaneseq
  %v456 = vshrl.u32 %v455, 7
  %v457 = vsub.s32 2, %v456
  %v458 = vrot.slane %v396, %v457
  %v459 = vlaneseq
  %v460 = vshrl.u32 %v459, 7
  %v461 = vsub.s32 3, %v460
  %v462 = vrot.slane %v396, %v461
  %v463 = vlaneseq
  %v464 = vshrl.u32 %v463, 7
  %v465 = vsub.s32 4, %v464
  %v466 = vrot.slane %v396, %v465
  %v467 = vlaneseq
  %v468 = vshrl.u32 %v467, 7
  %v469 = vsub.s32 5, %v468
  %v470 = vrot.slane %v396, %v469
  %v471 = vlaneseq
  %v472 = vshrl.u32 %v471, 7
  %v473 = vsub.s32 6, %v472
  %v474 = vrot.slane %v396, %v473
  %v475 = vlaneseq
  %v476 = vshrl.u32 %v475, 7
  %v477 = vsub.s32 7, %v476
  %v478 = vrot.slane %v396, %v477
  %v495 = vmul.f32 %v397, %v418
  %v496 = vmul.f32 %v398, %v422
  %v497 = vmul.f32 %v399, %v426
  %v498 = vmul.f32 %v400, %v430
  %v499 = vmul.f32 %v401, %v434
  %v500 = vmul.f32 %v402, %v438
  %v501 = vmul.f32 %v403, %v442
  %v502 = vmul.f32 %v404, %v446
  %v503 = vmul.f32 %v405, %v450
  %v504 = vmul.f32 %v406, %v454
  %v505 = vmul.f32 %v407, %v458
  %v506 = vmul.f32 %v408, %v462
  %v507 = vmul.f32 %v409, %v466
  %v508 = vmul.f32 %v410, %v470
  %v509 = vmul.f32 %v411, %v474
  %v510 = vmul.f32 %v412, %v478
  %v511 = vlaneseq
  %v512 = vand.u32 %v511, 127
  %529 = vset.pattern.permute.xlu0 0
  %530 = vperm.xlu0 %529, %v495
  %v531 = vpop.permute.xlu0 %530
  %532 = vset.pattern.permute.xlu0 0
  %533 = vperm.xlu0 %532, %v496
  %v534 = vpop.permute.xlu0 %533
  %535 = vset.pattern.permute.xlu0 0
  %536 = vperm.xlu0 %535, %v497
  %v537 = vpop.permute.xlu0 %536
  %538 = vset.pattern.permute.xlu0 0
  %539 = vperm.xlu0 %538, %v498
  %v540 = vpop.permute.xlu0 %539
  %541 = vset.pattern.permute.xlu0 0
  %542 = vperm.xlu0 %541, %v499
  %v543 = vpop.permute.xlu0 %542
  %544 = vset.pattern.permute.xlu0 0
  %545 = vperm.xlu0 %544, %v500
  %v546 = vpop.permute.xlu0 %545
  %547 = vset.pattern.permute.xlu0 0
  %548 = vperm.xlu0 %547, %v501
  %v549 = vpop.permute.xlu0 %548
  %550 = vset.pattern.permute.xlu0 0
  %551 = vperm.xlu0 %550, %v502
  %v552 = vpop.permute.xlu0 %551
  %553 = vset.pattern.permute.xlu0 0
  %554 = vperm.xlu0 %553, %v503
  %v555 = vpop.permute.xlu0 %554
  %556 = vset.pattern.permute.xlu0 0
  %557 = vperm.xlu0 %556, %v504
  %v558 = vpop.permute.xlu0 %557
  %559 = vset.pattern.permute.xlu0 0
  %560 = vperm.xlu0 %559, %v505
  %v561 = vpop.permute.xlu0 %560
  %562 = vset.pattern.permute.xlu0 0
  %563 = vperm.xlu0 %562, %v506
  %v564 = vpop.permute.xlu0 %563
  %565 = vset.pattern.permute.xlu0 0
  %566 = vperm.xlu0 %565, %v507
  %v567 = vpop.permute.xlu0 %566
  %568 = vset.pattern.permute.xlu0 0
  %569 = vperm.xlu0 %568, %v508
  %v570 = vpop.permute.xlu0 %569
  %571 = vset.pattern.permute.xlu0 0
  %572 = vperm.xlu0 %571, %v509
  %v573 = vpop.permute.xlu0 %572
  %574 = vset.pattern.permute.xlu0 0
  %575 = vperm.xlu0 %574, %v510
  %v576 = vpop.permute.xlu0 %575
  %v577 = vlaneseq
  %v578 = vshrl.u32 %v577, 7
  %v579 = vsub.s32 %v512, %v578
  %v580 = vrot.slane %v531, %v579
  %v581 = vlaneseq
  %v582 = vshrl.u32 %v581, 7
  %v583 = vsub.s32 %v512, %v582
  %v584 = vrot.slane %v534, %v583
  %v585 = vlaneseq
  %v586 = vshrl.u32 %v585, 7
  %v587 = vsub.s32 %v512, %v586
  %v588 = vrot.slane %v537, %v587
  %v589 = vlaneseq
  %v590 = vshrl.u32 %v589, 7
  %v591 = vsub.s32 %v512, %v590
  %v592 = vrot.slane %v540, %v591
  %v593 = vlaneseq
  %v594 = vshrl.u32 %v593, 7
  %v595 = vsub.s32 %v512, %v594
  %v596 = vrot.slane %v543, %v595
  %v597 = vlaneseq
  %v598 = vshrl.u32 %v597, 7
  %v599 = vsub.s32 %v512, %v598
  %v600 = vrot.slane %v546, %v599
  %v601 = vlaneseq
  %v602 = vshrl.u32 %v601, 7
  %v603 = vsub.s32 %v512, %v602
  %v604 = vrot.slane %v549, %v603
  %v605 = vlaneseq
  %v606 = vshrl.u32 %v605, 7
  %v607 = vsub.s32 %v512, %v606
  %v608 = vrot.slane %v552, %v607
  %v609 = vlaneseq
  %v610 = vshrl.u32 %v609, 7
  %v611 = vsub.s32 %v512, %v610
  %v612 = vrot.slane %v555, %v611
  %v613 = vlaneseq
  %v614 = vshrl.u32 %v613, 7
  %v615 = vsub.s32 %v512, %v614
  %v616 = vrot.slane %v558, %v615
  %v617 = vlaneseq
  %v618 = vshrl.u32 %v617, 7
  %v619 = vsub.s32 %v512, %v618
  %v620 = vrot.slane %v561, %v619
  %v621 = vlaneseq
  %v622 = vshrl.u32 %v621, 7
  %v623 = vsub.s32 %v512, %v622
  %v624 = vrot.slane %v564, %v623
  %v625 = vlaneseq
  %v626 = vshrl.u32 %v625, 7
  %v627 = vsub.s32 %v512, %v626
  %v628 = vrot.slane %v567, %v627
  %v629 = vlaneseq
  %v630 = vshrl.u32 %v629, 7
  %v631 = vsub.s32 %v512, %v630
  %v632 = vrot.slane %v570, %v631
  %v633 = vlaneseq
  %v634 = vshrl.u32 %v633, 7
  %v635 = vsub.s32 %v512, %v634
  %v636 = vrot.slane %v573, %v635
  %v637 = vlaneseq
  %v638 = vshrl.u32 %v637, 7
  %v639 = vsub.s32 %v512, %v638
  %v640 = vrot.slane %v576, %v639
  %vm641 = vcmask 1041409
  %v642 = vsel %vm641, %v584, %v580
  %vm643 = vcmask 1042434
  %v644 = vsel %vm643, %v588, %v642
  %vm645 = vcmask 1043459
  %v646 = vsel %vm645, %v592, %v644
  %vm647 = vcmask 1044484
  %v648 = vsel %vm647, %v596, %v646
  %vm649 = vcmask 1045509
  %v650 = vsel %vm649, %v600, %v648
  %vm651 = vcmask 1046534
  %v652 = vsel %vm651, %v604, %v650
  %vm653 = vcmask 1047559
  %v654 = vsel %vm653, %v608, %v652
  %v655 = vsel %vm641, %v616, %v612
  %v656 = vsel %vm643, %v620, %v655
  %v657 = vsel %vm645, %v624, %v656
  %v658 = vsel %vm647, %v628, %v657
  %v659 = vsel %vm649, %v632, %v658
  %v660 = vsel %vm651, %v636, %v659
  %v661 = vsel %vm653, %v640, %v660
  %vm664 = vcmask 64512
  %v665 = vsel %vm664, %v654, -inf
  %666 = vmax.xlane.f32.xlu0 %v665
  %v667 = vpop.xlane.xlu0 %666
  %v668 = vsel %vm664, %v661, -inf
  %669 = vmax.xlane.f32.xlu0 %v668
  %v670 = vpop.xlane.xlu0 %669
  %v673 = vlaneseq
  %v674 = vshrl.u32 %v673, 7
  %v675 = vsub.s32 0, %v674
  %v676 = vrot.slane %v667, %v675
  %v677 = vlaneseq
  %v678 = vshrl.u32 %v677, 7
  %v679 = vsub.s32 1, %v678
  %v680 = vrot.slane %v667, %v679
  %v681 = vlaneseq
  %v682 = vshrl.u32 %v681, 7
  %v683 = vsub.s32 2, %v682
  %v684 = vrot.slane %v667, %v683
  %v685 = vlaneseq
  %v686 = vshrl.u32 %v685, 7
  %v687 = vsub.s32 3, %v686
  %v688 = vrot.slane %v667, %v687
  %v689 = vlaneseq
  %v690 = vshrl.u32 %v689, 7
  %v691 = vsub.s32 4, %v690
  %v692 = vrot.slane %v667, %v691
  %v693 = vlaneseq
  %v694 = vshrl.u32 %v693, 7
  %v695 = vsub.s32 5, %v694
  %v696 = vrot.slane %v667, %v695
  %v697 = vlaneseq
  %v698 = vshrl.u32 %v697, 7
  %v699 = vsub.s32 6, %v698
  %v700 = vrot.slane %v667, %v699
  %v701 = vlaneseq
  %v702 = vshrl.u32 %v701, 7
  %v703 = vsub.s32 7, %v702
  %v704 = vrot.slane %v667, %v703
  %v705 = vlaneseq
  %v706 = vshrl.u32 %v705, 7
  %v707 = vsub.s32 0, %v706
  %v708 = vrot.slane %v670, %v707
  %v709 = vlaneseq
  %v710 = vshrl.u32 %v709, 7
  %v711 = vsub.s32 1, %v710
  %v712 = vrot.slane %v670, %v711
  %v713 = vlaneseq
  %v714 = vshrl.u32 %v713, 7
  %v715 = vsub.s32 2, %v714
  %v716 = vrot.slane %v670, %v715
  %v717 = vlaneseq
  %v718 = vshrl.u32 %v717, 7
  %v719 = vsub.s32 3, %v718
  %v720 = vrot.slane %v670, %v719
  %v721 = vlaneseq
  %v722 = vshrl.u32 %v721, 7
  %v723 = vsub.s32 4, %v722
  %v724 = vrot.slane %v670, %v723
  %v725 = vlaneseq
  %v726 = vshrl.u32 %v725, 7
  %v727 = vsub.s32 5, %v726
  %v728 = vrot.slane %v670, %v727
  %v729 = vlaneseq
  %v730 = vshrl.u32 %v729, 7
  %v731 = vsub.s32 6, %v730
  %v732 = vrot.slane %v670, %v731
  %v733 = vlaneseq
  %v734 = vshrl.u32 %v733, 7
  %v735 = vsub.s32 7, %v734
  %v736 = vrot.slane %v670, %v735
  %vm753 = vcmp.ge.f32.partialorder %v495, %v676
  %vm754 = vcmp.ge.f32.partialorder %v496, %v680
  %vm755 = vcmp.ge.f32.partialorder %v497, %v684
  %vm756 = vcmp.ge.f32.partialorder %v498, %v688
  %vm757 = vcmp.ge.f32.partialorder %v499, %v692
  %vm758 = vcmp.ge.f32.partialorder %v500, %v696
  %vm759 = vcmp.ge.f32.partialorder %v501, %v700
  %vm760 = vcmp.ge.f32.partialorder %v502, %v704
  %vm761 = vcmp.ge.f32.partialorder %v503, %v708
  %vm762 = vcmp.ge.f32.partialorder %v504, %v712
  %vm763 = vcmp.ge.f32.partialorder %v505, %v716
  %vm764 = vcmp.ge.f32.partialorder %v506, %v720
  %vm765 = vcmp.ge.f32.partialorder %v507, %v724
  %vm766 = vcmp.ge.f32.partialorder %v508, %v728
  %vm767 = vcmp.ge.f32.partialorder %v509, %v732
  %vm768 = vcmp.ge.f32.partialorder %v510, %v736
  %770 = vbcast.lane.b32.xlu0 %v512, 256
  %v771 = vpop.permute.xlu0 %770
  %v772 = vsel %vm753, %v771, 8
  %v773 = vsel %vm754, %v771, 8
  %v774 = vsel %vm755, %v771, 8
  %v775 = vsel %vm756, %v771, 8
  %v776 = vsel %vm757, %v771, 8
  %v777 = vsel %vm758, %v771, 8
  %v778 = vsel %vm759, %v771, 8
  %v779 = vsel %vm760, %v771, 8
  %v780 = vsel %vm761, %v771, 8
  %v781 = vsel %vm762, %v771, 8
  %v782 = vsel %vm763, %v771, 8
  %v783 = vsel %vm764, %v771, 8
  %v784 = vsel %vm765, %v771, 8
  %v785 = vsel %vm766, %v771, 8
  %v786 = vsel %vm767, %v771, 8
  %v787 = vsel %vm768, %v771, 8
  %788 = vset.pattern.permute.xlu0 0
  %789 = vperm.xlu0 %788, %v772
  %v790 = vpop.permute.xlu0 %789
  %791 = vset.pattern.permute.xlu0 0
  %792 = vperm.xlu0 %791, %v773
  %v793 = vpop.permute.xlu0 %792
  %794 = vset.pattern.permute.xlu0 0
  %795 = vperm.xlu0 %794, %v774
  %v796 = vpop.permute.xlu0 %795
  %797 = vset.pattern.permute.xlu0 0
  %798 = vperm.xlu0 %797, %v775
  %v799 = vpop.permute.xlu0 %798
  %800 = vset.pattern.permute.xlu0 0
  %801 = vperm.xlu0 %800, %v776
  %v802 = vpop.permute.xlu0 %801
  %803 = vset.pattern.permute.xlu0 0
  %804 = vperm.xlu0 %803, %v777
  %v805 = vpop.permute.xlu0 %804
  %806 = vset.pattern.permute.xlu0 0
  %807 = vperm.xlu0 %806, %v778
  %v808 = vpop.permute.xlu0 %807
  %809 = vset.pattern.permute.xlu0 0
  %810 = vperm.xlu0 %809, %v779
  %v811 = vpop.permute.xlu0 %810
  %812 = vset.pattern.permute.xlu0 0
  %813 = vperm.xlu0 %812, %v780
  %v814 = vpop.permute.xlu0 %813
  %815 = vset.pattern.permute.xlu0 0
  %816 = vperm.xlu0 %815, %v781
  %v817 = vpop.permute.xlu0 %816
  %818 = vset.pattern.permute.xlu0 0
  %819 = vperm.xlu0 %818, %v782
  %v820 = vpop.permute.xlu0 %819
  %821 = vset.pattern.permute.xlu0 0
  %822 = vperm.xlu0 %821, %v783
  %v823 = vpop.permute.xlu0 %822
  %824 = vset.pattern.permute.xlu0 0
  %825 = vperm.xlu0 %824, %v784
  %v826 = vpop.permute.xlu0 %825
  %827 = vset.pattern.permute.xlu0 0
  %828 = vperm.xlu0 %827, %v785
  %v829 = vpop.permute.xlu0 %828
  %830 = vset.pattern.permute.xlu0 0
  %831 = vperm.xlu0 %830, %v786
  %v832 = vpop.permute.xlu0 %831
  %833 = vset.pattern.permute.xlu0 0
  %834 = vperm.xlu0 %833, %v787
  %v835 = vpop.permute.xlu0 %834
  %v836 = vlaneseq
  %v837 = vshrl.u32 %v836, 7
  %v838 = vsub.s32 %v512, %v837
  %v839 = vrot.slane %v790, %v838
  %v840 = vlaneseq
  %v841 = vshrl.u32 %v840, 7
  %v842 = vsub.s32 %v512, %v841
  %v843 = vrot.slane %v793, %v842
  %v844 = vlaneseq
  %v845 = vshrl.u32 %v844, 7
  %v846 = vsub.s32 %v512, %v845
  %v847 = vrot.slane %v796, %v846
  %v848 = vlaneseq
  %v849 = vshrl.u32 %v848, 7
  %v850 = vsub.s32 %v512, %v849
  %v851 = vrot.slane %v799, %v850
  %v852 = vlaneseq
  %v853 = vshrl.u32 %v852, 7
  %v854 = vsub.s32 %v512, %v853
  %v855 = vrot.slane %v802, %v854
  %v856 = vlaneseq
  %v857 = vshrl.u32 %v856, 7
  %v858 = vsub.s32 %v512, %v857
  %v859 = vrot.slane %v805, %v858
  %v860 = vlaneseq
  %v861 = vshrl.u32 %v860, 7
  %v862 = vsub.s32 %v512, %v861
  %v863 = vrot.slane %v808, %v862
  %v864 = vlaneseq
  %v865 = vshrl.u32 %v864, 7
  %v866 = vsub.s32 %v512, %v865
  %v867 = vrot.slane %v811, %v866
  %v868 = vlaneseq
  %v869 = vshrl.u32 %v868, 7
  %v870 = vsub.s32 %v512, %v869
  %v871 = vrot.slane %v814, %v870
  %v872 = vlaneseq
  %v873 = vshrl.u32 %v872, 7
  %v874 = vsub.s32 %v512, %v873
  %v875 = vrot.slane %v817, %v874
  %v876 = vlaneseq
  %v877 = vshrl.u32 %v876, 7
  %v878 = vsub.s32 %v512, %v877
  %v879 = vrot.slane %v820, %v878
  %v880 = vlaneseq
  %v881 = vshrl.u32 %v880, 7
  %v882 = vsub.s32 %v512, %v881
  %v883 = vrot.slane %v823, %v882
  %v884 = vlaneseq
  %v885 = vshrl.u32 %v884, 7
  %v886 = vsub.s32 %v512, %v885
  %v887 = vrot.slane %v826, %v886
  %v888 = vlaneseq
  %v889 = vshrl.u32 %v888, 7
  %v890 = vsub.s32 %v512, %v889
  %v891 = vrot.slane %v829, %v890
  %v892 = vlaneseq
  %v893 = vshrl.u32 %v892, 7
  %v894 = vsub.s32 %v512, %v893
  %v895 = vrot.slane %v832, %v894
  %v896 = vlaneseq
  %v897 = vshrl.u32 %v896, 7
  %v898 = vsub.s32 %v512, %v897
  %v899 = vrot.slane %v835, %v898
  %v900 = vsel %vm641, %v843, %v839
  %v901 = vsel %vm643, %v847, %v900
  %v902 = vsel %vm645, %v851, %v901
  %v903 = vsel %vm647, %v855, %v902
  %v904 = vsel %vm649, %v859, %v903
  %v905 = vsel %vm651, %v863, %v904
  %v906 = vsel %vm653, %v867, %v905
  %v907 = vsel %vm641, %v875, %v871
  %v908 = vsel %vm643, %v879, %v907
  %v909 = vsel %vm645, %v883, %v908
  %v910 = vsel %vm647, %v887, %v909
  %v911 = vsel %vm649, %v891, %v910
  %v912 = vsel %vm651, %v895, %v911
  %v913 = vsel %vm653, %v899, %v912
  %v914 = vsel %vm664, %v906, 2147483647
  %v915 = vand.u32 %v914, 65535
  %v916 = vshra.s32 %v914, 16
  %v917 = vcvt.s32.f32 %v915
  %v918 = vcvt.s32.f32 %v916
  %919 = vmin.xlane.f32.xlu0 %v918
  %v920 = vpop.xlane.xlu0 %919
  %vm921 = vcmp.eq.f32.partialorder %v918, %v920
  %v922 = vsel %vm921, %v917, inf
  %923 = vmin.xlane.f32.xlu0 %v922
  %v924 = vpop.xlane.xlu0 %923
  %v925 = vcvt.f32.s32 %v924
  %v926 = vcvt.f32.s32 %v920
  %v927 = vshll.u32 %v926, 16
  %v928 = vadd.s32 %v927, %v925
  %v929 = vsel %vm664, %v913, 2147483647
  %v930 = vand.u32 %v929, 65535
  %v931 = vshra.s32 %v929, 16
  %v932 = vcvt.s32.f32 %v930
  %v933 = vcvt.s32.f32 %v931
  %934 = vmin.xlane.f32.xlu0 %v933
  %v935 = vpop.xlane.xlu0 %934
  %vm936 = vcmp.eq.f32.partialorder %v933, %v935
  %v937 = vsel %vm936, %v932, inf
  %938 = vmin.xlane.f32.xlu0 %v937
  %v939 = vpop.xlane.xlu0 %938
  %v940 = vcvt.f32.s32 %v939
  %v941 = vcvt.f32.s32 %v935
  %v942 = vshll.u32 %v941, 16
  %v943 = vadd.s32 %v942, %v940
  %vm944 = vcmp.eq.s32.totalorder %v512, %v928
  %vm945 = vcmp.eq.s32.totalorder %v512, %v943
  %v946 = vsel %vm944, 1, 0
  %v947 = vsel %vm945, 1, 0
  %v948 = vcvt.s32.f32 %v946
  %v949 = vcvt.s32.f32 %v947
  %vm950 = vcmp.eq.s32.totalorder %v512, 0
  %v951 = vsel %vm950, %v928, 0
  %v952 = vsel %vm950, %v943, 0
  %v953 = vsel %vm944, -1e+30, %v654
  %v954 = vsel %vm945, -1e+30, %v661
  %v955 = vsel %vm664, %v953, -inf
  %956 = vmax.xlane.f32.xlu0 %v955
  %v957 = vpop.xlane.xlu0 %956
  %v958 = vsel %vm664, %v954, -inf
  %959 = vmax.xlane.f32.xlu0 %v958
  %v960 = vpop.xlane.xlu0 %959
  %vm961 = vcmp.ge.f32.partialorder %v953, %v957
  %vm962 = vcmp.ge.f32.partialorder %v954, %v960
  %v963 = vsel %vm961, %v512, 8
  %v964 = vsel %vm962, %v512, 8
  %v965 = vsel %vm664, %v963, 2147483647
  %v966 = vand.u32 %v965, 65535
  %v967 = vshra.s32 %v965, 16
  %v968 = vcvt.s32.f32 %v966
  %v969 = vcvt.s32.f32 %v967
  %970 = vmin.xlane.f32.xlu0 %v969
  %v971 = vpop.xlane.xlu0 %970
  %vm972 = vcmp.eq.f32.partialorder %v969, %v971
  %v973 = vsel %vm972, %v968, inf
  %974 = vmin.xlane.f32.xlu0 %v973
  %v975 = vpop.xlane.xlu0 %974
  %v976 = vcvt.f32.s32 %v975
  %v977 = vcvt.f32.s32 %v971
  %v978 = vshll.u32 %v977, 16
  %v979 = vadd.s32 %v978, %v976
  %v980 = vsel %vm664, %v964, 2147483647
  %v981 = vand.u32 %v980, 65535
  %v982 = vshra.s32 %v980, 16
  %v983 = vcvt.s32.f32 %v981
  %v984 = vcvt.s32.f32 %v982
  %985 = vmin.xlane.f32.xlu0 %v984
  %v986 = vpop.xlane.xlu0 %985
  %vm987 = vcmp.eq.f32.partialorder %v984, %v986
  %v988 = vsel %vm987, %v983, inf
  %989 = vmin.xlane.f32.xlu0 %v988
  %v990 = vpop.xlane.xlu0 %989
  %v991 = vcvt.f32.s32 %v990
  %v992 = vcvt.f32.s32 %v986
  %v993 = vshll.u32 %v992, 16
  %v994 = vadd.s32 %v993, %v991
  %vm995 = vcmp.eq.s32.totalorder %v512, %v979
  %vm996 = vcmp.eq.s32.totalorder %v512, %v994
  %v997 = vsel %vm995, 1, 0
  %v998 = vsel %vm996, 1, 0
  %v999 = vcvt.s32.f32 %v997
  %v1000 = vcvt.s32.f32 %v998
  %vm1001 = vcmp.eq.s32.totalorder %v512, 1
  %v1002 = vsel %vm1001, %v979, %v951
  %v1003 = vsel %vm1001, %v994, %v952
  %v1004 = vsel %vm995, -1e+30, %v953
  %v1005 = vsel %vm996, -1e+30, %v954
  %v1006 = vsel %vm664, %v1004, -inf
  %1007 = vmax.xlane.f32.xlu0 %v1006
  %v1008 = vpop.xlane.xlu0 %1007
  %v1009 = vsel %vm664, %v1005, -inf
  %1010 = vmax.xlane.f32.xlu0 %v1009
  %v1011 = vpop.xlane.xlu0 %1010
  %vm1012 = vcmp.ge.f32.partialorder %v1004, %v1008
  %vm1013 = vcmp.ge.f32.partialorder %v1005, %v1011
  %v1014 = vsel %vm1012, %v512, 8
  %v1015 = vsel %vm1013, %v512, 8
  %v1016 = vsel %vm664, %v1014, 2147483647
  %v1017 = vand.u32 %v1016, 65535
  %v1018 = vshra.s32 %v1016, 16
  %v1019 = vcvt.s32.f32 %v1017
  %v1020 = vcvt.s32.f32 %v1018
  %1021 = vmin.xlane.f32.xlu0 %v1020
  %v1022 = vpop.xlane.xlu0 %1021
  %vm1023 = vcmp.eq.f32.partialorder %v1020, %v1022
  %v1024 = vsel %vm1023, %v1019, inf
  %1025 = vmin.xlane.f32.xlu0 %v1024
  %v1026 = vpop.xlane.xlu0 %1025
  %v1027 = vcvt.f32.s32 %v1026
  %v1028 = vcvt.f32.s32 %v1022
  %v1029 = vshll.u32 %v1028, 16
  %v1030 = vadd.s32 %v1029, %v1027
  %v1031 = vsel %vm664, %v1015, 2147483647
  %v1032 = vand.u32 %v1031, 65535
  %v1033 = vshra.s32 %v1031, 16
  %v1034 = vcvt.s32.f32 %v1032
  %v1035 = vcvt.s32.f32 %v1033
  %1036 = vmin.xlane.f32.xlu0 %v1035
  %v1037 = vpop.xlane.xlu0 %1036
  %vm1038 = vcmp.eq.f32.partialorder %v1035, %v1037
  %v1039 = vsel %vm1038, %v1034, inf
  %1040 = vmin.xlane.f32.xlu0 %v1039
  %v1041 = vpop.xlane.xlu0 %1040
  %v1042 = vcvt.f32.s32 %v1041
  %v1043 = vcvt.f32.s32 %v1037
  %v1044 = vshll.u32 %v1043, 16
  %v1045 = vadd.s32 %v1044, %v1042
  %vm1046 = vcmp.eq.s32.totalorder %v512, %v1030
  %vm1047 = vcmp.eq.s32.totalorder %v512, %v1045
  %v1048 = vsel %vm1046, 1, 0
  %v1049 = vsel %vm1047, 1, 0
  %v1050 = vcvt.s32.f32 %v1048
  %v1051 = vcvt.s32.f32 %v1049
  %vm1052 = vcmp.eq.s32.totalorder %v512, 2
  %v1053 = vsel %vm1052, %v1030, %v1002
  %v1054 = vsel %vm1052, %v1045, %v1003
  %v1055 = vsel %vm1046, -1e+30, %v1004
  %v1056 = vsel %vm1047, -1e+30, %v1005
  %v1057 = vsel %vm664, %v1055, -inf
  %1058 = vmax.xlane.f32.xlu0 %v1057
  %v1059 = vpop.xlane.xlu0 %1058
  %v1060 = vsel %vm664, %v1056, -inf
  %1061 = vmax.xlane.f32.xlu0 %v1060
  %v1062 = vpop.xlane.xlu0 %1061
  %vm1063 = vcmp.ge.f32.partialorder %v1055, %v1059
  %vm1064 = vcmp.ge.f32.partialorder %v1056, %v1062
  %v1065 = vsel %vm1063, %v512, 8
  %v1066 = vsel %vm1064, %v512, 8
  %v1067 = vsel %vm664, %v1065, 2147483647
  %v1068 = vand.u32 %v1067, 65535
  %v1069 = vshra.s32 %v1067, 16
  %v1070 = vcvt.s32.f32 %v1068
  %v1071 = vcvt.s32.f32 %v1069
  %1072 = vmin.xlane.f32.xlu0 %v1071
  %v1073 = vpop.xlane.xlu0 %1072
  %vm1074 = vcmp.eq.f32.partialorder %v1071, %v1073
  %v1075 = vsel %vm1074, %v1070, inf
  %1076 = vmin.xlane.f32.xlu0 %v1075
  %v1077 = vpop.xlane.xlu0 %1076
  %v1078 = vcvt.f32.s32 %v1077
  %v1079 = vcvt.f32.s32 %v1073
  %v1080 = vshll.u32 %v1079, 16
  %v1081 = vadd.s32 %v1080, %v1078
  %v1082 = vsel %vm664, %v1066, 2147483647
  %v1083 = vand.u32 %v1082, 65535
  %v1084 = vshra.s32 %v1082, 16
  %v1085 = vcvt.s32.f32 %v1083
  %v1086 = vcvt.s32.f32 %v1084
  %1087 = vmin.xlane.f32.xlu0 %v1086
  %v1088 = vpop.xlane.xlu0 %1087
  %vm1089 = vcmp.eq.f32.partialorder %v1086, %v1088
  %v1090 = vsel %vm1089, %v1085, inf
  %1091 = vmin.xlane.f32.xlu0 %v1090
  %v1092 = vpop.xlane.xlu0 %1091
  %v1093 = vcvt.f32.s32 %v1092
  %v1094 = vcvt.f32.s32 %v1088
  %v1095 = vshll.u32 %v1094, 16
  %v1096 = vadd.s32 %v1095, %v1093
  %vm1097 = vcmp.eq.s32.totalorder %v512, %v1081
  %vm1098 = vcmp.eq.s32.totalorder %v512, %v1096
  %v1099 = vsel %vm1097, 1, 0
  %v1100 = vsel %vm1098, 1, 0
  %v1101 = vcvt.s32.f32 %v1099
  %v1102 = vcvt.s32.f32 %v1100
  %vm1103 = vcmp.eq.s32.totalorder %v512, 3
  %v1104 = vsel %vm1103, %v1081, %v1053
  %v1105 = vsel %vm1103, %v1096, %v1054
  %vm1106 = vcmask 31744
  %1107 = vst.msk [vmem:[%s7] sm:$0xff] %vm1106, %v1104
  %1108 = vst.msk [vmem:[%s7 + $0x8] sm:$0xff] %vm1106, %v1105
  %v1109 = vld [vmem:[%s2] sm:$0xff]
  %v1110 = vld [vmem:[%s2 + $0x8] sm:$0xff]
  %v1111 = vld [vmem:[%s2 + $0x10] sm:$0xff]
  %v1112 = vld [vmem:[%s2 + $0x18] sm:$0xff]
  %v1113 = vld [vmem:[%s2 + $0x20] sm:$0xff]
  %v1114 = vld [vmem:[%s2 + $0x28] sm:$0xff]
  %v1115 = vld [vmem:[%s2 + $0x30] sm:$0xff]
  %v1116 = vld [vmem:[%s2 + $0x38] sm:$0xff]
  %v1117 = vld [vmem:[%s4] sm:$0xff]
  %v1118 = vld [vmem:[%s4 + $0x8] sm:$0xff]
  %v1119 = vld [vmem:[%s4 + $0x10] sm:$0xff]
  %v1120 = vld [vmem:[%s4 + $0x18] sm:$0xff]
  %v1121 = vld [vmem:[%s4 + $0x20] sm:$0xff]
  %v1122 = vld [vmem:[%s4 + $0x28] sm:$0xff]
  %v1123 = vld [vmem:[%s4 + $0x30] sm:$0xff]
  %v1124 = vld [vmem:[%s4 + $0x38] sm:$0xff]
  %v1125 = vld [vmem:[%s4 + $0x40] sm:$0xff]
  %v1126 = vld [vmem:[%s4 + $0x48] sm:$0xff]
  %v1127 = vld [vmem:[%s4 + $0x50] sm:$0xff]
  %v1128 = vld [vmem:[%s4 + $0x58] sm:$0xff]
  %v1129 = vld [vmem:[%s4 + $0x60] sm:$0xff]
  %v1130 = vld [vmem:[%s4 + $0x68] sm:$0xff]
  %v1131 = vld [vmem:[%s4 + $0x70] sm:$0xff]
  %v1132 = vld [vmem:[%s4 + $0x78] sm:$0xff]
  %v1133 = vld [vmem:[%s4 + $0x80] sm:$0xff]
  %v1134 = vld [vmem:[%s4 + $0x88] sm:$0xff]
  %v1135 = vld [vmem:[%s4 + $0x90] sm:$0xff]
  %v1136 = vld [vmem:[%s4 + $0x98] sm:$0xff]
  %v1137 = vld [vmem:[%s4 + $0xa0] sm:$0xff]
  %v1138 = vld [vmem:[%s4 + $0xa8] sm:$0xff]
  %v1139 = vld [vmem:[%s4 + $0xb0] sm:$0xff]
  %v1140 = vld [vmem:[%s4 + $0xb8] sm:$0xff]
  %v1141 = vld [vmem:[%s4 + $0xc0] sm:$0xff]
  %v1142 = vld [vmem:[%s4 + $0xc8] sm:$0xff]
  %v1143 = vld [vmem:[%s4 + $0xd0] sm:$0xff]
  %v1144 = vld [vmem:[%s4 + $0xd8] sm:$0xff]
  %v1145 = vld [vmem:[%s4 + $0xe0] sm:$0xff]
  %v1146 = vld [vmem:[%s4 + $0xe8] sm:$0xff]
  %v1147 = vld [vmem:[%s4 + $0xf0] sm:$0xff]
  %v1148 = vld [vmem:[%s4 + $0xf8] sm:$0xff]
  %v1149 = vld [vmem:[%s3] sm:$0x3]
  %v1150 = vld [vmem:[%s5] sm:$0x3]
  %v1151 = vlaneseq
  %v1152 = vshrl.u32 %v1151, 7
  %v1153 = vsub.s32 0, %v1152
  %v1154 = vrot.slane %v948, %v1153
  %1156 = vbcast.lane.b32.xlu0 %v1154, 256
  %v1157 = vpop.permute.xlu0 %1156
  %v1158 = vlaneseq
  %v1159 = vshrl.u32 %v1158, 7
  %v1160 = vsub.s32 1, %v1159
  %v1161 = vrot.slane %v948, %v1160
  %1163 = vbcast.lane.b32.xlu0 %v1161, 256
  %v1164 = vpop.permute.xlu0 %1163
  %v1165 = vlaneseq
  %v1166 = vshrl.u32 %v1165, 7
  %v1167 = vsub.s32 2, %v1166
  %v1168 = vrot.slane %v948, %v1167
  %1170 = vbcast.lane.b32.xlu0 %v1168, 256
  %v1171 = vpop.permute.xlu0 %1170
  %v1172 = vlaneseq
  %v1173 = vshrl.u32 %v1172, 7
  %v1174 = vsub.s32 3, %v1173
  %v1175 = vrot.slane %v948, %v1174
  %1177 = vbcast.lane.b32.xlu0 %v1175, 256
  %v1178 = vpop.permute.xlu0 %1177
  %v1179 = vlaneseq
  %v1180 = vshrl.u32 %v1179, 7
  %v1181 = vsub.s32 4, %v1180
  %v1182 = vrot.slane %v948, %v1181
  %1184 = vbcast.lane.b32.xlu0 %v1182, 256
  %v1185 = vpop.permute.xlu0 %1184
  %v1186 = vlaneseq
  %v1187 = vshrl.u32 %v1186, 7
  %v1188 = vsub.s32 5, %v1187
  %v1189 = vrot.slane %v948, %v1188
  %1191 = vbcast.lane.b32.xlu0 %v1189, 256
  %v1192 = vpop.permute.xlu0 %1191
  %v1193 = vlaneseq
  %v1194 = vshrl.u32 %v1193, 7
  %v1195 = vsub.s32 6, %v1194
  %v1196 = vrot.slane %v948, %v1195
  %1198 = vbcast.lane.b32.xlu0 %v1196, 256
  %v1199 = vpop.permute.xlu0 %1198
  %v1200 = vlaneseq
  %v1201 = vshrl.u32 %v1200, 7
  %v1202 = vsub.s32 7, %v1201
  %v1203 = vrot.slane %v948, %v1202
  %1205 = vbcast.lane.b32.xlu0 %v1203, 256
  %v1206 = vpop.permute.xlu0 %1205
  %v1207 = vlaneseq
  %v1208 = vshrl.u32 %v1207, 7
  %v1209 = vsub.s32 0, %v1208
  %v1210 = vrot.slane %v949, %v1209
  %1212 = vbcast.lane.b32.xlu0 %v1210, 256
  %v1213 = vpop.permute.xlu0 %1212
  %v1214 = vlaneseq
  %v1215 = vshrl.u32 %v1214, 7
  %v1216 = vsub.s32 1, %v1215
  %v1217 = vrot.slane %v949, %v1216
  %1219 = vbcast.lane.b32.xlu0 %v1217, 256
  %v1220 = vpop.permute.xlu0 %1219
  %v1221 = vlaneseq
  %v1222 = vshrl.u32 %v1221, 7
  %v1223 = vsub.s32 2, %v1222
  %v1224 = vrot.slane %v949, %v1223
  %1226 = vbcast.lane.b32.xlu0 %v1224, 256
  %v1227 = vpop.permute.xlu0 %1226
  %v1228 = vlaneseq
  %v1229 = vshrl.u32 %v1228, 7
  %v1230 = vsub.s32 3, %v1229
  %v1231 = vrot.slane %v949, %v1230
  %1233 = vbcast.lane.b32.xlu0 %v1231, 256
  %v1234 = vpop.permute.xlu0 %1233
  %v1235 = vlaneseq
  %v1236 = vshrl.u32 %v1235, 7
  %v1237 = vsub.s32 4, %v1236
  %v1238 = vrot.slane %v949, %v1237
  %1240 = vbcast.lane.b32.xlu0 %v1238, 256
  %v1241 = vpop.permute.xlu0 %1240
  %v1242 = vlaneseq
  %v1243 = vshrl.u32 %v1242, 7
  %v1244 = vsub.s32 5, %v1243
  %v1245 = vrot.slane %v949, %v1244
  %1247 = vbcast.lane.b32.xlu0 %v1245, 256
  %v1248 = vpop.permute.xlu0 %1247
  %v1249 = vlaneseq
  %v1250 = vshrl.u32 %v1249, 7
  %v1251 = vsub.s32 6, %v1250
  %v1252 = vrot.slane %v949, %v1251
  %1254 = vbcast.lane.b32.xlu0 %v1252, 256
  %v1255 = vpop.permute.xlu0 %1254
  %v1256 = vlaneseq
  %v1257 = vshrl.u32 %v1256, 7
  %v1258 = vsub.s32 7, %v1257
  %v1259 = vrot.slane %v949, %v1258
  %1261 = vbcast.lane.b32.xlu0 %v1259, 256
  %v1262 = vpop.permute.xlu0 %1261
  %v1263 = vmul.f32 %v1157, %v26
  %v1264 = vmul.f32 %v1164, %v27
  %v1265 = vmul.f32 %v1171, %v28
  %v1266 = vmul.f32 %v1178, %v29
  %v1267 = vmul.f32 %v1185, %v30
  %v1268 = vmul.f32 %v1192, %v31
  %v1269 = vmul.f32 %v1199, %v32
  %v1270 = vmul.f32 %v1206, %v33
  %v1271 = vmul.f32 %v1213, %v34
  %v1272 = vmul.f32 %v1220, %v35
  %v1273 = vmul.f32 %v1227, %v36
  %v1274 = vmul.f32 %v1234, %v37
  %v1275 = vmul.f32 %v1241, %v38
  %v1276 = vmul.f32 %v1248, %v39
  %v1277 = vmul.f32 %v1255, %v40
  %v1278 = vmul.f32 %v1262, %v41
  %v1279 = vsel %vm240, %v1263, 0.0
  %v1280 = vrot.slane %v1279, 4
  %v1281 = vadd.f32 %v1279, %v1280
  %v1282 = vrot.slane %v1281, 2
  %v1283 = vadd.f32 %v1281, %v1282
  %v1284 = vrot.slane %v1283, 1
  %v1285 = vadd.f32 %v1283, %v1284
  %v1286 = vsel %vm240, %v1264, 0.0
  %v1287 = vrot.slane %v1286, 4
  %v1288 = vadd.f32 %v1286, %v1287
  %v1289 = vrot.slane %v1288, 2
  %v1290 = vadd.f32 %v1288, %v1289
  %v1291 = vrot.slane %v1290, 1
  %v1292 = vadd.f32 %v1290, %v1291
  %v1293 = vsel %vm240, %v1265, 0.0
  %v1294 = vrot.slane %v1293, 4
  %v1295 = vadd.f32 %v1293, %v1294
  %v1296 = vrot.slane %v1295, 2
  %v1297 = vadd.f32 %v1295, %v1296
  %v1298 = vrot.slane %v1297, 1
  %v1299 = vadd.f32 %v1297, %v1298
  %v1300 = vsel %vm240, %v1266, 0.0
  %v1301 = vrot.slane %v1300, 4
  %v1302 = vadd.f32 %v1300, %v1301
  %v1303 = vrot.slane %v1302, 2
  %v1304 = vadd.f32 %v1302, %v1303
  %v1305 = vrot.slane %v1304, 1
  %v1306 = vadd.f32 %v1304, %v1305
  %v1307 = vsel %vm240, %v1267, 0.0
  %v1308 = vrot.slane %v1307, 4
  %v1309 = vadd.f32 %v1307, %v1308
  %v1310 = vrot.slane %v1309, 2
  %v1311 = vadd.f32 %v1309, %v1310
  %v1312 = vrot.slane %v1311, 1
  %v1313 = vadd.f32 %v1311, %v1312
  %v1314 = vsel %vm240, %v1268, 0.0
  %v1315 = vrot.slane %v1314, 4
  %v1316 = vadd.f32 %v1314, %v1315
  %v1317 = vrot.slane %v1316, 2
  %v1318 = vadd.f32 %v1316, %v1317
  %v1319 = vrot.slane %v1318, 1
  %v1320 = vadd.f32 %v1318, %v1319
  %v1321 = vsel %vm240, %v1269, 0.0
  %v1322 = vrot.slane %v1321, 4
  %v1323 = vadd.f32 %v1321, %v1322
  %v1324 = vrot.slane %v1323, 2
  %v1325 = vadd.f32 %v1323, %v1324
  %v1326 = vrot.slane %v1325, 1
  %v1327 = vadd.f32 %v1325, %v1326
  %v1328 = vsel %vm240, %v1270, 0.0
  %v1329 = vrot.slane %v1328, 4
  %v1330 = vadd.f32 %v1328, %v1329
  %v1331 = vrot.slane %v1330, 2
  %v1332 = vadd.f32 %v1330, %v1331
  %v1333 = vrot.slane %v1332, 1
  %v1334 = vadd.f32 %v1332, %v1333
  %v1335 = vsel %vm240, %v1271, 0.0
  %v1336 = vrot.slane %v1335, 4
  %v1337 = vadd.f32 %v1335, %v1336
  %v1338 = vrot.slane %v1337, 2
  %v1339 = vadd.f32 %v1337, %v1338
  %v1340 = vrot.slane %v1339, 1
  %v1341 = vadd.f32 %v1339, %v1340
  %v1342 = vsel %vm240, %v1272, 0.0
  %v1343 = vrot.slane %v1342, 4
  %v1344 = vadd.f32 %v1342, %v1343
  %v1345 = vrot.slane %v1344, 2
  %v1346 = vadd.f32 %v1344, %v1345
  %v1347 = vrot.slane %v1346, 1
  %v1348 = vadd.f32 %v1346, %v1347
  %v1349 = vsel %vm240, %v1273, 0.0
  %v1350 = vrot.slane %v1349, 4
  %v1351 = vadd.f32 %v1349, %v1350
  %v1352 = vrot.slane %v1351, 2
  %v1353 = vadd.f32 %v1351, %v1352
  %v1354 = vrot.slane %v1353, 1
  %v1355 = vadd.f32 %v1353, %v1354
  %v1356 = vsel %vm240, %v1274, 0.0
  %v1357 = vrot.slane %v1356, 4
  %v1358 = vadd.f32 %v1356, %v1357
  %v1359 = vrot.slane %v1358, 2
  %v1360 = vadd.f32 %v1358, %v1359
  %v1361 = vrot.slane %v1360, 1
  %v1362 = vadd.f32 %v1360, %v1361
  %v1363 = vsel %vm240, %v1275, 0.0
  %v1364 = vrot.slane %v1363, 4
  %v1365 = vadd.f32 %v1363, %v1364
  %v1366 = vrot.slane %v1365, 2
  %v1367 = vadd.f32 %v1365, %v1366
  %v1368 = vrot.slane %v1367, 1
  %v1369 = vadd.f32 %v1367, %v1368
  %v1370 = vsel %vm240, %v1276, 0.0
  %v1371 = vrot.slane %v1370, 4
  %v1372 = vadd.f32 %v1370, %v1371
  %v1373 = vrot.slane %v1372, 2
  %v1374 = vadd.f32 %v1372, %v1373
  %v1375 = vrot.slane %v1374, 1
  %v1376 = vadd.f32 %v1374, %v1375
  %v1377 = vsel %vm240, %v1277, 0.0
  %v1378 = vrot.slane %v1377, 4
  %v1379 = vadd.f32 %v1377, %v1378
  %v1380 = vrot.slane %v1379, 2
  %v1381 = vadd.f32 %v1379, %v1380
  %v1382 = vrot.slane %v1381, 1
  %v1383 = vadd.f32 %v1381, %v1382
  %v1384 = vsel %vm240, %v1278, 0.0
  %v1385 = vrot.slane %v1384, 4
  %v1386 = vadd.f32 %v1384, %v1385
  %v1387 = vrot.slane %v1386, 2
  %v1388 = vadd.f32 %v1386, %v1387
  %v1389 = vrot.slane %v1388, 1
  %v1390 = vadd.f32 %v1388, %v1389
  %v1391 = vlaneseq
  %v1392 = vshrl.u32 %v1391, 7
  %v1393 = vsub.s32 0, %v1392
  %v1394 = vrot.slane %v999, %v1393
  %1396 = vbcast.lane.b32.xlu0 %v1394, 256
  %v1397 = vpop.permute.xlu0 %1396
  %v1398 = vlaneseq
  %v1399 = vshrl.u32 %v1398, 7
  %v1400 = vsub.s32 1, %v1399
  %v1401 = vrot.slane %v999, %v1400
  %1403 = vbcast.lane.b32.xlu0 %v1401, 256
  %v1404 = vpop.permute.xlu0 %1403
  %v1405 = vlaneseq
  %v1406 = vshrl.u32 %v1405, 7
  %v1407 = vsub.s32 2, %v1406
  %v1408 = vrot.slane %v999, %v1407
  %1410 = vbcast.lane.b32.xlu0 %v1408, 256
  %v1411 = vpop.permute.xlu0 %1410
  %v1412 = vlaneseq
  %v1413 = vshrl.u32 %v1412, 7
  %v1414 = vsub.s32 3, %v1413
  %v1415 = vrot.slane %v999, %v1414
  %1417 = vbcast.lane.b32.xlu0 %v1415, 256
  %v1418 = vpop.permute.xlu0 %1417
  %v1419 = vlaneseq
  %v1420 = vshrl.u32 %v1419, 7
  %v1421 = vsub.s32 4, %v1420
  %v1422 = vrot.slane %v999, %v1421
  %1424 = vbcast.lane.b32.xlu0 %v1422, 256
  %v1425 = vpop.permute.xlu0 %1424
  %v1426 = vlaneseq
  %v1427 = vshrl.u32 %v1426, 7
  %v1428 = vsub.s32 5, %v1427
  %v1429 = vrot.slane %v999, %v1428
  %1431 = vbcast.lane.b32.xlu0 %v1429, 256
  %v1432 = vpop.permute.xlu0 %1431
  %v1433 = vlaneseq
  %v1434 = vshrl.u32 %v1433, 7
  %v1435 = vsub.s32 6, %v1434
  %v1436 = vrot.slane %v999, %v1435
  %1438 = vbcast.lane.b32.xlu0 %v1436, 256
  %v1439 = vpop.permute.xlu0 %1438
  %v1440 = vlaneseq
  %v1441 = vshrl.u32 %v1440, 7
  %v1442 = vsub.s32 7, %v1441
  %v1443 = vrot.slane %v999, %v1442
  %1445 = vbcast.lane.b32.xlu0 %v1443, 256
  %v1446 = vpop.permute.xlu0 %1445
  %v1447 = vlaneseq
  %v1448 = vshrl.u32 %v1447, 7
  %v1449 = vsub.s32 0, %v1448
  %v1450 = vrot.slane %v1000, %v1449
  %1452 = vbcast.lane.b32.xlu0 %v1450, 256
  %v1453 = vpop.permute.xlu0 %1452
  %v1454 = vlaneseq
  %v1455 = vshrl.u32 %v1454, 7
  %v1456 = vsub.s32 1, %v1455
  %v1457 = vrot.slane %v1000, %v1456
  %1459 = vbcast.lane.b32.xlu0 %v1457, 256
  %v1460 = vpop.permute.xlu0 %1459
  %v1461 = vlaneseq
  %v1462 = vshrl.u32 %v1461, 7
  %v1463 = vsub.s32 2, %v1462
  %v1464 = vrot.slane %v1000, %v1463
  %1466 = vbcast.lane.b32.xlu0 %v1464, 256
  %v1467 = vpop.permute.xlu0 %1466
  %v1468 = vlaneseq
  %v1469 = vshrl.u32 %v1468, 7
  %v1470 = vsub.s32 3, %v1469
  %v1471 = vrot.slane %v1000, %v1470
  %1473 = vbcast.lane.b32.xlu0 %v1471, 256
  %v1474 = vpop.permute.xlu0 %1473
  %v1475 = vlaneseq
  %v1476 = vshrl.u32 %v1475, 7
  %v1477 = vsub.s32 4, %v1476
  %v1478 = vrot.slane %v1000, %v1477
  %1480 = vbcast.lane.b32.xlu0 %v1478, 256
  %v1481 = vpop.permute.xlu0 %1480
  %v1482 = vlaneseq
  %v1483 = vshrl.u32 %v1482, 7
  %v1484 = vsub.s32 5, %v1483
  %v1485 = vrot.slane %v1000, %v1484
  %1487 = vbcast.lane.b32.xlu0 %v1485, 256
  %v1488 = vpop.permute.xlu0 %1487
  %v1489 = vlaneseq
  %v1490 = vshrl.u32 %v1489, 7
  %v1491 = vsub.s32 6, %v1490
  %v1492 = vrot.slane %v1000, %v1491
  %1494 = vbcast.lane.b32.xlu0 %v1492, 256
  %v1495 = vpop.permute.xlu0 %1494
  %v1496 = vlaneseq
  %v1497 = vshrl.u32 %v1496, 7
  %v1498 = vsub.s32 7, %v1497
  %v1499 = vrot.slane %v1000, %v1498
  %1501 = vbcast.lane.b32.xlu0 %v1499, 256
  %v1502 = vpop.permute.xlu0 %1501
  %v1503 = vmul.f32 %v1397, %v26
  %v1504 = vmul.f32 %v1404, %v27
  %v1505 = vmul.f32 %v1411, %v28
  %v1506 = vmul.f32 %v1418, %v29
  %v1507 = vmul.f32 %v1425, %v30
  %v1508 = vmul.f32 %v1432, %v31
  %v1509 = vmul.f32 %v1439, %v32
  %v1510 = vmul.f32 %v1446, %v33
  %v1511 = vmul.f32 %v1453, %v34
  %v1512 = vmul.f32 %v1460, %v35
  %v1513 = vmul.f32 %v1467, %v36
  %v1514 = vmul.f32 %v1474, %v37
  %v1515 = vmul.f32 %v1481, %v38
  %v1516 = vmul.f32 %v1488, %v39
  %v1517 = vmul.f32 %v1495, %v40
  %v1518 = vmul.f32 %v1502, %v41
  %v1519 = vsel %vm240, %v1503, 0.0
  %v1520 = vrot.slane %v1519, 4
  %v1521 = vadd.f32 %v1519, %v1520
  %v1522 = vrot.slane %v1521, 2
  %v1523 = vadd.f32 %v1521, %v1522
  %v1524 = vrot.slane %v1523, 1
  %v1525 = vadd.f32 %v1523, %v1524
  %v1526 = vsel %vm240, %v1504, 0.0
  %v1527 = vrot.slane %v1526, 4
  %v1528 = vadd.f32 %v1526, %v1527
  %v1529 = vrot.slane %v1528, 2
  %v1530 = vadd.f32 %v1528, %v1529
  %v1531 = vrot.slane %v1530, 1
  %v1532 = vadd.f32 %v1530, %v1531
  %v1533 = vsel %vm240, %v1505, 0.0
  %v1534 = vrot.slane %v1533, 4
  %v1535 = vadd.f32 %v1533, %v1534
  %v1536 = vrot.slane %v1535, 2
  %v1537 = vadd.f32 %v1535, %v1536
  %v1538 = vrot.slane %v1537, 1
  %v1539 = vadd.f32 %v1537, %v1538
  %v1540 = vsel %vm240, %v1506, 0.0
  %v1541 = vrot.slane %v1540, 4
  %v1542 = vadd.f32 %v1540, %v1541
  %v1543 = vrot.slane %v1542, 2
  %v1544 = vadd.f32 %v1542, %v1543
  %v1545 = vrot.slane %v1544, 1
  %v1546 = vadd.f32 %v1544, %v1545
  %v1547 = vsel %vm240, %v1507, 0.0
  %v1548 = vrot.slane %v1547, 4
  %v1549 = vadd.f32 %v1547, %v1548
  %v1550 = vrot.slane %v1549, 2
  %v1551 = vadd.f32 %v1549, %v1550
  %v1552 = vrot.slane %v1551, 1
  %v1553 = vadd.f32 %v1551, %v1552
  %v1554 = vsel %vm240, %v1508, 0.0
  %v1555 = vrot.slane %v1554, 4
  %v1556 = vadd.f32 %v1554, %v1555
  %v1557 = vrot.slane %v1556, 2
  %v1558 = vadd.f32 %v1556, %v1557
  %v1559 = vrot.slane %v1558, 1
  %v1560 = vadd.f32 %v1558, %v1559
  %v1561 = vsel %vm240, %v1509, 0.0
  %v1562 = vrot.slane %v1561, 4
  %v1563 = vadd.f32 %v1561, %v1562
  %v1564 = vrot.slane %v1563, 2
  %v1565 = vadd.f32 %v1563, %v1564
  %v1566 = vrot.slane %v1565, 1
  %v1567 = vadd.f32 %v1565, %v1566
  %v1568 = vsel %vm240, %v1510, 0.0
  %v1569 = vrot.slane %v1568, 4
  %v1570 = vadd.f32 %v1568, %v1569
  %v1571 = vrot.slane %v1570, 2
  %v1572 = vadd.f32 %v1570, %v1571
  %v1573 = vrot.slane %v1572, 1
  %v1574 = vadd.f32 %v1572, %v1573
  %v1575 = vsel %vm240, %v1511, 0.0
  %v1576 = vrot.slane %v1575, 4
  %v1577 = vadd.f32 %v1575, %v1576
  %v1578 = vrot.slane %v1577, 2
  %v1579 = vadd.f32 %v1577, %v1578
  %v1580 = vrot.slane %v1579, 1
  %v1581 = vadd.f32 %v1579, %v1580
  %v1582 = vsel %vm240, %v1512, 0.0
  %v1583 = vrot.slane %v1582, 4
  %v1584 = vadd.f32 %v1582, %v1583
  %v1585 = vrot.slane %v1584, 2
  %v1586 = vadd.f32 %v1584, %v1585
  %v1587 = vrot.slane %v1586, 1
  %v1588 = vadd.f32 %v1586, %v1587
  %v1589 = vsel %vm240, %v1513, 0.0
  %v1590 = vrot.slane %v1589, 4
  %v1591 = vadd.f32 %v1589, %v1590
  %v1592 = vrot.slane %v1591, 2
  %v1593 = vadd.f32 %v1591, %v1592
  %v1594 = vrot.slane %v1593, 1
  %v1595 = vadd.f32 %v1593, %v1594
  %v1596 = vsel %vm240, %v1514, 0.0
  %v1597 = vrot.slane %v1596, 4
  %v1598 = vadd.f32 %v1596, %v1597
  %v1599 = vrot.slane %v1598, 2
  %v1600 = vadd.f32 %v1598, %v1599
  %v1601 = vrot.slane %v1600, 1
  %v1602 = vadd.f32 %v1600, %v1601
  %v1603 = vsel %vm240, %v1515, 0.0
  %v1604 = vrot.slane %v1603, 4
  %v1605 = vadd.f32 %v1603, %v1604
  %v1606 = vrot.slane %v1605, 2
  %v1607 = vadd.f32 %v1605, %v1606
  %v1608 = vrot.slane %v1607, 1
  %v1609 = vadd.f32 %v1607, %v1608
  %v1610 = vsel %vm240, %v1516, 0.0
  %v1611 = vrot.slane %v1610, 4
  %v1612 = vadd.f32 %v1610, %v1611
  %v1613 = vrot.slane %v1612, 2
  %v1614 = vadd.f32 %v1612, %v1613
  %v1615 = vrot.slane %v1614, 1
  %v1616 = vadd.f32 %v1614, %v1615
  %v1617 = vsel %vm240, %v1517, 0.0
  %v1618 = vrot.slane %v1617, 4
  %v1619 = vadd.f32 %v1617, %v1618
  %v1620 = vrot.slane %v1619, 2
  %v1621 = vadd.f32 %v1619, %v1620
  %v1622 = vrot.slane %v1621, 1
  %v1623 = vadd.f32 %v1621, %v1622
  %v1624 = vsel %vm240, %v1518, 0.0
  %v1625 = vrot.slane %v1624, 4
  %v1626 = vadd.f32 %v1624, %v1625
  %v1627 = vrot.slane %v1626, 2
  %v1628 = vadd.f32 %v1626, %v1627
  %v1629 = vrot.slane %v1628, 1
  %v1630 = vadd.f32 %v1628, %v1629
  %v1631 = vlaneseq
  %v1632 = vshrl.u32 %v1631, 7
  %v1633 = vsub.s32 0, %v1632
  %v1634 = vrot.slane %v1050, %v1633
  %1636 = vbcast.lane.b32.xlu0 %v1634, 256
  %v1637 = vpop.permute.xlu0 %1636
  %v1638 = vlaneseq
  %v1639 = vshrl.u32 %v1638, 7
  %v1640 = vsub.s32 1, %v1639
  %v1641 = vrot.slane %v1050, %v1640
  %1643 = vbcast.lane.b32.xlu0 %v1641, 256
  %v1644 = vpop.permute.xlu0 %1643
  %v1645 = vlaneseq
  %v1646 = vshrl.u32 %v1645, 7
  %v1647 = vsub.s32 2, %v1646
  %v1648 = vrot.slane %v1050, %v1647
  %1650 = vbcast.lane.b32.xlu0 %v1648, 256
  %v1651 = vpop.permute.xlu0 %1650
  %v1652 = vlaneseq
  %v1653 = vshrl.u32 %v1652, 7
  %v1654 = vsub.s32 3, %v1653
  %v1655 = vrot.slane %v1050, %v1654
  %1657 = vbcast.lane.b32.xlu0 %v1655, 256
  %v1658 = vpop.permute.xlu0 %1657
  %v1659 = vlaneseq
  %v1660 = vshrl.u32 %v1659, 7
  %v1661 = vsub.s32 4, %v1660
  %v1662 = vrot.slane %v1050, %v1661
  %1664 = vbcast.lane.b32.xlu0 %v1662, 256
  %v1665 = vpop.permute.xlu0 %1664
  %v1666 = vlaneseq
  %v1667 = vshrl.u32 %v1666, 7
  %v1668 = vsub.s32 5, %v1667
  %v1669 = vrot.slane %v1050, %v1668
  %1671 = vbcast.lane.b32.xlu0 %v1669, 256
  %v1672 = vpop.permute.xlu0 %1671
  %v1673 = vlaneseq
  %v1674 = vshrl.u32 %v1673, 7
  %v1675 = vsub.s32 6, %v1674
  %v1676 = vrot.slane %v1050, %v1675
  %1678 = vbcast.lane.b32.xlu0 %v1676, 256
  %v1679 = vpop.permute.xlu0 %1678
  %v1680 = vlaneseq
  %v1681 = vshrl.u32 %v1680, 7
  %v1682 = vsub.s32 7, %v1681
  %v1683 = vrot.slane %v1050, %v1682
  %1685 = vbcast.lane.b32.xlu0 %v1683, 256
  %v1686 = vpop.permute.xlu0 %1685
  %v1687 = vlaneseq
  %v1688 = vshrl.u32 %v1687, 7
  %v1689 = vsub.s32 0, %v1688
  %v1690 = vrot.slane %v1051, %v1689
  %1692 = vbcast.lane.b32.xlu0 %v1690, 256
  %v1693 = vpop.permute.xlu0 %1692
  %v1694 = vlaneseq
  %v1695 = vshrl.u32 %v1694, 7
  %v1696 = vsub.s32 1, %v1695
  %v1697 = vrot.slane %v1051, %v1696
  %1699 = vbcast.lane.b32.xlu0 %v1697, 256
  %v1700 = vpop.permute.xlu0 %1699
  %v1701 = vlaneseq
  %v1702 = vshrl.u32 %v1701, 7
  %v1703 = vsub.s32 2, %v1702
  %v1704 = vrot.slane %v1051, %v1703
  %1706 = vbcast.lane.b32.xlu0 %v1704, 256
  %v1707 = vpop.permute.xlu0 %1706
  %v1708 = vlaneseq
  %v1709 = vshrl.u32 %v1708, 7
  %v1710 = vsub.s32 3, %v1709
  %v1711 = vrot.slane %v1051, %v1710
  %1713 = vbcast.lane.b32.xlu0 %v1711, 256
  %v1714 = vpop.permute.xlu0 %1713
  %v1715 = vlaneseq
  %v1716 = vshrl.u32 %v1715, 7
  %v1717 = vsub.s32 4, %v1716
  %v1718 = vrot.slane %v1051, %v1717
  %1720 = vbcast.lane.b32.xlu0 %v1718, 256
  %v1721 = vpop.permute.xlu0 %1720
  %v1722 = vlaneseq
  %v1723 = vshrl.u32 %v1722, 7
  %v1724 = vsub.s32 5, %v1723
  %v1725 = vrot.slane %v1051, %v1724
  %1727 = vbcast.lane.b32.xlu0 %v1725, 256
  %v1728 = vpop.permute.xlu0 %1727
  %v1729 = vlaneseq
  %v1730 = vshrl.u32 %v1729, 7
  %v1731 = vsub.s32 6, %v1730
  %v1732 = vrot.slane %v1051, %v1731
  %1734 = vbcast.lane.b32.xlu0 %v1732, 256
  %v1735 = vpop.permute.xlu0 %1734
  %v1736 = vlaneseq
  %v1737 = vshrl.u32 %v1736, 7
  %v1738 = vsub.s32 7, %v1737
  %v1739 = vrot.slane %v1051, %v1738
  %1741 = vbcast.lane.b32.xlu0 %v1739, 256
  %v1742 = vpop.permute.xlu0 %1741
  %v1743 = vmul.f32 %v1637, %v26
  %v1744 = vmul.f32 %v1644, %v27
  %v1745 = vmul.f32 %v1651, %v28
  %v1746 = vmul.f32 %v1658, %v29
  %v1747 = vmul.f32 %v1665, %v30
  %v1748 = vmul.f32 %v1672, %v31
  %v1749 = vmul.f32 %v1679, %v32
  %v1750 = vmul.f32 %v1686, %v33
  %v1751 = vmul.f32 %v1693, %v34
  %v1752 = vmul.f32 %v1700, %v35
  %v1753 = vmul.f32 %v1707, %v36
  %v1754 = vmul.f32 %v1714, %v37
  %v1755 = vmul.f32 %v1721, %v38
  %v1756 = vmul.f32 %v1728, %v39
  %v1757 = vmul.f32 %v1735, %v40
  %v1758 = vmul.f32 %v1742, %v41
  %v1759 = vsel %vm240, %v1743, 0.0
  %v1760 = vrot.slane %v1759, 4
  %v1761 = vadd.f32 %v1759, %v1760
  %v1762 = vrot.slane %v1761, 2
  %v1763 = vadd.f32 %v1761, %v1762
  %v1764 = vrot.slane %v1763, 1
  %v1765 = vadd.f32 %v1763, %v1764
  %v1766 = vsel %vm240, %v1744, 0.0
  %v1767 = vrot.slane %v1766, 4
  %v1768 = vadd.f32 %v1766, %v1767
  %v1769 = vrot.slane %v1768, 2
  %v1770 = vadd.f32 %v1768, %v1769
  %v1771 = vrot.slane %v1770, 1
  %v1772 = vadd.f32 %v1770, %v1771
  %v1773 = vsel %vm240, %v1745, 0.0
  %v1774 = vrot.slane %v1773, 4
  %v1775 = vadd.f32 %v1773, %v1774
  %v1776 = vrot.slane %v1775, 2
  %v1777 = vadd.f32 %v1775, %v1776
  %v1778 = vrot.slane %v1777, 1
  %v1779 = vadd.f32 %v1777, %v1778
  %v1780 = vsel %vm240, %v1746, 0.0
  %v1781 = vrot.slane %v1780, 4
  %v1782 = vadd.f32 %v1780, %v1781
  %v1783 = vrot.slane %v1782, 2
  %v1784 = vadd.f32 %v1782, %v1783
  %v1785 = vrot.slane %v1784, 1
  %v1786 = vadd.f32 %v1784, %v1785
  %v1787 = vsel %vm240, %v1747, 0.0
  %v1788 = vrot.slane %v1787, 4
  %v1789 = vadd.f32 %v1787, %v1788
  %v1790 = vrot.slane %v1789, 2
  %v1791 = vadd.f32 %v1789, %v1790
  %v1792 = vrot.slane %v1791, 1
  %v1793 = vadd.f32 %v1791, %v1792
  %v1794 = vsel %vm240, %v1748, 0.0
  %v1795 = vrot.slane %v1794, 4
  %v1796 = vadd.f32 %v1794, %v1795
  %v1797 = vrot.slane %v1796, 2
  %v1798 = vadd.f32 %v1796, %v1797
  %v1799 = vrot.slane %v1798, 1
  %v1800 = vadd.f32 %v1798, %v1799
  %v1801 = vsel %vm240, %v1749, 0.0
  %v1802 = vrot.slane %v1801, 4
  %v1803 = vadd.f32 %v1801, %v1802
  %v1804 = vrot.slane %v1803, 2
  %v1805 = vadd.f32 %v1803, %v1804
  %v1806 = vrot.slane %v1805, 1
  %v1807 = vadd.f32 %v1805, %v1806
  %v1808 = vsel %vm240, %v1750, 0.0
  %v1809 = vrot.slane %v1808, 4
  %v1810 = vadd.f32 %v1808, %v1809
  %v1811 = vrot.slane %v1810, 2
  %v1812 = vadd.f32 %v1810, %v1811
  %v1813 = vrot.slane %v1812, 1
  %v1814 = vadd.f32 %v1812, %v1813
  %v1815 = vsel %vm240, %v1751, 0.0
  %v1816 = vrot.slane %v1815, 4
  %v1817 = vadd.f32 %v1815, %v1816
  %v1818 = vrot.slane %v1817, 2
  %v1819 = vadd.f32 %v1817, %v1818
  %v1820 = vrot.slane %v1819, 1
  %v1821 = vadd.f32 %v1819, %v1820
  %v1822 = vsel %vm240, %v1752, 0.0
  %v1823 = vrot.slane %v1822, 4
  %v1824 = vadd.f32 %v1822, %v1823
  %v1825 = vrot.slane %v1824, 2
  %v1826 = vadd.f32 %v1824, %v1825
  %v1827 = vrot.slane %v1826, 1
  %v1828 = vadd.f32 %v1826, %v1827
  %v1829 = vsel %vm240, %v1753, 0.0
  %v1830 = vrot.slane %v1829, 4
  %v1831 = vadd.f32 %v1829, %v1830
  %v1832 = vrot.slane %v1831, 2
  %v1833 = vadd.f32 %v1831, %v1832
  %v1834 = vrot.slane %v1833, 1
  %v1835 = vadd.f32 %v1833, %v1834
  %v1836 = vsel %vm240, %v1754, 0.0
  %v1837 = vrot.slane %v1836, 4
  %v1838 = vadd.f32 %v1836, %v1837
  %v1839 = vrot.slane %v1838, 2
  %v1840 = vadd.f32 %v1838, %v1839
  %v1841 = vrot.slane %v1840, 1
  %v1842 = vadd.f32 %v1840, %v1841
  %v1843 = vsel %vm240, %v1755, 0.0
  %v1844 = vrot.slane %v1843, 4
  %v1845 = vadd.f32 %v1843, %v1844
  %v1846 = vrot.slane %v1845, 2
  %v1847 = vadd.f32 %v1845, %v1846
  %v1848 = vrot.slane %v1847, 1
  %v1849 = vadd.f32 %v1847, %v1848
  %v1850 = vsel %vm240, %v1756, 0.0
  %v1851 = vrot.slane %v1850, 4
  %v1852 = vadd.f32 %v1850, %v1851
  %v1853 = vrot.slane %v1852, 2
  %v1854 = vadd.f32 %v1852, %v1853
  %v1855 = vrot.slane %v1854, 1
  %v1856 = vadd.f32 %v1854, %v1855
  %v1857 = vsel %vm240, %v1757, 0.0
  %v1858 = vrot.slane %v1857, 4
  %v1859 = vadd.f32 %v1857, %v1858
  %v1860 = vrot.slane %v1859, 2
  %v1861 = vadd.f32 %v1859, %v1860
  %v1862 = vrot.slane %v1861, 1
  %v1863 = vadd.f32 %v1861, %v1862
  %v1864 = vsel %vm240, %v1758, 0.0
  %v1865 = vrot.slane %v1864, 4
  %v1866 = vadd.f32 %v1864, %v1865
  %v1867 = vrot.slane %v1866, 2
  %v1868 = vadd.f32 %v1866, %v1867
  %v1869 = vrot.slane %v1868, 1
  %v1870 = vadd.f32 %v1868, %v1869
  %v1871 = vlaneseq
  %v1872 = vshrl.u32 %v1871, 7
  %v1873 = vsub.s32 0, %v1872
  %v1874 = vrot.slane %v1101, %v1873
  %1876 = vbcast.lane.b32.xlu0 %v1874, 256
  %v1877 = vpop.permute.xlu0 %1876
  %v1878 = vlaneseq
  %v1879 = vshrl.u32 %v1878, 7
  %v1880 = vsub.s32 1, %v1879
  %v1881 = vrot.slane %v1101, %v1880
  %1883 = vbcast.lane.b32.xlu0 %v1881, 256
  %v1884 = vpop.permute.xlu0 %1883
  %v1885 = vlaneseq
  %v1886 = vshrl.u32 %v1885, 7
  %v1887 = vsub.s32 2, %v1886
  %v1888 = vrot.slane %v1101, %v1887
  %1890 = vbcast.lane.b32.xlu0 %v1888, 256
  %v1891 = vpop.permute.xlu0 %1890
  %v1892 = vlaneseq
  %v1893 = vshrl.u32 %v1892, 7
  %v1894 = vsub.s32 3, %v1893
  %v1895 = vrot.slane %v1101, %v1894
  %1897 = vbcast.lane.b32.xlu0 %v1895, 256
  %v1898 = vpop.permute.xlu0 %1897
  %v1899 = vlaneseq
  %v1900 = vshrl.u32 %v1899, 7
  %v1901 = vsub.s32 4, %v1900
  %v1902 = vrot.slane %v1101, %v1901
  %1904 = vbcast.lane.b32.xlu0 %v1902, 256
  %v1905 = vpop.permute.xlu0 %1904
  %v1906 = vlaneseq
  %v1907 = vshrl.u32 %v1906, 7
  %v1908 = vsub.s32 5, %v1907
  %v1909 = vrot.slane %v1101, %v1908
  %1911 = vbcast.lane.b32.xlu0 %v1909, 256
  %v1912 = vpop.permute.xlu0 %1911
  %v1913 = vlaneseq
  %v1914 = vshrl.u32 %v1913, 7
  %v1915 = vsub.s32 6, %v1914
  %v1916 = vrot.slane %v1101, %v1915
  %1918 = vbcast.lane.b32.xlu0 %v1916, 256
  %v1919 = vpop.permute.xlu0 %1918
  %v1920 = vlaneseq
  %v1921 = vshrl.u32 %v1920, 7
  %v1922 = vsub.s32 7, %v1921
  %v1923 = vrot.slane %v1101, %v1922
  %1925 = vbcast.lane.b32.xlu0 %v1923, 256
  %v1926 = vpop.permute.xlu0 %1925
  %v1927 = vlaneseq
  %v1928 = vshrl.u32 %v1927, 7
  %v1929 = vsub.s32 0, %v1928
  %v1930 = vrot.slane %v1102, %v1929
  %1932 = vbcast.lane.b32.xlu0 %v1930, 256
  %v1933 = vpop.permute.xlu0 %1932
  %v1934 = vlaneseq
  %v1935 = vshrl.u32 %v1934, 7
  %v1936 = vsub.s32 1, %v1935
  %v1937 = vrot.slane %v1102, %v1936
  %1939 = vbcast.lane.b32.xlu0 %v1937, 256
  %v1940 = vpop.permute.xlu0 %1939
  %v1941 = vlaneseq
  %v1942 = vshrl.u32 %v1941, 7
  %v1943 = vsub.s32 2, %v1942
  %v1944 = vrot.slane %v1102, %v1943
  %1946 = vbcast.lane.b32.xlu0 %v1944, 256
  %v1947 = vpop.permute.xlu0 %1946
  %v1948 = vlaneseq
  %v1949 = vshrl.u32 %v1948, 7
  %v1950 = vsub.s32 3, %v1949
  %v1951 = vrot.slane %v1102, %v1950
  %1953 = vbcast.lane.b32.xlu0 %v1951, 256
  %v1954 = vpop.permute.xlu0 %1953
  %v1955 = vlaneseq
  %v1956 = vshrl.u32 %v1955, 7
  %v1957 = vsub.s32 4, %v1956
  %v1958 = vrot.slane %v1102, %v1957
  %1960 = vbcast.lane.b32.xlu0 %v1958, 256
  %v1961 = vpop.permute.xlu0 %1960
  %v1962 = vlaneseq
  %v1963 = vshrl.u32 %v1962, 7
  %v1964 = vsub.s32 5, %v1963
  %v1965 = vrot.slane %v1102, %v1964
  %1967 = vbcast.lane.b32.xlu0 %v1965, 256
  %v1968 = vpop.permute.xlu0 %1967
  %v1969 = vlaneseq
  %v1970 = vshrl.u32 %v1969, 7
  %v1971 = vsub.s32 6, %v1970
  %v1972 = vrot.slane %v1102, %v1971
  %1974 = vbcast.lane.b32.xlu0 %v1972, 256
  %v1975 = vpop.permute.xlu0 %1974
  %v1976 = vlaneseq
  %v1977 = vshrl.u32 %v1976, 7
  %v1978 = vsub.s32 7, %v1977
  %v1979 = vrot.slane %v1102, %v1978
  %1981 = vbcast.lane.b32.xlu0 %v1979, 256
  %v1982 = vpop.permute.xlu0 %1981
  %v1983 = vmul.f32 %v1877, %v26
  %v1984 = vmul.f32 %v1884, %v27
  %v1985 = vmul.f32 %v1891, %v28
  %v1986 = vmul.f32 %v1898, %v29
  %v1987 = vmul.f32 %v1905, %v30
  %v1988 = vmul.f32 %v1912, %v31
  %v1989 = vmul.f32 %v1919, %v32
  %v1990 = vmul.f32 %v1926, %v33
  %v1991 = vmul.f32 %v1933, %v34
  %v1992 = vmul.f32 %v1940, %v35
  %v1993 = vmul.f32 %v1947, %v36
  %v1994 = vmul.f32 %v1954, %v37
  %v1995 = vmul.f32 %v1961, %v38
  %v1996 = vmul.f32 %v1968, %v39
  %v1997 = vmul.f32 %v1975, %v40
  %v1998 = vmul.f32 %v1982, %v41
  %v1999 = vsel %vm240, %v1983, 0.0
  %v2000 = vrot.slane %v1999, 4
  %v2001 = vadd.f32 %v1999, %v2000
  %v2002 = vrot.slane %v2001, 2
  %v2003 = vadd.f32 %v2001, %v2002
  %v2004 = vrot.slane %v2003, 1
  %v2005 = vadd.f32 %v2003, %v2004
  %v2006 = vsel %vm240, %v1984, 0.0
  %v2007 = vrot.slane %v2006, 4
  %v2008 = vadd.f32 %v2006, %v2007
  %v2009 = vrot.slane %v2008, 2
  %v2010 = vadd.f32 %v2008, %v2009
  %v2011 = vrot.slane %v2010, 1
  %v2012 = vadd.f32 %v2010, %v2011
  %v2013 = vsel %vm240, %v1985, 0.0
  %v2014 = vrot.slane %v2013, 4
  %v2015 = vadd.f32 %v2013, %v2014
  %v2016 = vrot.slane %v2015, 2
  %v2017 = vadd.f32 %v2015, %v2016
  %v2018 = vrot.slane %v2017, 1
  %v2019 = vadd.f32 %v2017, %v2018
  %v2020 = vsel %vm240, %v1986, 0.0
  %v2021 = vrot.slane %v2020, 4
  %v2022 = vadd.f32 %v2020, %v2021
  %v2023 = vrot.slane %v2022, 2
  %v2024 = vadd.f32 %v2022, %v2023
  %v2025 = vrot.slane %v2024, 1
  %v2026 = vadd.f32 %v2024, %v2025
  %v2027 = vsel %vm240, %v1987, 0.0
  %v2028 = vrot.slane %v2027, 4
  %v2029 = vadd.f32 %v2027, %v2028
  %v2030 = vrot.slane %v2029, 2
  %v2031 = vadd.f32 %v2029, %v2030
  %v2032 = vrot.slane %v2031, 1
  %v2033 = vadd.f32 %v2031, %v2032
  %v2034 = vsel %vm240, %v1988, 0.0
  %v2035 = vrot.slane %v2034, 4
  %v2036 = vadd.f32 %v2034, %v2035
  %v2037 = vrot.slane %v2036, 2
  %v2038 = vadd.f32 %v2036, %v2037
  %v2039 = vrot.slane %v2038, 1
  %v2040 = vadd.f32 %v2038, %v2039
  %v2041 = vsel %vm240, %v1989, 0.0
  %v2042 = vrot.slane %v2041, 4
  %v2043 = vadd.f32 %v2041, %v2042
  %v2044 = vrot.slane %v2043, 2
  %v2045 = vadd.f32 %v2043, %v2044
  %v2046 = vrot.slane %v2045, 1
  %v2047 = vadd.f32 %v2045, %v2046
  %v2048 = vsel %vm240, %v1990, 0.0
  %v2049 = vrot.slane %v2048, 4
  %v2050 = vadd.f32 %v2048, %v2049
  %v2051 = vrot.slane %v2050, 2
  %v2052 = vadd.f32 %v2050, %v2051
  %v2053 = vrot.slane %v2052, 1
  %v2054 = vadd.f32 %v2052, %v2053
  %v2055 = vsel %vm240, %v1991, 0.0
  %v2056 = vrot.slane %v2055, 4
  %v2057 = vadd.f32 %v2055, %v2056
  %v2058 = vrot.slane %v2057, 2
  %v2059 = vadd.f32 %v2057, %v2058
  %v2060 = vrot.slane %v2059, 1
  %v2061 = vadd.f32 %v2059, %v2060
  %v2062 = vsel %vm240, %v1992, 0.0
  %v2063 = vrot.slane %v2062, 4
  %v2064 = vadd.f32 %v2062, %v2063
  %v2065 = vrot.slane %v2064, 2
  %v2066 = vadd.f32 %v2064, %v2065
  %v2067 = vrot.slane %v2066, 1
  %v2068 = vadd.f32 %v2066, %v2067
  %v2069 = vsel %vm240, %v1993, 0.0
  %v2070 = vrot.slane %v2069, 4
  %v2071 = vadd.f32 %v2069, %v2070
  %v2072 = vrot.slane %v2071, 2
  %v2073 = vadd.f32 %v2071, %v2072
  %v2074 = vrot.slane %v2073, 1
  %v2075 = vadd.f32 %v2073, %v2074
  %v2076 = vsel %vm240, %v1994, 0.0
  %v2077 = vrot.slane %v2076, 4
  %v2078 = vadd.f32 %v2076, %v2077
  %v2079 = vrot.slane %v2078, 2
  %v2080 = vadd.f32 %v2078, %v2079
  %v2081 = vrot.slane %v2080, 1
  %v2082 = vadd.f32 %v2080, %v2081
  %v2083 = vsel %vm240, %v1995, 0.0
  %v2084 = vrot.slane %v2083, 4
  %v2085 = vadd.f32 %v2083, %v2084
  %v2086 = vrot.slane %v2085, 2
  %v2087 = vadd.f32 %v2085, %v2086
  %v2088 = vrot.slane %v2087, 1
  %v2089 = vadd.f32 %v2087, %v2088
  %v2090 = vsel %vm240, %v1996, 0.0
  %v2091 = vrot.slane %v2090, 4
  %v2092 = vadd.f32 %v2090, %v2091
  %v2093 = vrot.slane %v2092, 2
  %v2094 = vadd.f32 %v2092, %v2093
  %v2095 = vrot.slane %v2094, 1
  %v2096 = vadd.f32 %v2094, %v2095
  %v2097 = vsel %vm240, %v1997, 0.0
  %v2098 = vrot.slane %v2097, 4
  %v2099 = vadd.f32 %v2097, %v2098
  %v2100 = vrot.slane %v2099, 2
  %v2101 = vadd.f32 %v2099, %v2100
  %v2102 = vrot.slane %v2101, 1
  %v2103 = vadd.f32 %v2101, %v2102
  %v2104 = vsel %vm240, %v1998, 0.0
  %v2105 = vrot.slane %v2104, 4
  %v2106 = vadd.f32 %v2104, %v2105
  %v2107 = vrot.slane %v2106, 2
  %v2108 = vadd.f32 %v2106, %v2107
  %v2109 = vrot.slane %v2108, 1
  %v2110 = vadd.f32 %v2108, %v2109
  %v2111 = vpack.c.bf16 %v43, %v42
  %v2113 = vlaneseq
  %v2114 = vshrl.u32 %v2113, 7
  %v2115 = vsub.s32 0, %v2114
  %v2116 = vrot.slane %v1149, %v2115
  %v2117 = vlaneseq
  %v2118 = vshrl.u32 %v2117, 7
  %v2119 = vsub.s32 1, %v2118
  %v2120 = vrot.slane %v1149, %v2119
  %v2131 = vunpack.c.l.b16 %v1109
  %v2132 = vunpack.c.h.b16 %v1109
  %v2133 = vunpack.c.l.b16 %v1110
  %v2134 = vunpack.c.h.b16 %v1110
  %v2135 = vunpack.c.l.b16 %v1111
  %v2136 = vunpack.c.h.b16 %v1111
  %v2137 = vunpack.c.l.b16 %v1112
  %v2138 = vunpack.c.h.b16 %v1112
  %v2139 = vunpack.c.l.b16 %v1113
  %v2140 = vunpack.c.h.b16 %v1113
  %v2141 = vunpack.c.l.b16 %v1114
  %v2142 = vunpack.c.h.b16 %v1114
  %v2143 = vunpack.c.l.b16 %v1115
  %v2144 = vunpack.c.h.b16 %v1115
  %v2145 = vunpack.c.l.b16 %v1116
  %v2146 = vunpack.c.h.b16 %v1116
  %v2147 = vpack.c.b16 %v2133, %v2131
  %v2148 = vpack.c.b16 %v2134, %v2132
  %v2149 = vpack.c.b16 %v2137, %v2135
  %v2150 = vpack.c.b16 %v2138, %v2136
  %v2151 = vpack.c.b16 %v2141, %v2139
  %v2152 = vpack.c.b16 %v2142, %v2140
  %v2153 = vpack.c.b16 %v2145, %v2143
  %v2154 = vpack.c.b16 %v2146, %v2144
  %v2164 = vsel %vm240, %v2111, 0
  %2166 = vmatprep.subr.bf16.mxu0 %v2148
  %2167 = vmatpush1.bf16.msra.mxu0 %v2147
  %2168 = vmatprep.subr.bf16.mxu0 %v2150
  %2169 = vmatpush1.bf16.msra.mxu0 %v2149
  %2170 = vmatprep.subr.bf16.mxu0 %v2152
  %2171 = vmatpush1.bf16.msra.mxu0 %v2151
  %2172 = vmatprep.subr.bf16.mxu0 %v2154
  %2173 = vmatpush1.bf16.msra.mxu0 %v2153
  %2174 = vmatprep.subr.bf16.mxu0 0
  %2175 = vmatpush1.bf16.msra.mxu0 0
  %2176 = vmatprep.subr.bf16.mxu0 0
  %2177 = vmatpush1.bf16.msra.mxu0 0
  %2178 = vmatprep.subr.bf16.mxu0 0
  %2179 = vmatpush1.bf16.msra.mxu0 0
  %2180 = vmatprep.subr.bf16.mxu0 0
  %2181 = vmatpush1.bf16.msra.mxu0 0
  %2182 = vmatprep.subr.bf16.mxu0 0
  %2183 = vmatpush1.bf16.msra.mxu0 0
  %2184 = vmatprep.subr.bf16.mxu0 0
  %2185 = vmatpush1.bf16.msra.mxu0 0
  %2186 = vmatprep.subr.bf16.mxu0 0
  %2187 = vmatpush1.bf16.msra.mxu0 0
  %2188 = vmatprep.subr.bf16.mxu0 0
  %2189 = vmatpush1.bf16.msra.mxu0 0
  %2190 = vmatprep.subr.bf16.mxu0 0
  %2191 = vmatpush1.bf16.msra.mxu0 0
  %2192 = vmatprep.subr.bf16.mxu0 0
  %2193 = vmatpush1.bf16.msra.mxu0 0
  %2194 = vmatprep.subr.bf16.mxu0 0
  %2195 = vmatpush1.bf16.msra.mxu0 0
  %2196 = vmatprep.subr.bf16.mxu0 0
  %2197 = vmatpush1.bf16.msra.mxu0 0
  %2198 = vmatprep.mubr.bf16.mxu0 0
  %2199 = vmatmul.mubr.bf16.gmra.mrb[0].mxu0 %v2164
  %v2200 = vpop.f32.mrb[0].mxu0
  %v2201 = vadd.f32 %v2116, %v2200
  %v2202 = vpop.f32.mrb[0].mxu0
  %v2203 = vadd.f32 %v2120, %v2202
  %v2204 = vpop.f32.mrb[0].mxu0
  %v2205 = vadd.f32 %v2116, %v2204
  %v2206 = vpop.f32.mrb[0].mxu0
  %v2207 = vadd.f32 %v2120, %v2206
  %2208 = vdwg.mxu0
  %v2209 = vmax.f32 %v2201, 0.0
  %v2210 = vmax.f32 %v2203, 0.0
  %v2211 = vmax.f32 %v2205, 0.0
  %v2212 = vmax.f32 %v2207, 0.0
  %v2213 = vpack.c.bf16 %v2211, %v2209
  %v2214 = vpack.c.bf16 %v2212, %v2210
  %v2216 = vlaneseq
  %v2217 = vshrl.u32 %v2216, 7
  %v2218 = vsub.s32 0, %v2217
  %v2219 = vrot.slane %v1150, %v2218
  %v2220 = vlaneseq
  %v2221 = vshrl.u32 %v2220, 7
  %v2222 = vsub.s32 1, %v2221
  %v2223 = vrot.slane %v1150, %v2222
  %v2258 = vunpack.c.l.b16 %v1117
  %v2259 = vunpack.c.h.b16 %v1117
  %v2260 = vunpack.c.l.b16 %v1118
  %v2261 = vunpack.c.h.b16 %v1118
  %v2262 = vunpack.c.l.b16 %v1119
  %v2263 = vunpack.c.h.b16 %v1119
  %v2264 = vunpack.c.l.b16 %v1120
  %v2265 = vunpack.c.h.b16 %v1120
  %v2266 = vunpack.c.l.b16 %v1121
  %v2267 = vunpack.c.h.b16 %v1121
  %v2268 = vunpack.c.l.b16 %v1122
  %v2269 = vunpack.c.h.b16 %v1122
  %v2270 = vunpack.c.l.b16 %v1123
  %v2271 = vunpack.c.h.b16 %v1123
  %v2272 = vunpack.c.l.b16 %v1124
  %v2273 = vunpack.c.h.b16 %v1124
  %v2274 = vunpack.c.l.b16 %v1125
  %v2275 = vunpack.c.h.b16 %v1125
  %v2276 = vunpack.c.l.b16 %v1126
  %v2277 = vunpack.c.h.b16 %v1126
  %v2278 = vunpack.c.l.b16 %v1127
  %v2279 = vunpack.c.h.b16 %v1127
  %v2280 = vunpack.c.l.b16 %v1128
  %v2281 = vunpack.c.h.b16 %v1128
  %v2282 = vunpack.c.l.b16 %v1129
  %v2283 = vunpack.c.h.b16 %v1129
  %v2284 = vunpack.c.l.b16 %v1130
  %v2285 = vunpack.c.h.b16 %v1130
  %v2286 = vunpack.c.l.b16 %v1131
  %v2287 = vunpack.c.h.b16 %v1131
  %v2288 = vunpack.c.l.b16 %v1132
  %v2289 = vunpack.c.h.b16 %v1132
  %v2290 = vunpack.c.l.b16 %v1133
  %v2291 = vunpack.c.h.b16 %v1133
  %v2292 = vunpack.c.l.b16 %v1134
  %v2293 = vunpack.c.h.b16 %v1134
  %v2294 = vunpack.c.l.b16 %v1135
  %v2295 = vunpack.c.h.b16 %v1135
  %v2296 = vunpack.c.l.b16 %v1136
  %v2297 = vunpack.c.h.b16 %v1136
  %v2298 = vunpack.c.l.b16 %v1137
  %v2299 = vunpack.c.h.b16 %v1137
  %v2300 = vunpack.c.l.b16 %v1138
  %v2301 = vunpack.c.h.b16 %v1138
  %v2302 = vunpack.c.l.b16 %v1139
  %v2303 = vunpack.c.h.b16 %v1139
  %v2304 = vunpack.c.l.b16 %v1140
  %v2305 = vunpack.c.h.b16 %v1140
  %v2306 = vunpack.c.l.b16 %v1141
  %v2307 = vunpack.c.h.b16 %v1141
  %v2308 = vunpack.c.l.b16 %v1142
  %v2309 = vunpack.c.h.b16 %v1142
  %v2310 = vunpack.c.l.b16 %v1143
  %v2311 = vunpack.c.h.b16 %v1143
  %v2312 = vunpack.c.l.b16 %v1144
  %v2313 = vunpack.c.h.b16 %v1144
  %v2314 = vunpack.c.l.b16 %v1145
  %v2315 = vunpack.c.h.b16 %v1145
  %v2316 = vunpack.c.l.b16 %v1146
  %v2317 = vunpack.c.h.b16 %v1146
  %v2318 = vunpack.c.l.b16 %v1147
  %v2319 = vunpack.c.h.b16 %v1147
  %v2320 = vunpack.c.l.b16 %v1148
  %v2321 = vunpack.c.h.b16 %v1148
  %v2322 = vpack.c.b16 %v2260, %v2258
  %v2323 = vpack.c.b16 %v2261, %v2259
  %v2324 = vpack.c.b16 %v2264, %v2262
  %v2325 = vpack.c.b16 %v2265, %v2263
  %v2326 = vpack.c.b16 %v2268, %v2266
  %v2327 = vpack.c.b16 %v2269, %v2267
  %v2328 = vpack.c.b16 %v2272, %v2270
  %v2329 = vpack.c.b16 %v2273, %v2271
  %v2330 = vpack.c.b16 %v2276, %v2274
  %v2331 = vpack.c.b16 %v2277, %v2275
  %v2332 = vpack.c.b16 %v2280, %v2278
  %v2333 = vpack.c.b16 %v2281, %v2279
  %v2334 = vpack.c.b16 %v2284, %v2282
  %v2335 = vpack.c.b16 %v2285, %v2283
  %v2336 = vpack.c.b16 %v2288, %v2286
  %v2337 = vpack.c.b16 %v2289, %v2287
  %v2338 = vpack.c.b16 %v2292, %v2290
  %v2339 = vpack.c.b16 %v2293, %v2291
  %v2340 = vpack.c.b16 %v2296, %v2294
  %v2341 = vpack.c.b16 %v2297, %v2295
  %v2342 = vpack.c.b16 %v2300, %v2298
  %v2343 = vpack.c.b16 %v2301, %v2299
  %v2344 = vpack.c.b16 %v2304, %v2302
  %v2345 = vpack.c.b16 %v2305, %v2303
  %v2346 = vpack.c.b16 %v2308, %v2306
  %v2347 = vpack.c.b16 %v2309, %v2307
  %v2348 = vpack.c.b16 %v2312, %v2310
  %v2349 = vpack.c.b16 %v2313, %v2311
  %v2350 = vpack.c.b16 %v2316, %v2314
  %v2351 = vpack.c.b16 %v2317, %v2315
  %v2352 = vpack.c.b16 %v2320, %v2318
  %v2353 = vpack.c.b16 %v2321, %v2319
  %2386 = vmatprep.subr.bf16.mxu0 %v2323
  %2387 = vmatpush1.bf16.msra.mxu0 %v2322
  %2388 = vmatprep.subr.bf16.mxu0 %v2325
  %2389 = vmatpush1.bf16.msra.mxu0 %v2324
  %2390 = vmatprep.subr.bf16.mxu0 %v2327
  %2391 = vmatpush1.bf16.msra.mxu0 %v2326
  %2392 = vmatprep.subr.bf16.mxu0 %v2329
  %2393 = vmatpush1.bf16.msra.mxu0 %v2328
  %2394 = vmatprep.subr.bf16.mxu0 %v2331
  %2395 = vmatpush1.bf16.msra.mxu0 %v2330
  %2396 = vmatprep.subr.bf16.mxu0 %v2333
  %2397 = vmatpush1.bf16.msra.mxu0 %v2332
  %2398 = vmatprep.subr.bf16.mxu0 %v2335
  %2399 = vmatpush1.bf16.msra.mxu0 %v2334
  %2400 = vmatprep.subr.bf16.mxu0 %v2337
  %2401 = vmatpush1.bf16.msra.mxu0 %v2336
  %2402 = vmatprep.subr.bf16.mxu0 %v2339
  %2403 = vmatpush1.bf16.msra.mxu0 %v2338
  %2404 = vmatprep.subr.bf16.mxu0 %v2341
  %2405 = vmatpush1.bf16.msra.mxu0 %v2340
  %2406 = vmatprep.subr.bf16.mxu0 %v2343
  %2407 = vmatpush1.bf16.msra.mxu0 %v2342
  %2408 = vmatprep.subr.bf16.mxu0 %v2345
  %2409 = vmatpush1.bf16.msra.mxu0 %v2344
  %2410 = vmatprep.subr.bf16.mxu0 %v2347
  %2411 = vmatpush1.bf16.msra.mxu0 %v2346
  %2412 = vmatprep.subr.bf16.mxu0 %v2349
  %2413 = vmatpush1.bf16.msra.mxu0 %v2348
  %2414 = vmatprep.subr.bf16.mxu0 %v2351
  %2415 = vmatpush1.bf16.msra.mxu0 %v2350
  %2416 = vmatprep.subr.bf16.mxu0 %v2353
  %2417 = vmatpush1.bf16.msra.mxu0 %v2352
  %2418 = vmatprep.mubr.bf16.mxu0 %v2214
  %2419 = vmatmul.mubr.bf16.gmra.mrb[0].mxu0 %v2213
  %v2420 = vpop.f32.mrb[0].mxu0
  %v2421 = vadd.f32 %v2219, %v2420
  %v2422 = vpop.f32.mrb[0].mxu0
  %v2423 = vadd.f32 %v2223, %v2422
  %v2424 = vpop.f32.mrb[0].mxu0
  %v2425 = vadd.f32 %v2219, %v2424
  %v2426 = vpop.f32.mrb[0].mxu0
  %v2427 = vadd.f32 %v2223, %v2426
  %2428 = vdwg.mxu0
  %v2429 = vmul.f32 %v2421, %v2421
  %v2430 = vmul.f32 %v2423, %v2423
  %v2431 = vmul.f32 %v2425, %v2425
  %v2432 = vmul.f32 %v2427, %v2427
  %v2433 = vadd.f32 %v2429, %v2430
  %2434 = vadd.xlane.f32.xlu0 %v2433
  %v2435 = vpop.xlane.xlu0 %2434
  %v2436 = vadd.f32 %v2431, %v2432
  %2437 = vadd.xlane.f32.xlu0 %v2436
  %v2438 = vpop.xlane.xlu0 %2437
  %v2439 = vrsqrt.pop %v2435
  %v2440 = vmul.f32 %v2435, %v2439
  %vm2441 = vcmp.eq.f32.partialorder %v2435, inf
  %v2442 = vsel %vm2441, %v2435, %v2440
  %vm2443 = vcmp.eq.f32.partialorder %v2435, 0.0
  %v2444 = vand.u32 %v2435, 2147483648
  %v2445 = vsel %vm2443, %v2444, %v2442
  %v2446 = vrsqrt.pop %v2438
  %v2447 = vmul.f32 %v2438, %v2446
  %vm2448 = vcmp.eq.f32.partialorder %v2438, inf
  %v2449 = vsel %vm2448, %v2438, %v2447
  %vm2450 = vcmp.eq.f32.partialorder %v2438, 0.0
  %v2451 = vand.u32 %v2438, 2147483648
  %v2452 = vsel %vm2450, %v2451, %v2449
  %v2453 = vadd.f32 %v2445, 1e-07
  %v2454 = vadd.f32 %v2452, 1e-07
  %v2455 = vrcp.pop %v2453
  %v2456 = vrcp.pop %v2454
  %v2457 = vmul.f32 %v2421, %v2455
  %v2458 = vmul.f32 %v2423, %v2455
  %v2459 = vmul.f32 %v2425, %v2456
  %v2460 = vmul.f32 %v2427, %v2456
  %2461 = vst [vmem:[%s6] sm:$0xff] %v2457
  %2462 = vst [vmem:[%s6 + $0x8] sm:$0xff] %v2458
  %2463 = vst [vmem:[%s6 + $0x50] sm:$0xff] %v2459
  %2464 = vst [vmem:[%s6 + $0x58] sm:$0xff] %v2460
  %v2465 = vpack.c.bf16 %v1285, %v1285
  %v2466 = vpack.c.bf16 %v1292, %v1292
  %v2467 = vpack.c.bf16 %v1299, %v1299
  %v2468 = vpack.c.bf16 %v1306, %v1306
  %v2469 = vpack.c.bf16 %v1313, %v1313
  %v2470 = vpack.c.bf16 %v1320, %v1320
  %v2471 = vpack.c.bf16 %v1327, %v1327
  %v2472 = vpack.c.bf16 %v1334, %v1334
  %v2473 = vpack.c.bf16 %v1341, %v1341
  %v2474 = vpack.c.bf16 %v1348, %v1348
  %v2475 = vpack.c.bf16 %v1355, %v1355
  %v2476 = vpack.c.bf16 %v1362, %v1362
  %v2477 = vpack.c.bf16 %v1369, %v1369
  %v2478 = vpack.c.bf16 %v1376, %v1376
  %v2479 = vpack.c.bf16 %v1383, %v1383
  %v2480 = vpack.c.bf16 %v1390, %v1390
  %v2497 = vunpack.c.l.b16 %v2465
  %v2498 = vunpack.c.l.b16 %v2466
  %v2499 = vunpack.c.l.b16 %v2467
  %v2500 = vunpack.c.l.b16 %v2468
  %v2501 = vunpack.c.l.b16 %v2469
  %v2502 = vunpack.c.l.b16 %v2470
  %v2503 = vunpack.c.l.b16 %v2471
  %v2504 = vunpack.c.l.b16 %v2472
  %v2505 = vunpack.c.l.b16 %v2473
  %v2506 = vunpack.c.l.b16 %v2474
  %v2507 = vunpack.c.l.b16 %v2475
  %v2508 = vunpack.c.l.b16 %v2476
  %v2509 = vunpack.c.l.b16 %v2477
  %v2510 = vunpack.c.l.b16 %v2478
  %v2511 = vunpack.c.l.b16 %v2479
  %v2512 = vunpack.c.l.b16 %v2480
  %v2513 = vsel %vm641, %v2498, %v2497
  %v2514 = vsel %vm643, %v2499, %v2513
  %v2515 = vsel %vm645, %v2500, %v2514
  %v2516 = vsel %vm647, %v2501, %v2515
  %v2517 = vsel %vm649, %v2502, %v2516
  %v2518 = vsel %vm651, %v2503, %v2517
  %v2519 = vsel %vm653, %v2504, %v2518
  %v2520 = vsel %vm641, %v2506, %v2505
  %v2521 = vsel %vm643, %v2507, %v2520
  %v2522 = vsel %vm645, %v2508, %v2521
  %v2523 = vsel %vm647, %v2509, %v2522
  %v2524 = vsel %vm649, %v2510, %v2523
  %v2525 = vsel %vm651, %v2511, %v2524
  %v2526 = vsel %vm653, %v2512, %v2525
  %v2527 = vpack.c.b16 %v2526, %v2519
  %v2529 = vsel %vm240, %v2527, 0
  %2531 = vmatprep.subr.bf16.mxu0 %v2148
  %2532 = vmatpush1.bf16.msra.mxu0 %v2147
  %2533 = vmatprep.subr.bf16.mxu0 %v2150
  %2534 = vmatpush1.bf16.msra.mxu0 %v2149
  %2535 = vmatprep.subr.bf16.mxu0 %v2152
  %2536 = vmatpush1.bf16.msra.mxu0 %v2151
  %2537 = vmatprep.subr.bf16.mxu0 %v2154
  %2538 = vmatpush1.bf16.msra.mxu0 %v2153
  %2539 = vmatprep.subr.bf16.mxu0 0
  %2540 = vmatpush1.bf16.msra.mxu0 0
  %2541 = vmatprep.subr.bf16.mxu0 0
  %2542 = vmatpush1.bf16.msra.mxu0 0
  %2543 = vmatprep.subr.bf16.mxu0 0
  %2544 = vmatpush1.bf16.msra.mxu0 0
  %2545 = vmatprep.subr.bf16.mxu0 0
  %2546 = vmatpush1.bf16.msra.mxu0 0
  %2547 = vmatprep.subr.bf16.mxu0 0
  %2548 = vmatpush1.bf16.msra.mxu0 0
  %2549 = vmatprep.subr.bf16.mxu0 0
  %2550 = vmatpush1.bf16.msra.mxu0 0
  %2551 = vmatprep.subr.bf16.mxu0 0
  %2552 = vmatpush1.bf16.msra.mxu0 0
  %2553 = vmatprep.subr.bf16.mxu0 0
  %2554 = vmatpush1.bf16.msra.mxu0 0
  %2555 = vmatprep.subr.bf16.mxu0 0
  %2556 = vmatpush1.bf16.msra.mxu0 0
  %2557 = vmatprep.subr.bf16.mxu0 0
  %2558 = vmatpush1.bf16.msra.mxu0 0
  %2559 = vmatprep.subr.bf16.mxu0 0
  %2560 = vmatpush1.bf16.msra.mxu0 0
  %2561 = vmatprep.subr.bf16.mxu0 0
  %2562 = vmatpush1.bf16.msra.mxu0 0
  %2563 = vmatprep.mubr.bf16.mxu0 0
  %2564 = vmatmul.mubr.bf16.gmra.mrb[0].mxu0 %v2529
  %v2565 = vpop.f32.mrb[0].mxu0
  %v2566 = vadd.f32 %v2116, %v2565
  %v2567 = vpop.f32.mrb[0].mxu0
  %v2568 = vadd.f32 %v2120, %v2567
  %v2569 = vpop.f32.mrb[0].mxu0
  %v2570 = vadd.f32 %v2116, %v2569
  %v2571 = vpop.f32.mrb[0].mxu0
  %v2572 = vadd.f32 %v2120, %v2571
  %2573 = vdwg.mxu0
  %v2574 = vmax.f32 %v2566, 0.0
  %v2575 = vmax.f32 %v2568, 0.0
  %v2576 = vmax.f32 %v2570, 0.0
  %v2577 = vmax.f32 %v2572, 0.0
  %v2578 = vpack.c.bf16 %v2576, %v2574
  %v2579 = vpack.c.bf16 %v2577, %v2575
  %2580 = vmatprep.subr.bf16.mxu0 %v2323
  %2581 = vmatpush1.bf16.msra.mxu0 %v2322
  %2582 = vmatprep.subr.bf16.mxu0 %v2325
  %2583 = vmatpush1.bf16.msra.mxu0 %v2324
  %2584 = vmatprep.subr.bf16.mxu0 %v2327
  %2585 = vmatpush1.bf16.msra.mxu0 %v2326
  %2586 = vmatprep.subr.bf16.mxu0 %v2329
  %2587 = vmatpush1.bf16.msra.mxu0 %v2328
  %2588 = vmatprep.subr.bf16.mxu0 %v2331
  %2589 = vmatpush1.bf16.msra.mxu0 %v2330
  %2590 = vmatprep.subr.bf16.mxu0 %v2333
  %2591 = vmatpush1.bf16.msra.mxu0 %v2332
  %2592 = vmatprep.subr.bf16.mxu0 %v2335
  %2593 = vmatpush1.bf16.msra.mxu0 %v2334
  %2594 = vmatprep.subr.bf16.mxu0 %v2337
  %2595 = vmatpush1.bf16.msra.mxu0 %v2336
  %2596 = vmatprep.subr.bf16.mxu0 %v2339
  %2597 = vmatpush1.bf16.msra.mxu0 %v2338
  %2598 = vmatprep.subr.bf16.mxu0 %v2341
  %2599 = vmatpush1.bf16.msra.mxu0 %v2340
  %2600 = vmatprep.subr.bf16.mxu0 %v2343
  %2601 = vmatpush1.bf16.msra.mxu0 %v2342
  %2602 = vmatprep.subr.bf16.mxu0 %v2345
  %2603 = vmatpush1.bf16.msra.mxu0 %v2344
  %2604 = vmatprep.subr.bf16.mxu0 %v2347
  %2605 = vmatpush1.bf16.msra.mxu0 %v2346
  %2606 = vmatprep.subr.bf16.mxu0 %v2349
  %2607 = vmatpush1.bf16.msra.mxu0 %v2348
  %2608 = vmatprep.subr.bf16.mxu0 %v2351
  %2609 = vmatpush1.bf16.msra.mxu0 %v2350
  %2610 = vmatprep.subr.bf16.mxu0 %v2353
  %2611 = vmatpush1.bf16.msra.mxu0 %v2352
  %2612 = vmatprep.mubr.bf16.mxu0 %v2579
  %2613 = vmatmul.mubr.bf16.gmra.mrb[0].mxu0 %v2578
  %v2614 = vpop.f32.mrb[0].mxu0
  %v2615 = vadd.f32 %v2219, %v2614
  %v2616 = vpop.f32.mrb[0].mxu0
  %v2617 = vadd.f32 %v2223, %v2616
  %v2618 = vpop.f32.mrb[0].mxu0
  %v2619 = vadd.f32 %v2219, %v2618
  %v2620 = vpop.f32.mrb[0].mxu0
  %v2621 = vadd.f32 %v2223, %v2620
  %2622 = vdwg.mxu0
  %v2623 = vmul.f32 %v2615, %v2615
  %v2624 = vmul.f32 %v2617, %v2617
  %v2625 = vmul.f32 %v2619, %v2619
  %v2626 = vmul.f32 %v2621, %v2621
  %v2627 = vadd.f32 %v2623, %v2624
  %2628 = vadd.xlane.f32.xlu0 %v2627
  %v2629 = vpop.xlane.xlu0 %2628
  %v2630 = vadd.f32 %v2625, %v2626
  %2631 = vadd.xlane.f32.xlu0 %v2630
  %v2632 = vpop.xlane.xlu0 %2631
  %v2633 = vrsqrt.pop %v2629
  %v2634 = vmul.f32 %v2629, %v2633
  %vm2635 = vcmp.eq.f32.partialorder %v2629, inf
  %v2636 = vsel %vm2635, %v2629, %v2634
  %vm2637 = vcmp.eq.f32.partialorder %v2629, 0.0
  %v2638 = vand.u32 %v2629, 2147483648
  %v2639 = vsel %vm2637, %v2638, %v2636
  %v2640 = vrsqrt.pop %v2632
  %v2641 = vmul.f32 %v2632, %v2640
  %vm2642 = vcmp.eq.f32.partialorder %v2632, inf
  %v2643 = vsel %vm2642, %v2632, %v2641
  %vm2644 = vcmp.eq.f32.partialorder %v2632, 0.0
  %v2645 = vand.u32 %v2632, 2147483648
  %v2646 = vsel %vm2644, %v2645, %v2643
  %v2647 = vadd.f32 %v2639, 1e-07
  %v2648 = vadd.f32 %v2646, 1e-07
  %v2649 = vrcp.pop %v2647
  %v2650 = vrcp.pop %v2648
  %v2651 = vmul.f32 %v2615, %v2649
  %v2652 = vmul.f32 %v2617, %v2649
  %v2653 = vmul.f32 %v2619, %v2650
  %v2654 = vmul.f32 %v2621, %v2650
  %2655 = vst [vmem:[%s6 + $0x10] sm:$0xff] %v2651
  %2656 = vst [vmem:[%s6 + $0x18] sm:$0xff] %v2652
  %2657 = vst [vmem:[%s6 + $0x60] sm:$0xff] %v2653
  %2658 = vst [vmem:[%s6 + $0x68] sm:$0xff] %v2654
  %v2659 = vpack.c.bf16 %v1525, %v1525
  %v2660 = vpack.c.bf16 %v1532, %v1532
  %v2661 = vpack.c.bf16 %v1539, %v1539
  %v2662 = vpack.c.bf16 %v1546, %v1546
  %v2663 = vpack.c.bf16 %v1553, %v1553
  %v2664 = vpack.c.bf16 %v1560, %v1560
  %v2665 = vpack.c.bf16 %v1567, %v1567
  %v2666 = vpack.c.bf16 %v1574, %v1574
  %v2667 = vpack.c.bf16 %v1581, %v1581
  %v2668 = vpack.c.bf16 %v1588, %v1588
  %v2669 = vpack.c.bf16 %v1595, %v1595
  %v2670 = vpack.c.bf16 %v1602, %v1602
  %v2671 = vpack.c.bf16 %v1609, %v1609
  %v2672 = vpack.c.bf16 %v1616, %v1616
  %v2673 = vpack.c.bf16 %v1623, %v1623
  %v2674 = vpack.c.bf16 %v1630, %v1630
  %v2691 = vunpack.c.l.b16 %v2659
  %v2692 = vunpack.c.l.b16 %v2660
  %v2693 = vunpack.c.l.b16 %v2661
  %v2694 = vunpack.c.l.b16 %v2662
  %v2695 = vunpack.c.l.b16 %v2663
  %v2696 = vunpack.c.l.b16 %v2664
  %v2697 = vunpack.c.l.b16 %v2665
  %v2698 = vunpack.c.l.b16 %v2666
  %v2699 = vunpack.c.l.b16 %v2667
  %v2700 = vunpack.c.l.b16 %v2668
  %v2701 = vunpack.c.l.b16 %v2669
  %v2702 = vunpack.c.l.b16 %v2670
  %v2703 = vunpack.c.l.b16 %v2671
  %v2704 = vunpack.c.l.b16 %v2672
  %v2705 = vunpack.c.l.b16 %v2673
  %v2706 = vunpack.c.l.b16 %v2674
  %v2707 = vsel %vm641, %v2692, %v2691
  %v2708 = vsel %vm643, %v2693, %v2707
  %v2709 = vsel %vm645, %v2694, %v2708
  %v2710 = vsel %vm647, %v2695, %v2709
  %v2711 = vsel %vm649, %v2696, %v2710
  %v2712 = vsel %vm651, %v2697, %v2711
  %v2713 = vsel %vm653, %v2698, %v2712
  %v2714 = vsel %vm641, %v2700, %v2699
  %v2715 = vsel %vm643, %v2701, %v2714
  %v2716 = vsel %vm645, %v2702, %v2715
  %v2717 = vsel %vm647, %v2703, %v2716
  %v2718 = vsel %vm649, %v2704, %v2717
  %v2719 = vsel %vm651, %v2705, %v2718
  %v2720 = vsel %vm653, %v2706, %v2719
  %v2721 = vpack.c.b16 %v2720, %v2713
  %v2723 = vsel %vm240, %v2721, 0
  %2725 = vmatprep.subr.bf16.mxu0 %v2148
  %2726 = vmatpush1.bf16.msra.mxu0 %v2147
  %2727 = vmatprep.subr.bf16.mxu0 %v2150
  %2728 = vmatpush1.bf16.msra.mxu0 %v2149
  %2729 = vmatprep.subr.bf16.mxu0 %v2152
  %2730 = vmatpush1.bf16.msra.mxu0 %v2151
  %2731 = vmatprep.subr.bf16.mxu0 %v2154
  %2732 = vmatpush1.bf16.msra.mxu0 %v2153
  %2733 = vmatprep.subr.bf16.mxu0 0
  %2734 = vmatpush1.bf16.msra.mxu0 0
  %2735 = vmatprep.subr.bf16.mxu0 0
  %2736 = vmatpush1.bf16.msra.mxu0 0
  %2737 = vmatprep.subr.bf16.mxu0 0
  %2738 = vmatpush1.bf16.msra.mxu0 0
  %2739 = vmatprep.subr.bf16.mxu0 0
  %2740 = vmatpush1.bf16.msra.mxu0 0
  %2741 = vmatprep.subr.bf16.mxu0 0
  %2742 = vmatpush1.bf16.msra.mxu0 0
  %2743 = vmatprep.subr.bf16.mxu0 0
  %2744 = vmatpush1.bf16.msra.mxu0 0
  %2745 = vmatprep.subr.bf16.mxu0 0
  %2746 = vmatpush1.bf16.msra.mxu0 0
  %2747 = vmatprep.subr.bf16.mxu0 0
  %2748 = vmatpush1.bf16.msra.mxu0 0
  %2749 = vmatprep.subr.bf16.mxu0 0
  %2750 = vmatpush1.bf16.msra.mxu0 0
  %2751 = vmatprep.subr.bf16.mxu0 0
  %2752 = vmatpush1.bf16.msra.mxu0 0
  %2753 = vmatprep.subr.bf16.mxu0 0
  %2754 = vmatpush1.bf16.msra.mxu0 0
  %2755 = vmatprep.subr.bf16.mxu0 0
  %2756 = vmatpush1.bf16.msra.mxu0 0
  %2757 = vmatprep.mubr.bf16.mxu0 0
  %2758 = vmatmul.mubr.bf16.gmra.mrb[0].mxu0 %v2723
  %v2759 = vpop.f32.mrb[0].mxu0
  %v2760 = vadd.f32 %v2116, %v2759
  %v2761 = vpop.f32.mrb[0].mxu0
  %v2762 = vadd.f32 %v2120, %v2761
  %v2763 = vpop.f32.mrb[0].mxu0
  %v2764 = vadd.f32 %v2116, %v2763
  %v2765 = vpop.f32.mrb[0].mxu0
  %v2766 = vadd.f32 %v2120, %v2765
  %2767 = vdwg.mxu0
  %v2768 = vmax.f32 %v2760, 0.0
  %v2769 = vmax.f32 %v2762, 0.0
  %v2770 = vmax.f32 %v2764, 0.0
  %v2771 = vmax.f32 %v2766, 0.0
  %v2772 = vpack.c.bf16 %v2770, %v2768
  %v2773 = vpack.c.bf16 %v2771, %v2769
  %2774 = vmatprep.subr.bf16.mxu0 %v2323
  %2775 = vmatpush1.bf16.msra.mxu0 %v2322
  %2776 = vmatprep.subr.bf16.mxu0 %v2325
  %2777 = vmatpush1.bf16.msra.mxu0 %v2324
  %2778 = vmatprep.subr.bf16.mxu0 %v2327
  %2779 = vmatpush1.bf16.msra.mxu0 %v2326
  %2780 = vmatprep.subr.bf16.mxu0 %v2329
  %2781 = vmatpush1.bf16.msra.mxu0 %v2328
  %2782 = vmatprep.subr.bf16.mxu0 %v2331
  %2783 = vmatpush1.bf16.msra.mxu0 %v2330
  %2784 = vmatprep.subr.bf16.mxu0 %v2333
  %2785 = vmatpush1.bf16.msra.mxu0 %v2332
  %2786 = vmatprep.subr.bf16.mxu0 %v2335
  %2787 = vmatpush1.bf16.msra.mxu0 %v2334
  %2788 = vmatprep.subr.bf16.mxu0 %v2337
  %2789 = vmatpush1.bf16.msra.mxu0 %v2336
  %2790 = vmatprep.subr.bf16.mxu0 %v2339
  %2791 = vmatpush1.bf16.msra.mxu0 %v2338
  %2792 = vmatprep.subr.bf16.mxu0 %v2341
  %2793 = vmatpush1.bf16.msra.mxu0 %v2340
  %2794 = vmatprep.subr.bf16.mxu0 %v2343
  %2795 = vmatpush1.bf16.msra.mxu0 %v2342
  %2796 = vmatprep.subr.bf16.mxu0 %v2345
  %2797 = vmatpush1.bf16.msra.mxu0 %v2344
  %2798 = vmatprep.subr.bf16.mxu0 %v2347
  %2799 = vmatpush1.bf16.msra.mxu0 %v2346
  %2800 = vmatprep.subr.bf16.mxu0 %v2349
  %2801 = vmatpush1.bf16.msra.mxu0 %v2348
  %2802 = vmatprep.subr.bf16.mxu0 %v2351
  %2803 = vmatpush1.bf16.msra.mxu0 %v2350
  %2804 = vmatprep.subr.bf16.mxu0 %v2353
  %2805 = vmatpush1.bf16.msra.mxu0 %v2352
  %2806 = vmatprep.mubr.bf16.mxu0 %v2773
  %2807 = vmatmul.mubr.bf16.gmra.mrb[0].mxu0 %v2772
  %v2808 = vpop.f32.mrb[0].mxu0
  %v2809 = vadd.f32 %v2219, %v2808
  %v2810 = vpop.f32.mrb[0].mxu0
  %v2811 = vadd.f32 %v2223, %v2810
  %v2812 = vpop.f32.mrb[0].mxu0
  %v2813 = vadd.f32 %v2219, %v2812
  %v2814 = vpop.f32.mrb[0].mxu0
  %v2815 = vadd.f32 %v2223, %v2814
  %2816 = vdwg.mxu0
  %v2817 = vmul.f32 %v2809, %v2809
  %v2818 = vmul.f32 %v2811, %v2811
  %v2819 = vmul.f32 %v2813, %v2813
  %v2820 = vmul.f32 %v2815, %v2815
  %v2821 = vadd.f32 %v2817, %v2818
  %2822 = vadd.xlane.f32.xlu0 %v2821
  %v2823 = vpop.xlane.xlu0 %2822
  %v2824 = vadd.f32 %v2819, %v2820
  %2825 = vadd.xlane.f32.xlu0 %v2824
  %v2826 = vpop.xlane.xlu0 %2825
  %v2827 = vrsqrt.pop %v2823
  %v2828 = vmul.f32 %v2823, %v2827
  %vm2829 = vcmp.eq.f32.partialorder %v2823, inf
  %v2830 = vsel %vm2829, %v2823, %v2828
  %vm2831 = vcmp.eq.f32.partialorder %v2823, 0.0
  %v2832 = vand.u32 %v2823, 2147483648
  %v2833 = vsel %vm2831, %v2832, %v2830
  %v2834 = vrsqrt.pop %v2826
  %v2835 = vmul.f32 %v2826, %v2834
  %vm2836 = vcmp.eq.f32.partialorder %v2826, inf
  %v2837 = vsel %vm2836, %v2826, %v2835
  %vm2838 = vcmp.eq.f32.partialorder %v2826, 0.0
  %v2839 = vand.u32 %v2826, 2147483648
  %v2840 = vsel %vm2838, %v2839, %v2837
  %v2841 = vadd.f32 %v2833, 1e-07
  %v2842 = vadd.f32 %v2840, 1e-07
  %v2843 = vrcp.pop %v2841
  %v2844 = vrcp.pop %v2842
  %v2845 = vmul.f32 %v2809, %v2843
  %v2846 = vmul.f32 %v2811, %v2843
  %v2847 = vmul.f32 %v2813, %v2844
  %v2848 = vmul.f32 %v2815, %v2844
  %2849 = vst [vmem:[%s6 + $0x20] sm:$0xff] %v2845
  %2850 = vst [vmem:[%s6 + $0x28] sm:$0xff] %v2846
  %2851 = vst [vmem:[%s6 + $0x70] sm:$0xff] %v2847
  %2852 = vst [vmem:[%s6 + $0x78] sm:$0xff] %v2848
  %v2853 = vpack.c.bf16 %v1765, %v1765
  %v2854 = vpack.c.bf16 %v1772, %v1772
  %v2855 = vpack.c.bf16 %v1779, %v1779
  %v2856 = vpack.c.bf16 %v1786, %v1786
  %v2857 = vpack.c.bf16 %v1793, %v1793
  %v2858 = vpack.c.bf16 %v1800, %v1800
  %v2859 = vpack.c.bf16 %v1807, %v1807
  %v2860 = vpack.c.bf16 %v1814, %v1814
  %v2861 = vpack.c.bf16 %v1821, %v1821
  %v2862 = vpack.c.bf16 %v1828, %v1828
  %v2863 = vpack.c.bf16 %v1835, %v1835
  %v2864 = vpack.c.bf16 %v1842, %v1842
  %v2865 = vpack.c.bf16 %v1849, %v1849
  %v2866 = vpack.c.bf16 %v1856, %v1856
  %v2867 = vpack.c.bf16 %v1863, %v1863
  %v2868 = vpack.c.bf16 %v1870, %v1870
  %v2885 = vunpack.c.l.b16 %v2853
  %v2886 = vunpack.c.l.b16 %v2854
  %v2887 = vunpack.c.l.b16 %v2855
  %v2888 = vunpack.c.l.b16 %v2856
  %v2889 = vunpack.c.l.b16 %v2857
  %v2890 = vunpack.c.l.b16 %v2858
  %v2891 = vunpack.c.l.b16 %v2859
  %v2892 = vunpack.c.l.b16 %v2860
  %v2893 = vunpack.c.l.b16 %v2861
  %v2894 = vunpack.c.l.b16 %v2862
  %v2895 = vunpack.c.l.b16 %v2863
  %v2896 = vunpack.c.l.b16 %v2864
  %v2897 = vunpack.c.l.b16 %v2865
  %v2898 = vunpack.c.l.b16 %v2866
  %v2899 = vunpack.c.l.b16 %v2867
  %v2900 = vunpack.c.l.b16 %v2868
  %v2901 = vsel %vm641, %v2886, %v2885
  %v2902 = vsel %vm643, %v2887, %v2901
  %v2903 = vsel %vm645, %v2888, %v2902
  %v2904 = vsel %vm647, %v2889, %v2903
  %v2905 = vsel %vm649, %v2890, %v2904
  %v2906 = vsel %vm651, %v2891, %v2905
  %v2907 = vsel %vm653, %v2892, %v2906
  %v2908 = vsel %vm641, %v2894, %v2893
  %v2909 = vsel %vm643, %v2895, %v2908
  %v2910 = vsel %vm645, %v2896, %v2909
  %v2911 = vsel %vm647, %v2897, %v2910
  %v2912 = vsel %vm649, %v2898, %v2911
  %v2913 = vsel %vm651, %v2899, %v2912
  %v2914 = vsel %vm653, %v2900, %v2913
  %v2915 = vpack.c.b16 %v2914, %v2907
  %v2917 = vsel %vm240, %v2915, 0
  %2919 = vmatprep.subr.bf16.mxu0 %v2148
  %2920 = vmatpush1.bf16.msra.mxu0 %v2147
  %2921 = vmatprep.subr.bf16.mxu0 %v2150
  %2922 = vmatpush1.bf16.msra.mxu0 %v2149
  %2923 = vmatprep.subr.bf16.mxu0 %v2152
  %2924 = vmatpush1.bf16.msra.mxu0 %v2151
  %2925 = vmatprep.subr.bf16.mxu0 %v2154
  %2926 = vmatpush1.bf16.msra.mxu0 %v2153
  %2927 = vmatprep.subr.bf16.mxu0 0
  %2928 = vmatpush1.bf16.msra.mxu0 0
  %2929 = vmatprep.subr.bf16.mxu0 0
  %2930 = vmatpush1.bf16.msra.mxu0 0
  %2931 = vmatprep.subr.bf16.mxu0 0
  %2932 = vmatpush1.bf16.msra.mxu0 0
  %2933 = vmatprep.subr.bf16.mxu0 0
  %2934 = vmatpush1.bf16.msra.mxu0 0
  %2935 = vmatprep.subr.bf16.mxu0 0
  %2936 = vmatpush1.bf16.msra.mxu0 0
  %2937 = vmatprep.subr.bf16.mxu0 0
  %2938 = vmatpush1.bf16.msra.mxu0 0
  %2939 = vmatprep.subr.bf16.mxu0 0
  %2940 = vmatpush1.bf16.msra.mxu0 0
  %2941 = vmatprep.subr.bf16.mxu0 0
  %2942 = vmatpush1.bf16.msra.mxu0 0
  %2943 = vmatprep.subr.bf16.mxu0 0
  %2944 = vmatpush1.bf16.msra.mxu0 0
  %2945 = vmatprep.subr.bf16.mxu0 0
  %2946 = vmatpush1.bf16.msra.mxu0 0
  %2947 = vmatprep.subr.bf16.mxu0 0
  %2948 = vmatpush1.bf16.msra.mxu0 0
  %2949 = vmatprep.subr.bf16.mxu0 0
  %2950 = vmatpush1.bf16.msra.mxu0 0
  %2951 = vmatprep.mubr.bf16.mxu0 0
  %2952 = vmatmul.mubr.bf16.gmra.mrb[0].mxu0 %v2917
  %v2953 = vpop.f32.mrb[0].mxu0
  %v2954 = vadd.f32 %v2116, %v2953
  %v2955 = vpop.f32.mrb[0].mxu0
  %v2956 = vadd.f32 %v2120, %v2955
  %v2957 = vpop.f32.mrb[0].mxu0
  %v2958 = vadd.f32 %v2116, %v2957
  %v2959 = vpop.f32.mrb[0].mxu0
  %v2960 = vadd.f32 %v2120, %v2959
  %2961 = vdwg.mxu0
  %v2962 = vmax.f32 %v2954, 0.0
  %v2963 = vmax.f32 %v2956, 0.0
  %v2964 = vmax.f32 %v2958, 0.0
  %v2965 = vmax.f32 %v2960, 0.0
  %v2966 = vpack.c.bf16 %v2964, %v2962
  %v2967 = vpack.c.bf16 %v2965, %v2963
  %2968 = vmatprep.subr.bf16.mxu0 %v2323
  %2969 = vmatpush1.bf16.msra.mxu0 %v2322
  %2970 = vmatprep.subr.bf16.mxu0 %v2325
  %2971 = vmatpush1.bf16.msra.mxu0 %v2324
  %2972 = vmatprep.subr.bf16.mxu0 %v2327
  %2973 = vmatpush1.bf16.msra.mxu0 %v2326
  %2974 = vmatprep.subr.bf16.mxu0 %v2329
  %2975 = vmatpush1.bf16.msra.mxu0 %v2328
  %2976 = vmatprep.subr.bf16.mxu0 %v2331
  %2977 = vmatpush1.bf16.msra.mxu0 %v2330
  %2978 = vmatprep.subr.bf16.mxu0 %v2333
  %2979 = vmatpush1.bf16.msra.mxu0 %v2332
  %2980 = vmatprep.subr.bf16.mxu0 %v2335
  %2981 = vmatpush1.bf16.msra.mxu0 %v2334
  %2982 = vmatprep.subr.bf16.mxu0 %v2337
  %2983 = vmatpush1.bf16.msra.mxu0 %v2336
  %2984 = vmatprep.subr.bf16.mxu0 %v2339
  %2985 = vmatpush1.bf16.msra.mxu0 %v2338
  %2986 = vmatprep.subr.bf16.mxu0 %v2341
  %2987 = vmatpush1.bf16.msra.mxu0 %v2340
  %2988 = vmatprep.subr.bf16.mxu0 %v2343
  %2989 = vmatpush1.bf16.msra.mxu0 %v2342
  %2990 = vmatprep.subr.bf16.mxu0 %v2345
  %2991 = vmatpush1.bf16.msra.mxu0 %v2344
  %2992 = vmatprep.subr.bf16.mxu0 %v2347
  %2993 = vmatpush1.bf16.msra.mxu0 %v2346
  %2994 = vmatprep.subr.bf16.mxu0 %v2349
  %2995 = vmatpush1.bf16.msra.mxu0 %v2348
  %2996 = vmatprep.subr.bf16.mxu0 %v2351
  %2997 = vmatpush1.bf16.msra.mxu0 %v2350
  %2998 = vmatprep.subr.bf16.mxu0 %v2353
  %2999 = vmatpush1.bf16.msra.mxu0 %v2352
  %3000 = vmatprep.mubr.bf16.mxu0 %v2967
  %3001 = vmatmul.mubr.bf16.gmra.mrb[0].mxu0 %v2966
  %v3002 = vpop.f32.mrb[0].mxu0
  %v3003 = vadd.f32 %v2219, %v3002
  %v3004 = vpop.f32.mrb[0].mxu0
  %v3005 = vadd.f32 %v2223, %v3004
  %v3006 = vpop.f32.mrb[0].mxu0
  %v3007 = vadd.f32 %v2219, %v3006
  %v3008 = vpop.f32.mrb[0].mxu0
  %v3009 = vadd.f32 %v2223, %v3008
  %3010 = vdwg.mxu0
  %v3011 = vmul.f32 %v3003, %v3003
  %v3012 = vmul.f32 %v3005, %v3005
  %v3013 = vmul.f32 %v3007, %v3007
  %v3014 = vmul.f32 %v3009, %v3009
  %v3015 = vadd.f32 %v3011, %v3012
  %3016 = vadd.xlane.f32.xlu0 %v3015
  %v3017 = vpop.xlane.xlu0 %3016
  %v3018 = vadd.f32 %v3013, %v3014
  %3019 = vadd.xlane.f32.xlu0 %v3018
  %v3020 = vpop.xlane.xlu0 %3019
  %v3021 = vrsqrt.pop %v3017
  %v3022 = vmul.f32 %v3017, %v3021
  %vm3023 = vcmp.eq.f32.partialorder %v3017, inf
  %v3024 = vsel %vm3023, %v3017, %v3022
  %vm3025 = vcmp.eq.f32.partialorder %v3017, 0.0
  %v3026 = vand.u32 %v3017, 2147483648
  %v3027 = vsel %vm3025, %v3026, %v3024
  %v3028 = vrsqrt.pop %v3020
  %v3029 = vmul.f32 %v3020, %v3028
  %vm3030 = vcmp.eq.f32.partialorder %v3020, inf
  %v3031 = vsel %vm3030, %v3020, %v3029
  %vm3032 = vcmp.eq.f32.partialorder %v3020, 0.0
  %v3033 = vand.u32 %v3020, 2147483648
  %v3034 = vsel %vm3032, %v3033, %v3031
  %v3035 = vadd.f32 %v3027, 1e-07
  %v3036 = vadd.f32 %v3034, 1e-07
  %v3037 = vrcp.pop %v3035
  %v3038 = vrcp.pop %v3036
  %v3039 = vmul.f32 %v3003, %v3037
  %v3040 = vmul.f32 %v3005, %v3037
  %v3041 = vmul.f32 %v3007, %v3038
  %v3042 = vmul.f32 %v3009, %v3038
  %3043 = vst [vmem:[%s6 + $0x30] sm:$0xff] %v3039
  %3044 = vst [vmem:[%s6 + $0x38] sm:$0xff] %v3040
  %3045 = vst [vmem:[%s6 + $0x80] sm:$0xff] %v3041
  %3046 = vst [vmem:[%s6 + $0x88] sm:$0xff] %v3042
  %v3047 = vpack.c.bf16 %v2005, %v2005
  %v3048 = vpack.c.bf16 %v2012, %v2012
  %v3049 = vpack.c.bf16 %v2019, %v2019
  %v3050 = vpack.c.bf16 %v2026, %v2026
  %v3051 = vpack.c.bf16 %v2033, %v2033
  %v3052 = vpack.c.bf16 %v2040, %v2040
  %v3053 = vpack.c.bf16 %v2047, %v2047
  %v3054 = vpack.c.bf16 %v2054, %v2054
  %v3055 = vpack.c.bf16 %v2061, %v2061
  %v3056 = vpack.c.bf16 %v2068, %v2068
  %v3057 = vpack.c.bf16 %v2075, %v2075
  %v3058 = vpack.c.bf16 %v2082, %v2082
  %v3059 = vpack.c.bf16 %v2089, %v2089
  %v3060 = vpack.c.bf16 %v2096, %v2096
  %v3061 = vpack.c.bf16 %v2103, %v2103
  %v3062 = vpack.c.bf16 %v2110, %v2110
  %v3079 = vunpack.c.l.b16 %v3047
  %v3080 = vunpack.c.l.b16 %v3048
  %v3081 = vunpack.c.l.b16 %v3049
  %v3082 = vunpack.c.l.b16 %v3050
  %v3083 = vunpack.c.l.b16 %v3051
  %v3084 = vunpack.c.l.b16 %v3052
  %v3085 = vunpack.c.l.b16 %v3053
  %v3086 = vunpack.c.l.b16 %v3054
  %v3087 = vunpack.c.l.b16 %v3055
  %v3088 = vunpack.c.l.b16 %v3056
  %v3089 = vunpack.c.l.b16 %v3057
  %v3090 = vunpack.c.l.b16 %v3058
  %v3091 = vunpack.c.l.b16 %v3059
  %v3092 = vunpack.c.l.b16 %v3060
  %v3093 = vunpack.c.l.b16 %v3061
  %v3094 = vunpack.c.l.b16 %v3062
  %v3095 = vsel %vm641, %v3080, %v3079
  %v3096 = vsel %vm643, %v3081, %v3095
  %v3097 = vsel %vm645, %v3082, %v3096
  %v3098 = vsel %vm647, %v3083, %v3097
  %v3099 = vsel %vm649, %v3084, %v3098
  %v3100 = vsel %vm651, %v3085, %v3099
  %v3101 = vsel %vm653, %v3086, %v3100
  %v3102 = vsel %vm641, %v3088, %v3087
  %v3103 = vsel %vm643, %v3089, %v3102
  %v3104 = vsel %vm645, %v3090, %v3103
  %v3105 = vsel %vm647, %v3091, %v3104
  %v3106 = vsel %vm649, %v3092, %v3105
  %v3107 = vsel %vm651, %v3093, %v3106
  %v3108 = vsel %vm653, %v3094, %v3107
  %v3109 = vpack.c.b16 %v3108, %v3101
  %v3111 = vsel %vm240, %v3109, 0
  %3113 = vmatprep.subr.bf16.mxu0 %v2148
  %3114 = vmatpush1.bf16.msra.mxu0 %v2147
  %3115 = vmatprep.subr.bf16.mxu0 %v2150
  %3116 = vmatpush1.bf16.msra.mxu0 %v2149
  %3117 = vmatprep.subr.bf16.mxu0 %v2152
  %3118 = vmatpush1.bf16.msra.mxu0 %v2151
  %3119 = vmatprep.subr.bf16.mxu0 %v2154
  %3120 = vmatpush1.bf16.msra.mxu0 %v2153
  %3121 = vmatprep.subr.bf16.mxu0 0
  %3122 = vmatpush1.bf16.msra.mxu0 0
  %3123 = vmatprep.subr.bf16.mxu0 0
  %3124 = vmatpush1.bf16.msra.mxu0 0
  %3125 = vmatprep.subr.bf16.mxu0 0
  %3126 = vmatpush1.bf16.msra.mxu0 0
  %3127 = vmatprep.subr.bf16.mxu0 0
  %3128 = vmatpush1.bf16.msra.mxu0 0
  %3129 = vmatprep.subr.bf16.mxu0 0
  %3130 = vmatpush1.bf16.msra.mxu0 0
  %3131 = vmatprep.subr.bf16.mxu0 0
  %3132 = vmatpush1.bf16.msra.mxu0 0
  %3133 = vmatprep.subr.bf16.mxu0 0
  %3134 = vmatpush1.bf16.msra.mxu0 0
  %3135 = vmatprep.subr.bf16.mxu0 0
  %3136 = vmatpush1.bf16.msra.mxu0 0
  %3137 = vmatprep.subr.bf16.mxu0 0
  %3138 = vmatpush1.bf16.msra.mxu0 0
  %3139 = vmatprep.subr.bf16.mxu0 0
  %3140 = vmatpush1.bf16.msra.mxu0 0
  %3141 = vmatprep.subr.bf16.mxu0 0
  %3142 = vmatpush1.bf16.msra.mxu0 0
  %3143 = vmatprep.subr.bf16.mxu0 0
  %3144 = vmatpush1.bf16.msra.mxu0 0
  %3145 = vmatprep.mubr.bf16.mxu0 0
  %3146 = vmatmul.mubr.bf16.gmra.mrb[0].mxu0 %v3111
  %v3147 = vpop.f32.mrb[0].mxu0
  %v3148 = vadd.f32 %v2116, %v3147
  %v3149 = vpop.f32.mrb[0].mxu0
  %v3150 = vadd.f32 %v2120, %v3149
  %v3151 = vpop.f32.mrb[0].mxu0
  %v3152 = vadd.f32 %v2116, %v3151
  %v3153 = vpop.f32.mrb[0].mxu0
  %v3154 = vadd.f32 %v2120, %v3153
  %3155 = vdwg.mxu0
  %v3156 = vmax.f32 %v3148, 0.0
  %v3157 = vmax.f32 %v3150, 0.0
  %v3158 = vmax.f32 %v3152, 0.0
  %v3159 = vmax.f32 %v3154, 0.0
  %v3160 = vpack.c.bf16 %v3158, %v3156
  %v3161 = vpack.c.bf16 %v3159, %v3157
  %3162 = vmatprep.subr.bf16.mxu0 %v2323
  %3163 = vmatpush1.bf16.msra.mxu0 %v2322
  %3164 = vmatprep.subr.bf16.mxu0 %v2325
  %3165 = vmatpush1.bf16.msra.mxu0 %v2324
  %3166 = vmatprep.subr.bf16.mxu0 %v2327
  %3167 = vmatpush1.bf16.msra.mxu0 %v2326
  %3168 = vmatprep.subr.bf16.mxu0 %v2329
  %3169 = vmatpush1.bf16.msra.mxu0 %v2328
  %3170 = vmatprep.subr.bf16.mxu0 %v2331
  %3171 = vmatpush1.bf16.msra.mxu0 %v2330
  %3172 = vmatprep.subr.bf16.mxu0 %v2333
  %3173 = vmatpush1.bf16.msra.mxu0 %v2332
  %3174 = vmatprep.subr.bf16.mxu0 %v2335
  %3175 = vmatpush1.bf16.msra.mxu0 %v2334
  %3176 = vmatprep.subr.bf16.mxu0 %v2337
  %3177 = vmatpush1.bf16.msra.mxu0 %v2336
  %3178 = vmatprep.subr.bf16.mxu0 %v2339
  %3179 = vmatpush1.bf16.msra.mxu0 %v2338
  %3180 = vmatprep.subr.bf16.mxu0 %v2341
  %3181 = vmatpush1.bf16.msra.mxu0 %v2340
  %3182 = vmatprep.subr.bf16.mxu0 %v2343
  %3183 = vmatpush1.bf16.msra.mxu0 %v2342
  %3184 = vmatprep.subr.bf16.mxu0 %v2345
  %3185 = vmatpush1.bf16.msra.mxu0 %v2344
  %3186 = vmatprep.subr.bf16.mxu0 %v2347
  %3187 = vmatpush1.bf16.msra.mxu0 %v2346
  %3188 = vmatprep.subr.bf16.mxu0 %v2349
  %3189 = vmatpush1.bf16.msra.mxu0 %v2348
  %3190 = vmatprep.subr.bf16.mxu0 %v2351
  %3191 = vmatpush1.bf16.msra.mxu0 %v2350
  %3192 = vmatprep.subr.bf16.mxu0 %v2353
  %3193 = vmatpush1.bf16.msra.mxu0 %v2352
  %3194 = vmatprep.mubr.bf16.mxu0 %v3161
  %3195 = vmatmul.mubr.bf16.gmra.mrb[0].mxu0 %v3160
  %v3196 = vpop.f32.mrb[0].mxu0
  %v3197 = vadd.f32 %v2219, %v3196
  %v3198 = vpop.f32.mrb[0].mxu0
  %v3199 = vadd.f32 %v2223, %v3198
  %v3200 = vpop.f32.mrb[0].mxu0
  %v3201 = vadd.f32 %v2219, %v3200
  %v3202 = vpop.f32.mrb[0].mxu0
  %v3203 = vadd.f32 %v2223, %v3202
  %3204 = vdwg.mxu0
  %v3205 = vmul.f32 %v3197, %v3197
  %v3206 = vmul.f32 %v3199, %v3199
  %v3207 = vmul.f32 %v3201, %v3201
  %v3208 = vmul.f32 %v3203, %v3203
  %v3209 = vadd.f32 %v3205, %v3206
  %3210 = vadd.xlane.f32.xlu0 %v3209
  %v3211 = vpop.xlane.xlu0 %3210
  %v3212 = vadd.f32 %v3207, %v3208
  %3213 = vadd.xlane.f32.xlu0 %v3212
  %v3214 = vpop.xlane.xlu0 %3213
  %v3215 = vrsqrt.pop %v3211
  %v3216 = vmul.f32 %v3211, %v3215
  %vm3217 = vcmp.eq.f32.partialorder %v3211, inf
  %v3218 = vsel %vm3217, %v3211, %v3216
  %vm3219 = vcmp.eq.f32.partialorder %v3211, 0.0
  %v3220 = vand.u32 %v3211, 2147483648
  %v3221 = vsel %vm3219, %v3220, %v3218
  %v3222 = vrsqrt.pop %v3214
  %v3223 = vmul.f32 %v3214, %v3222
  %vm3224 = vcmp.eq.f32.partialorder %v3214, inf
  %v3225 = vsel %vm3224, %v3214, %v3223
  %vm3226 = vcmp.eq.f32.partialorder %v3214, 0.0
  %v3227 = vand.u32 %v3214, 2147483648
  %v3228 = vsel %vm3226, %v3227, %v3225
  %v3229 = vadd.f32 %v3221, 1e-07
  %v3230 = vadd.f32 %v3228, 1e-07
  %v3231 = vrcp.pop %v3229
  %v3232 = vrcp.pop %v3230
  %v3233 = vmul.f32 %v3197, %v3231
  %v3234 = vmul.f32 %v3199, %v3231
  %v3235 = vmul.f32 %v3201, %v3232
  %v3236 = vmul.f32 %v3203, %v3232
  %3237 = vst [vmem:[%s6 + $0x40] sm:$0xff] %v3233
  %3238 = vst [vmem:[%s6 + $0x48] sm:$0xff] %v3234
  %3239 = vst [vmem:[%s6 + $0x90] sm:$0xff] %v3235
  %3240 = vst [vmem:[%s6 + $0x98] sm:$0xff] %v3236
  // Predicated region
  $region26: #{_sample_one_level.1} parent=0 // pred_check
    _
  $region27: #{_sample_one_level.1} parent=0 // pred_check_branch
    %3242 = sbr.rel (0) target = $region29
  $region28: #{_sample_one_level.1} parent=0 // pred_region
    _
  $region29: #{_sample_one_level.1} parent=0 // pred_fallthru
    _
  // Predicated region
  $region30: #{_sample_one_level.1} parent=0 // pred_check
    _
  $region31: #{_sample_one_level.1} parent=0 // pred_check_branch
    %3244 = sbr.rel (0) target = $region33
  $region32: #{_sample_one_level.1} parent=0 // pred_region
    _
  $region33: #{_sample_one_level.1} parent=0 // pred_fallthru
    _
  // Predicated region
  $region34: #{_sample_one_level.1} parent=0 // pred_check
    _
  $region35: #{_sample_one_level.1} parent=0 // pred_check_branch
    %3246 = sbr.rel (0) target = $region37
  $region36: #{_sample_one_level.1} parent=0 // pred_region
    _
  $region37: #{_sample_one_level.1} parent=0 // pred_fallthru
    _
  // Predicated region
  $region38: #{_sample_one_level.1} parent=0 // pred_check
    _
  $region39: #{_sample_one_level.1} parent=0 // pred_check_branch
    %3248 = sbr.rel (0) target = $region41
  $region40: #{_sample_one_level.1} parent=0 // pred_region
    _
  $region41: #{_sample_one_level.1} parent=0 // pred_fallthru
    _

</llo_original>
